<compile_context>
chip_gen: v5e
topology: v5e:2x2
jax: 0.10.0
libtpu: 0.0.40
codegen_flags: <defaults>
</compile_context>

<pallas_src>
import jax
import jax.numpy as jnp
from jax.experimental import pallas as pl
from jax.experimental.pallas import tpu as pltpu


# ---------------------------------------------------------------------------
# helpers
# ---------------------------------------------------------------------------
def _round_up(n, m):
    return ((n + m - 1) // m) * m


def _choose_bm(m, cap=512):
    """Row-block size: multiple of 16 (bf16 sublane packing), >=2 grid steps when the row
    count allows (v7x has 2 TensorCores), capped for bounded VMEM / good pipelining."""
    if m <= 32:
        return _round_up(max(m, 1), 16)
    return min(cap, _round_up((m + 1) // 2, 16))


def _pad2(a, rows, cols):
    return jnp.pad(a, ((0, rows - a.shape[0]), (0, cols - a.shape[1])))


# ---------------------------------------------------------------------------
# Pallas kernels
# ---------------------------------------------------------------------------
def _conv_relu_pool_kernel(q_ref, w_ref, b_ref, o_ref, acc_ref):
    """Fused conv (as matmul over im2col quadrants) + bias + ReLU + 2x2 max-pool.

    q_ref:   (4, bm, Kpad) bf16 -- the four 2x2-window quadrants of the patch matrix
    w_ref:   (Kpad, 128) bf16
    b_ref:   (1, 128) f32
    o_ref:   (bm, 128) bf16
    acc_ref: (bm, 128) f32 VMEM scratch
    """
    w = w_ref[...]
    # relu(max_q(dot_q + b)) == max over the 2x2 window of relu(conv + b).
    # Sequential accumulate chain (not a tree) to bound live f32 tiles.
    acc_ref[...] = jnp.dot(q_ref[0], w, preferred_element_type=jnp.float32)
    acc_ref[...] = jnp.maximum(acc_ref[...],
                               jnp.dot(q_ref[1], w, preferred_element_type=jnp.float32))
    acc_ref[...] = jnp.maximum(acc_ref[...],
                               jnp.dot(q_ref[2], w, preferred_element_type=jnp.float32))
    acc_ref[...] = jnp.maximum(acc_ref[...],
                               jnp.dot(q_ref[3], w, preferred_element_type=jnp.float32))
    o_ref[...] = jnp.maximum(acc_ref[...] + b_ref[...], 0.0).astype(o_ref.dtype)


def _mlp_kernel(x_ref, w1_ref, b1_ref, w2_ref, b2_ref, w3_ref, b3_ref, o_ref):
    """fc1(relu) -> fc2(relu) -> fc3, all in one kernel; intermediates stay on-chip."""
    h = jnp.dot(x_ref[...], w1_ref[...], preferred_element_type=jnp.float32)
    h = jnp.maximum(h + b1_ref[...], 0.0)
    h = jnp.dot(h.astype(jnp.bfloat16), w2_ref[...], preferred_element_type=jnp.float32)
    h = jnp.maximum(h + b2_ref[...], 0.0)
    o = jnp.dot(h.astype(jnp.bfloat16), w3_ref[...], preferred_element_type=jnp.float32)
    o_ref[...] = o + b3_ref[...]


# ---------------------------------------------------------------------------
# Wrappers
# ---------------------------------------------------------------------------
def conv_relu_pool_pallas(x_nhwc, w_mat, b_mat, K):
    """Fused valid conv (stride 1, cross-correlation) + bias + ReLU + MaxPool2d(2,2).

    x_nhwc: (B, H, W, C) channels-last (any float dtype; cast to bf16 here)
    w_mat:  (Kpad, 128) bf16, rows ordered (ki, kj, c), zero-padded
    b_mat:  (1, 128) f32, zero-padded
    returns (B, POH, POW, 128) bf16 channels-last (only the first OC channels are valid)
    """
    B, H, W, C = x_nhwc.shape
    OH, OW = H - K + 1, W - K + 1
    assert OH % 2 == 0 and OW % 2 == 0, "2x2-pool quadrant decomposition needs even conv output"
    POH, POW = OH // 2, OW // 2
    Kpad = w_mat.shape[0]
    KKC = K * K * C
    M = B * POH * POW
    bm = _choose_bm(M)
    Mpad = _round_up(M, bm)

    # Build the four bf16 quadrant slabs directly from x (no f32 patch matrix), feature
    # order (ki, kj, c) matching the weight row order.
    x = x_nhwc.astype(jnp.bfloat16)

    def quad(dy, dx):
        feats = [x[:, dy + ki:dy + ki + 2 * POH:2, dx + kj:dx + kj + 2 * POW:2, :]
                 for ki in range(K) for kj in range(K)]
        return jnp.concatenate(feats, axis=-1).reshape(M, KKC)

    q = jnp.stack([quad(dy, dx) for dy in range(2) for dx in range(2)], axis=0)
    q = jnp.pad(q, ((0, 0), (0, Mpad - M), (0, Kpad - KKC)))          # (4, Mpad, Kpad) bf16

    out = pl.pallas_call(
        _conv_relu_pool_kernel,
        out_shape=jax.ShapeDtypeStruct((Mpad, 128), jnp.bfloat16),
        grid=(Mpad // bm,),
        in_specs=[pl.BlockSpec((4, bm, Kpad), lambda i: (0, i, 0)),   # one DMA stream
                  pl.BlockSpec((Kpad, 128), lambda i: (0, 0)),
                  pl.BlockSpec((1, 128), lambda i: (0, 0))],
        out_specs=pl.BlockSpec((bm, 128), lambda i: (i, 0)),
        scratch_shapes=[pltpu.VMEM((bm, 128), jnp.float32)],
        compiler_params=pltpu.CompilerParams(dimension_semantics=("parallel",)),
    )(q, w_mat, b_mat)
    return out[:M].reshape(B, POH, POW, 128)


def mlp_pallas(x_flat, prep):
    """Fused fc1->fc2->fc3.  x_flat: (B, 400) channels-last-flattened features (bf16 ok)."""
    B, F = x_flat.shape
    Fpad = prep["fc1_w"].shape[0]
    bm = _choose_bm(B)
    Bpad = _round_up(B, bm)
    xp = _pad2(x_flat.astype(jnp.bfloat16), Bpad, Fpad)

    full = lambda shape: pl.BlockSpec(shape, lambda i: (0, 0))
    out = pl.pallas_call(
        _mlp_kernel,
        out_shape=jax.ShapeDtypeStruct((Bpad, 128), jnp.float32),
        grid=(Bpad // bm,),
        in_specs=[pl.BlockSpec((bm, Fpad), lambda i: (i, 0)),
                  full((Fpad, 128)), full((1, 128)),
                  full((128, 128)), full((1, 128)),
                  full((128, 128)), full((1, 128))],
        out_specs=pl.BlockSpec((bm, 128), lambda i: (i, 0)),
        compiler_params=pltpu.CompilerParams(dimension_semantics=("parallel",)),
    )(xp, prep["fc1_w"], prep["fc1_b"], prep["fc2_w"], prep["fc2_b"],
      prep["fc3_w"], prep["fc3_b"])
    return out[:B, :10]


# ---------------------------------------------------------------------------
# Parameter init (PyTorch layout) + one-time prep into kernel-friendly layout
# ---------------------------------------------------------------------------
def _uniform(key, shape, fan_in):
    bound = 1.0 / jnp.sqrt(jnp.float32(fan_in))
    return jax.random.uniform(key, shape, jnp.float32, -bound, bound)


def init_params(key):
    ks = jax.random.split(key, 10)
    return {
        "conv1_w": _uniform(ks[0], (6, 3, 5, 5), 3 * 5 * 5),
        "conv1_b": _uniform(ks[1], (6,), 3 * 5 * 5),
        "conv2_w": _uniform(ks[2], (16, 6, 5, 5), 6 * 5 * 5),
        "conv2_b": _uniform(ks[3], (16,), 6 * 5 * 5),
        "fc1_w": _uniform(ks[4], (120, 400), 400),   # PyTorch Linear: (out, in)
        "fc1_b": _uniform(ks[5], (120,), 400),
        "fc2_w": _uniform(ks[6], (84, 120), 120),
        "fc2_b": _uniform(ks[7], (84,), 120),
        "fc3_w": _uniform(ks[8], (10, 84), 84),
        "fc3_b": _uniform(ks[9], (10,), 84),
    }


def prepare_params(params):
    """One-time, outside the traced forward: reshape/permute/pad/cast all weights."""
    prep = {}
    # conv weights: (OC, IC, K, K) -> (K*K*IC, OC) with rows ordered (ki, kj, ic),
    # matching the channels-last patch feature order; pad K to 128/256 and OC to 128.
    for name, kpad in (("conv1", 128), ("conv2", 256)):
        w = params[f"{name}_w"]
        OC, IC, K, _ = w.shape
        wm = jnp.transpose(w, (2, 3, 1, 0)).reshape(K * K * IC, OC)
        prep[f"{name}_w"] = _pad2(wm, kpad, 128).astype(jnp.bfloat16)
        prep[f"{name}_b"] = _pad2(params[f"{name}_b"].reshape(1, OC), 1, 128)
    # fc1: permute columns so channels-last flatten (ph, pw, c) reproduces PyTorch's
    # NCHW .view(-1, 400) feature order (c*25 + ph*5 + pw).
    perm = jnp.array([(j % 16) * 25 + (j // 16) for j in range(400)], dtype=jnp.int32)
    w1 = params["fc1_w"][:, perm].T                      # (400, 120), channels-last order
    prep["fc1_w"] = _pad2(w1, 512, 128).astype(jnp.bfloat16)
    prep["fc1_b"] = _pad2(params["fc1_b"].reshape(1, -1), 1, 128)
    prep["fc2_w"] = _pad2(params["fc2_w"].T, 128, 128).astype(jnp.bfloat16)
    prep["fc2_b"] = _pad2(params["fc2_b"].reshape(1, -1), 1, 128)
    prep["fc3_w"] = _pad2(params["fc3_w"].T, 128, 128).astype(jnp.bfloat16)
    prep["fc3_b"] = _pad2(params["fc3_b"].reshape(1, -1), 1, 128)
    return prep


# ---------------------------------------------------------------------------
# Forward pass (mirrors Net.forward)
# ---------------------------------------------------------------------------
@jax.jit
def net_forward(prep, x_nchw):
    x = jnp.transpose(x_nchw, (0, 2, 3, 1))                        # NCHW -> NHWC once
    x = conv_relu_pool_pallas(x, prep["conv1_w"], prep["conv1_b"], 5)[..., :6]
    x = conv_relu_pool_pallas(x, prep["conv2_w"], prep["conv2_b"], 5)[..., :16]
    B = x.shape[0]
    x = x.reshape(B, 5 * 5 * 16)          # channels-last flatten; fc1_w pre-permuted
    return mlp_pallas(x, prep)


# Reference with identical numerics (bf16 matmul inputs, f32 accumulation) but the
# original PyTorch layout (NCHW, standard im2col, NCHW flatten) -- validates both the
# math and the layout/permutation bookkeeping of the Pallas path.
def net_forward_ref(params, x):
    def conv_relu(x, w, b):
        B, C, H, W = x.shape
        OC, IC, K, _ = w.shape
        OH, OW = H - K + 1, W - K + 1
        cols = [x[:, :, i:i + OH, j:j + OW] for i in range(K) for j in range(K)]
        p = jnp.stack(cols, axis=2)                       # (B, C, K*K, OH, OW)
        p = p.transpose(0, 3, 4, 1, 2).reshape(B * OH * OW, C * K * K)
        y = jnp.dot(p.astype(jnp.bfloat16),
                    w.reshape(OC, -1).T.astype(jnp.bfloat16),
                    preferred_element_type=jnp.float32) + b[None, :]
        y = jnp.maximum(y, 0.0)
        return y.reshape(B, OH, OW, OC).transpose(0, 3, 1, 2)

    def pool(x):
        B, C, H, W = x.shape
        return jnp.max(x.reshape(B, C, H // 2, 2, W // 2, 2), axis=(3, 5))

    def lin(x, w, b, relu):
        y = jnp.dot(x.astype(jnp.bfloat16), w.T.astype(jnp.bfloat16),
                    preferred_element_type=jnp.float32) + b
        return jnp.maximum(y, 0.0) if relu else y

    x = pool(conv_relu(x, params["conv1_w"], params["conv1_b"]))
    x = pool(conv_relu(x, params["conv2_w"], params["conv2_b"]))
    x = x.reshape(-1, 400)
    x = lin(x, params["fc1_w"], params["fc1_b"], True)
    x = lin(x, params["fc2_w"], params["fc2_b"], True)
    return lin(x, params["fc3_w"], params["fc3_b"], False)


if __name__ == "__main__":
    key = jax.random.PRNGKey(0)
    k_param, k_x = jax.random.split(key)
    params = init_params(k_param)
    prep = prepare_params(params)
    # Input implied by fc1 (16*5*5): CIFAR-size NCHW, small batch.
    x = jax.random.normal(k_x, (2, 3, 32, 32), dtype=jnp.float32)

    out = jax.block_until_ready(net_forward(prep, x))
    ref = jax.block_until_ready(net_forward_ref(params, x))

    assert out.shape == (2, 10), out.shape
    # bf16 matmul inputs in both paths; residual diff is accumulation-order / bf16-store noise.
    assert jnp.max(jnp.abs(out - ref)) < 2e-2, "Pallas output mismatch vs reference"
    print("KERNEL_OK")
</pallas_src>

<mosaic_0001>
module attributes {stable_mosaic.version = 11 : i64} {
  func.func @_conv_relu_pool_kernel(%arg0: i32, %arg1: memref<4x208x128xbf16, #tpu.memory_space<vmem>>, %arg2: memref<128x128xbf16, #tpu.memory_space<vmem>>, %arg3: memref<1x128xf32, #tpu.memory_space<vmem>>, %arg4: memref<208x128xbf16, #tpu.memory_space<vmem>>, %arg5: memref<208x128xf32, #tpu.memory_space<vmem>>) attributes {dimension_semantics = [#tpu.dimension_semantics<parallel>], iteration_bounds = array<i64: 2>, scalar_prefetch = 0 : i64, scratch_operands = 1 : i64, tpu.core_type = #tpu.core_type<tc>, window_params = [{transform_indices = @transform_0, window_bounds = array<i64: 4, 208, 128>}, {pipeline_mode = #tpu.pipeline_mode<synchronous>, transform_indices = @transform_1, window_bounds = array<i64: 128, 128>}, {pipeline_mode = #tpu.pipeline_mode<synchronous>, transform_indices = @transform_2, window_bounds = array<i64: 1, 128>}, {transform_indices = @transform_3, window_bounds = array<i64: 208, 128>}]} {
    %c0 = arith.constant 0 : index
    %c0_0 = arith.constant 0 : index
    %0 = vector.load %arg2[%c0, %c0_0] : memref<128x128xbf16, #tpu.memory_space<vmem>>, vector<128x128xbf16>
    %c0_1 = arith.constant 0 : index
    %c0_2 = arith.constant 0 : index
    %c0_3 = arith.constant 0 : index
    %1 = vector.load %arg1[%c0_1, %c0_2, %c0_3] : memref<4x208x128xbf16, #tpu.memory_space<vmem>>, vector<1x208x128xbf16>
    %2 = vector.shape_cast %1 : vector<1x208x128xbf16> to vector<208x128xbf16>
    %cst = arith.constant dense<0.000000e+00> : vector<208x128xf32>
    %3 = tpu.matmul %2, %0, %cst {dimension_numbers = #tpu.dot_dimension_numbers<[1], [0], [0], [1], [0, 0, 1, 1], [], []>} : vector<208x128xbf16>, vector<128x128xbf16>, vector<208x128xf32> -> vector<208x128xf32>
    %c0_4 = arith.constant 0 : index
    %c0_5 = arith.constant 0 : index
    %4 = vector.load %arg5[%c0_4, %c0_5] : memref<208x128xf32, #tpu.memory_space<vmem>>, vector<208x128xf32>
    tpu.vector_store %arg5[%c0_4, %c0_5], %3 {strides = array<i32>} : memref<208x128xf32, #tpu.memory_space<vmem>>, vector<208x128xf32>,
    %c0_6 = arith.constant 0 : index
    %c0_7 = arith.constant 0 : index
    %5 = vector.load %arg5[%c0_6, %c0_7] : memref<208x128xf32, #tpu.memory_space<vmem>>, vector<208x128xf32>
    %c1 = arith.constant 1 : index
    %c0_8 = arith.constant 0 : index
    %c0_9 = arith.constant 0 : index
    %6 = vector.load %arg1[%c1, %c0_8, %c0_9] : memref<4x208x128xbf16, #tpu.memory_space<vmem>>, vector<1x208x128xbf16>
    %7 = vector.shape_cast %6 : vector<1x208x128xbf16> to vector<208x128xbf16>
    %cst_10 = arith.constant dense<0.000000e+00> : vector<208x128xf32>
    %8 = tpu.matmul %7, %0, %cst_10 {dimension_numbers = #tpu.dot_dimension_numbers<[1], [0], [0], [1], [0, 0, 1, 1], [], []>} : vector<208x128xbf16>, vector<128x128xbf16>, vector<208x128xf32> -> vector<208x128xf32>
    %9 = arith.maximumf %5, %8 : vector<208x128xf32>
    %c0_11 = arith.constant 0 : index
    %c0_12 = arith.constant 0 : index
    %10 = vector.load %arg5[%c0_11, %c0_12] : memref<208x128xf32, #tpu.memory_space<vmem>>, vector<208x128xf32>
    tpu.vector_store %arg5[%c0_11, %c0_12], %9 {strides = array<i32>} : memref<208x128xf32, #tpu.memory_space<vmem>>, vector<208x128xf32>,
    %c0_13 = arith.constant 0 : index
    %c0_14 = arith.constant 0 : index
    %11 = vector.load %arg5[%c0_13, %c0_14] : memref<208x128xf32, #tpu.memory_space<vmem>>, vector<208x128xf32>
    %c2 = arith.constant 2 : index
    %c0_15 = arith.constant 0 : index
    %c0_16 = arith.constant 0 : index
    %12 = vector.load %arg1[%c2, %c0_15, %c0_16] : memref<4x208x128xbf16, #tpu.memory_space<vmem>>, vector<1x208x128xbf16>
    %13 = vector.shape_cast %12 : vector<1x208x128xbf16> to vector<208x128xbf16>
    %cst_17 = arith.constant dense<0.000000e+00> : vector<208x128xf32>
    %14 = tpu.matmul %13, %0, %cst_17 {dimension_numbers = #tpu.dot_dimension_numbers<[1], [0], [0], [1], [0, 0, 1, 1], [], []>} : vector<208x128xbf16>, vector<128x128xbf16>, vector<208x128xf32> -> vector<208x128xf32>
    %15 = arith.maximumf %11, %14 : vector<208x128xf32>
    %c0_18 = arith.constant 0 : index
    %c0_19 = arith.constant 0 : index
    %16 = vector.load %arg5[%c0_18, %c0_19] : memref<208x128xf32, #tpu.memory_space<vmem>>, vector<208x128xf32>
    tpu.vector_store %arg5[%c0_18, %c0_19], %15 {strides = array<i32>} : memref<208x128xf32, #tpu.memory_space<vmem>>, vector<208x128xf32>,
    %c0_20 = arith.constant 0 : index
    %c0_21 = arith.constant 0 : index
    %17 = vector.load %arg5[%c0_20, %c0_21] : memref<208x128xf32, #tpu.memory_space<vmem>>, vector<208x128xf32>
    %c3 = arith.constant 3 : index
    %c0_22 = arith.constant 0 : index
    %c0_23 = arith.constant 0 : index
    %18 = vector.load %arg1[%c3, %c0_22, %c0_23] : memref<4x208x128xbf16, #tpu.memory_space<vmem>>, vector<1x208x128xbf16>
    %19 = vector.shape_cast %18 : vector<1x208x128xbf16> to vector<208x128xbf16>
    %cst_24 = arith.constant dense<0.000000e+00> : vector<208x128xf32>
    %20 = tpu.matmul %19, %0, %cst_24 {dimension_numbers = #tpu.dot_dimension_numbers<[1], [0], [0], [1], [0, 0, 1, 1], [], []>} : vector<208x128xbf16>, vector<128x128xbf16>, vector<208x128xf32> -> vector<208x128xf32>
    %21 = arith.maximumf %17, %20 : vector<208x128xf32>
    %c0_25 = arith.constant 0 : index
    %c0_26 = arith.constant 0 : index
    %22 = vector.load %arg5[%c0_25, %c0_26] : memref<208x128xf32, #tpu.memory_space<vmem>>, vector<208x128xf32>
    tpu.vector_store %arg5[%c0_25, %c0_26], %21 {strides = array<i32>} : memref<208x128xf32, #tpu.memory_space<vmem>>, vector<208x128xf32>,
    %c0_27 = arith.constant 0 : index
    %c0_28 = arith.constant 0 : index
    %23 = vector.load %arg5[%c0_27, %c0_28] : memref<208x128xf32, #tpu.memory_space<vmem>>, vector<208x128xf32>
    %c0_29 = arith.constant 0 : index
    %c0_30 = arith.constant 0 : index
    %24 = vector.load %arg3[%c0_29, %c0_30] : memref<1x128xf32, #tpu.memory_space<vmem>>, vector<1x128xf32>
    %25 = vector.broadcast %24 : vector<1x128xf32> to vector<208x128xf32>
    %26 = arith.addf %23, %25 : vector<208x128xf32>
    %cst_31 = arith.constant 0.000000e+00 : f32
    %27 = vector.broadcast %cst_31 : f32 to vector<208x128xf32>
    %28 = arith.maximumf %26, %27 : vector<208x128xf32>
    %29 = arith.truncf %28 : vector<208x128xf32> to vector<208x128xbf16>
    %c0_32 = arith.constant 0 : index
    %c0_33 = arith.constant 0 : index
    %30 = vector.load %arg4[%c0_32, %c0_33] : memref<208x128xbf16, #tpu.memory_space<vmem>>, vector<208x128xbf16>
    tpu.vector_store %arg4[%c0_32, %c0_33], %29 {strides = array<i32>} : memref<208x128xbf16, #tpu.memory_space<vmem>>, vector<208x128xbf16>,
    return
  }
  func.func @transform_0(%arg0: i32) -> (i32, i32, i32) {
    %c0_i32 = arith.constant 0 : i32
    %c0_i32_0 = arith.constant 0 : i32
    %c0_i32_1 = arith.constant 0 : i32
    return %c0_i32, %arg0, %c0_i32_0 : i32, i32, i32
  }
  func.func @transform_1(%arg0: i32) -> (i32, i32) {
    %c0_i32 = arith.constant 0 : i32
    %c0_i32_0 = arith.constant 0 : i32
    %c0_i32_1 = arith.constant 0 : i32
    return %c0_i32, %c0_i32_0 : i32, i32
  }
  func.func @transform_2(%arg0: i32) -> (i32, i32) {
    %c0_i32 = arith.constant 0 : i32
    %c0_i32_0 = arith.constant 0 : i32
    %c0_i32_1 = arith.constant 0 : i32
    return %c0_i32, %c0_i32_0 : i32, i32
  }
  func.func @transform_3(%arg0: i32) -> (i32, i32) {
    %c0_i32 = arith.constant 0 : i32
    %c0_i32_0 = arith.constant 0 : i32
    return %arg0, %c0_i32 : i32, i32
  }
}

module attributes {stable_mosaic.version = 11 : i64} {
  func.func @_conv_relu_pool_kernel(%arg0: i32, %arg1: memref<4x32x256xbf16, #tpu.memory_space<vmem>>, %arg2: memref<256x128xbf16, #tpu.memory_space<vmem>>, %arg3: memref<1x128xf32, #tpu.memory_space<vmem>>, %arg4: memref<32x128xbf16, #tpu.memory_space<vmem>>, %arg5: memref<32x128xf32, #tpu.memory_space<vmem>>) attributes {dimension_semantics = [#tpu.dimension_semantics<parallel>], iteration_bounds = array<i64: 2>, scalar_prefetch = 0 : i64, scratch_operands = 1 : i64, tpu.core_type = #tpu.core_type<tc>, window_params = [{transform_indices = @transform_0, window_bounds = array<i64: 4, 32, 256>}, {pipeline_mode = #tpu.pipeline_mode<synchronous>, transform_indices = @transform_1, window_bounds = array<i64: 256, 128>}, {pipeline_mode = #tpu.pipeline_mode<synchronous>, transform_indices = @transform_2, window_bounds = array<i64: 1, 128>}, {transform_indices = @transform_3, window_bounds = array<i64: 32, 128>}]} {
    %c0 = arith.constant 0 : index
    %c0_0 = arith.constant 0 : index
    %0 = vector.load %arg2[%c0, %c0_0] : memref<256x128xbf16, #tpu.memory_space<vmem>>, vector<256x128xbf16>
    %c0_1 = arith.constant 0 : index
    %c0_2 = arith.constant 0 : index
    %c0_3 = arith.constant 0 : index
    %1 = vector.load %arg1[%c0_1, %c0_2, %c0_3] : memref<4x32x256xbf16, #tpu.memory_space<vmem>>, vector<1x32x256xbf16>
    %2 = vector.shape_cast %1 : vector<1x32x256xbf16> to vector<32x256xbf16>
    %cst = arith.constant dense<0.000000e+00> : vector<32x128xf32>
    %3 = tpu.matmul %2, %0, %cst {dimension_numbers = #tpu.dot_dimension_numbers<[1], [0], [0], [1], [0, 0, 1, 1], [], []>} : vector<32x256xbf16>, vector<256x128xbf16>, vector<32x128xf32> -> vector<32x128xf32>
    %c0_4 = arith.constant 0 : index
    %c0_5 = arith.constant 0 : index
    %4 = vector.load %arg5[%c0_4, %c0_5] : memref<32x128xf32, #tpu.memory_space<vmem>>, vector<32x128xf32>
    tpu.vector_store %arg5[%c0_4, %c0_5], %3 {strides = array<i32>} : memref<32x128xf32, #tpu.memory_space<vmem>>, vector<32x128xf32>,
    %c0_6 = arith.constant 0 : index
    %c0_7 = arith.constant 0 : index
    %5 = vector.load %arg5[%c0_6, %c0_7] : memref<32x128xf32, #tpu.memory_space<vmem>>, vector<32x128xf32>
    %c1 = arith.constant 1 : index
    %c0_8 = arith.constant 0 : index
    %c0_9 = arith.constant 0 : index
    %6 = vector.load %arg1[%c1, %c0_8, %c0_9] : memref<4x32x256xbf16, #tpu.memory_space<vmem>>, vector<1x32x256xbf16>
    %7 = vector.shape_cast %6 : vector<1x32x256xbf16> to vector<32x256xbf16>
    %cst_10 = arith.constant dense<0.000000e+00> : vector<32x128xf32>
    %8 = tpu.matmul %7, %0, %cst_10 {dimension_numbers = #tpu.dot_dimension_numbers<[1], [0], [0], [1], [0, 0, 1, 1], [], []>} : vector<32x256xbf16>, vector<256x128xbf16>, vector<32x128xf32> -> vector<32x128xf32>
    %9 = arith.maximumf %5, %8 : vector<32x128xf32>
    %c0_11 = arith.constant 0 : index
    %c0_12 = arith.constant 0 : index
    %10 = vector.load %arg5[%c0_11, %c0_12] : memref<32x128xf32, #tpu.memory_space<vmem>>, vector<32x128xf32>
    tpu.vector_store %arg5[%c0_11, %c0_12], %9 {strides = array<i32>} : memref<32x128xf32, #tpu.memory_space<vmem>>, vector<32x128xf32>,
    %c0_13 = arith.constant 0 : index
    %c0_14 = arith.constant 0 : index
    %11 = vector.load %arg5[%c0_13, %c0_14] : memref<32x128xf32, #tpu.memory_space<vmem>>, vector<32x128xf32>
    %c2 = arith.constant 2 : index
    %c0_15 = arith.constant 0 : index
    %c0_16 = arith.constant 0 : index
    %12 = vector.load %arg1[%c2, %c0_15, %c0_16] : memref<4x32x256xbf16, #tpu.memory_space<vmem>>, vector<1x32x256xbf16>
    %13 = vector.shape_cast %12 : vector<1x32x256xbf16> to vector<32x256xbf16>
    %cst_17 = arith.constant dense<0.000000e+00> : vector<32x128xf32>
    %14 = tpu.matmul %13, %0, %cst_17 {dimension_numbers = #tpu.dot_dimension_numbers<[1], [0], [0], [1], [0, 0, 1, 1], [], []>} : vector<32x256xbf16>, vector<256x128xbf16>, vector<32x128xf32> -> vector<32x128xf32>
    %15 = arith.maximumf %11, %14 : vector<32x128xf32>
    %c0_18 = arith.constant 0 : index
    %c0_19 = arith.constant 0 : index
    %16 = vector.load %arg5[%c0_18, %c0_19] : memref<32x128xf32, #tpu.memory_space<vmem>>, vector<32x128xf32>
    tpu.vector_store %arg5[%c0_18, %c0_19], %15 {strides = array<i32>} : memref<32x128xf32, #tpu.memory_space<vmem>>, vector<32x128xf32>,
    %c0_20 = arith.constant 0 : index
    %c0_21 = arith.constant 0 : index
    %17 = vector.load %arg5[%c0_20, %c0_21] : memref<32x128xf32, #tpu.memory_space<vmem>>, vector<32x128xf32>
    %c3 = arith.constant 3 : index
    %c0_22 = arith.constant 0 : index
    %c0_23 = arith.constant 0 : index
    %18 = vector.load %arg1[%c3, %c0_22, %c0_23] : memref<4x32x256xbf16, #tpu.memory_space<vmem>>, vector<1x32x256xbf16>
    %19 = vector.shape_cast %18 : vector<1x32x256xbf16> to vector<32x256xbf16>
    %cst_24 = arith.constant dense<0.000000e+00> : vector<32x128xf32>
    %20 = tpu.matmul %19, %0, %cst_24 {dimension_numbers = #tpu.dot_dimension_numbers<[1], [0], [0], [1], [0, 0, 1, 1], [], []>} : vector<32x256xbf16>, vector<256x128xbf16>, vector<32x128xf32> -> vector<32x128xf32>
    %21 = arith.maximumf %17, %20 : vector<32x128xf32>
    %c0_25 = arith.constant 0 : index
    %c0_26 = arith.constant 0 : index
    %22 = vector.load %arg5[%c0_25, %c0_26] : memref<32x128xf32, #tpu.memory_space<vmem>>, vector<32x128xf32>
    tpu.vector_store %arg5[%c0_25, %c0_26], %21 {strides = array<i32>} : memref<32x128xf32, #tpu.memory_space<vmem>>, vector<32x128xf32>,
    %c0_27 = arith.constant 0 : index
    %c0_28 = arith.constant 0 : index
    %23 = vector.load %arg5[%c0_27, %c0_28] : memref<32x128xf32, #tpu.memory_space<vmem>>, vector<32x128xf32>
    %c0_29 = arith.constant 0 : index
    %c0_30 = arith.constant 0 : index
    %24 = vector.load %arg3[%c0_29, %c0_30] : memref<1x128xf32, #tpu.memory_space<vmem>>, vector<1x128xf32>
    %25 = vector.broadcast %24 : vector<1x128xf32> to vector<32x128xf32>
    %26 = arith.addf %23, %25 : vector<32x128xf32>
    %cst_31 = arith.constant 0.000000e+00 : f32
    %27 = vector.broadcast %cst_31 : f32 to vector<32x128xf32>
    %28 = arith.maximumf %26, %27 : vector<32x128xf32>
    %29 = arith.truncf %28 : vector<32x128xf32> to vector<32x128xbf16>
    %c0_32 = arith.constant 0 : index
    %c0_33 = arith.constant 0 : index
    %30 = vector.load %arg4[%c0_32, %c0_33] : memref<32x128xbf16, #tpu.memory_space<vmem>>, vector<32x128xbf16>
    tpu.vector_store %arg4[%c0_32, %c0_33], %29 {strides = array<i32>} : memref<32x128xbf16, #tpu.memory_space<vmem>>, vector<32x128xbf16>,
    return
  }
  func.func @transform_0(%arg0: i32) -> (i32, i32, i32) {
    %c0_i32 = arith.constant 0 : i32
    %c0_i32_0 = arith.constant 0 : i32
    %c0_i32_1 = arith.constant 0 : i32
    return %c0_i32, %arg0, %c0_i32_0 : i32, i32, i32
  }
  func.func @transform_1(%arg0: i32) -> (i32, i32) {
    %c0_i32 = arith.constant 0 : i32
    %c0_i32_0 = arith.constant 0 : i32
    %c0_i32_1 = arith.constant 0 : i32
    return %c0_i32, %c0_i32_0 : i32, i32
  }
  func.func @transform_2(%arg0: i32) -> (i32, i32) {
    %c0_i32 = arith.constant 0 : i32
    %c0_i32_0 = arith.constant 0 : i32
    %c0_i32_1 = arith.constant 0 : i32
    return %c0_i32, %c0_i32_0 : i32, i32
  }
  func.func @transform_3(%arg0: i32) -> (i32, i32) {
    %c0_i32 = arith.constant 0 : i32
    %c0_i32_0 = arith.constant 0 : i32
    return %arg0, %c0_i32 : i32, i32
  }
}

module attributes {stable_mosaic.version = 11 : i64} {
  func.func @_mlp_kernel(%arg0: i32, %arg1: memref<16x512xbf16, #tpu.memory_space<vmem>>, %arg2: memref<512x128xbf16, #tpu.memory_space<vmem>>, %arg3: memref<1x128xf32, #tpu.memory_space<vmem>>, %arg4: memref<128x128xbf16, #tpu.memory_space<vmem>>, %arg5: memref<1x128xf32, #tpu.memory_space<vmem>>, %arg6: memref<128x128xbf16, #tpu.memory_space<vmem>>, %arg7: memref<1x128xf32, #tpu.memory_space<vmem>>, %arg8: memref<16x128xf32, #tpu.memory_space<vmem>>) attributes {dimension_semantics = [#tpu.dimension_semantics<parallel>], iteration_bounds = array<i64: 1>, scalar_prefetch = 0 : i64, scratch_operands = 0 : i64, tpu.core_type = #tpu.core_type<tc>, window_params = [{transform_indices = @transform_0, window_bounds = array<i64: 16, 512>}, {pipeline_mode = #tpu.pipeline_mode<synchronous>, transform_indices = @transform_1, window_bounds = array<i64: 512, 128>}, {pipeline_mode = #tpu.pipeline_mode<synchronous>, transform_indices = @transform_2, window_bounds = array<i64: 1, 128>}, {pipeline_mode = #tpu.pipeline_mode<synchronous>, transform_indices = @transform_3, window_bounds = array<i64: 128, 128>}, {pipeline_mode = #tpu.pipeline_mode<synchronous>, transform_indices = @transform_4, window_bounds = array<i64: 1, 128>}, {pipeline_mode = #tpu.pipeline_mode<synchronous>, transform_indices = @transform_5, window_bounds = array<i64: 128, 128>}, {pipeline_mode = #tpu.pipeline_mode<synchronous>, transform_indices = @transform_6, window_bounds = array<i64: 1, 128>}, {transform_indices = @transform_7, window_bounds = array<i64: 16, 128>}]} {
    %c0 = arith.constant 0 : index
    %c0_0 = arith.constant 0 : index
    %0 = vector.load %arg1[%c0, %c0_0] : memref<16x512xbf16, #tpu.memory_space<vmem>>, vector<16x512xbf16>
    %c0_1 = arith.constant 0 : index
    %c0_2 = arith.constant 0 : index
    %1 = vector.load %arg2[%c0_1, %c0_2] : memref<512x128xbf16, #tpu.memory_space<vmem>>, vector<512x128xbf16>
    %cst = arith.constant dense<0.000000e+00> : vector<16x128xf32>
    %2 = tpu.matmul %0, %1, %cst {dimension_numbers = #tpu.dot_dimension_numbers<[1], [0], [0], [1], [0, 0, 1, 1], [], []>} : vector<16x512xbf16>, vector<512x128xbf16>, vector<16x128xf32> -> vector<16x128xf32>
    %c0_3 = arith.constant 0 : index
    %c0_4 = arith.constant 0 : index
    %3 = vector.load %arg3[%c0_3, %c0_4] : memref<1x128xf32, #tpu.memory_space<vmem>>, vector<1x128xf32>
    %4 = vector.broadcast %3 : vector<1x128xf32> to vector<16x128xf32>
    %5 = arith.addf %2, %4 : vector<16x128xf32>
    %cst_5 = arith.constant 0.000000e+00 : f32
    %6 = vector.broadcast %cst_5 : f32 to vector<16x128xf32>
    %7 = arith.maximumf %5, %6 : vector<16x128xf32>
    %8 = arith.truncf %7 : vector<16x128xf32> to vector<16x128xbf16>
    %c0_6 = arith.constant 0 : index
    %c0_7 = arith.constant 0 : index
    %9 = vector.load %arg4[%c0_6, %c0_7] : memref<128x128xbf16, #tpu.memory_space<vmem>>, vector<128x128xbf16>
    %cst_8 = arith.constant dense<0.000000e+00> : vector<16x128xf32>
    %10 = tpu.matmul %8, %9, %cst_8 {dimension_numbers = #tpu.dot_dimension_numbers<[1], [0], [0], [1], [0, 0, 1, 1], [], []>} : vector<16x128xbf16>, vector<128x128xbf16>, vector<16x128xf32> -> vector<16x128xf32>
    %c0_9 = arith.constant 0 : index
    %c0_10 = arith.constant 0 : index
    %11 = vector.load %arg5[%c0_9, %c0_10] : memref<1x128xf32, #tpu.memory_space<vmem>>, vector<1x128xf32>
    %12 = vector.broadcast %11 : vector<1x128xf32> to vector<16x128xf32>
    %13 = arith.addf %10, %12 : vector<16x128xf32>
    %cst_11 = arith.constant 0.000000e+00 : f32
    %14 = vector.broadcast %cst_11 : f32 to vector<16x128xf32>
    %15 = arith.maximumf %13, %14 : vector<16x128xf32>
    %16 = arith.truncf %15 : vector<16x128xf32> to vector<16x128xbf16>
    %c0_12 = arith.constant 0 : index
    %c0_13 = arith.constant 0 : index
    %17 = vector.load %arg6[%c0_12, %c0_13] : memref<128x128xbf16, #tpu.memory_space<vmem>>, vector<128x128xbf16>
    %cst_14 = arith.constant dense<0.000000e+00> : vector<16x128xf32>
    %18 = tpu.matmul %16, %17, %cst_14 {dimension_numbers = #tpu.dot_dimension_numbers<[1], [0], [0], [1], [0, 0, 1, 1], [], []>} : vector<16x128xbf16>, vector<128x128xbf16>, vector<16x128xf32> -> vector<16x128xf32>
    %c0_15 = arith.constant 0 : index
    %c0_16 = arith.constant 0 : index
    %19 = vector.load %arg7[%c0_15, %c0_16] : memref<1x128xf32, #tpu.memory_space<vmem>>, vector<1x128xf32>
    %20 = vector.broadcast %19 : vector<1x128xf32> to vector<16x128xf32>
    %21 = arith.addf %18, %20 : vector<16x128xf32>
    %c0_17 = arith.constant 0 : index
    %c0_18 = arith.constant 0 : index
    %22 = vector.load %arg8[%c0_17, %c0_18] : memref<16x128xf32, #tpu.memory_space<vmem>>, vector<16x128xf32>
    tpu.vector_store %arg8[%c0_17, %c0_18], %21 {strides = array<i32>} : memref<16x128xf32, #tpu.memory_space<vmem>>, vector<16x128xf32>,
    return
  }
  func.func @transform_0(%arg0: i32) -> (i32, i32) {
    %c0_i32 = arith.constant 0 : i32
    %c0_i32_0 = arith.constant 0 : i32
    return %arg0, %c0_i32 : i32, i32
  }
  func.func @transform_1(%arg0: i32) -> (i32, i32) {
    %c0_i32 = arith.constant 0 : i32
    %c0_i32_0 = arith.constant 0 : i32
    %c0_i32_1 = arith.constant 0 : i32
    return %c0_i32, %c0_i32_0 : i32, i32
  }
  func.func @transform_2(%arg0: i32) -> (i32, i32) {
    %c0_i32 = arith.constant 0 : i32
    %c0_i32_0 = arith.constant 0 : i32
    %c0_i32_1 = arith.constant 0 : i32
    return %c0_i32, %c0_i32_0 : i32, i32
  }
  func.func @transform_3(%arg0: i32) -> (i32, i32) {
    %c0_i32 = arith.constant 0 : i32
    %c0_i32_0 = arith.constant 0 : i32
    %c0_i32_1 = arith.constant 0 : i32
    return %c0_i32, %c0_i32_0 : i32, i32
  }
  func.func @transform_4(%arg0: i32) -> (i32, i32) {
    %c0_i32 = arith.constant 0 : i32
    %c0_i32_0 = arith.constant 0 : i32
    %c0_i32_1 = arith.constant 0 : i32
    return %c0_i32, %c0_i32_0 : i32, i32
  }
  func.func @transform_5(%arg0: i32) -> (i32, i32) {
    %c0_i32 = arith.constant 0 : i32
    %c0_i32_0 = arith.constant 0 : i32
    %c0_i32_1 = arith.constant 0 : i32
    return %c0_i32, %c0_i32_0 : i32, i32
  }
  func.func @transform_6(%arg0: i32) -> (i32, i32) {
    %c0_i32 = arith.constant 0 : i32
    %c0_i32_0 = arith.constant 0 : i32
    %c0_i32_1 = arith.constant 0 : i32
    return %c0_i32, %c0_i32_0 : i32, i32
  }
  func.func @transform_7(%arg0: i32) -> (i32, i32) {
    %c0_i32 = arith.constant 0 : i32
    %c0_i32_0 = arith.constant 0 : i32
    return %arg0, %c0_i32 : i32, i32
  }
}

</mosaic_0001>

<llo_original>
// kernel: net_forward.3
$region0: #{net_forward.3}
  #allocation0 [shape = 'u32[]', space=smem, size = 0x4, offset = 0x4, fixed_abs, tag = 'smem constant byte address 0x4 - core index']
  #allocation1 [shape = 'u32[72,128]{1,0:T(1,128)}', space=vmem, size = 0x9000, scoped, tag = 'internal scratch']
  #allocation2 [shape = 'f32[208,128]{1,0:T(8,128)}', space=vmem, size = 0x1a000, scoped, tag = 'scratch operand']
  %s0 = inlined_call_operand.vmem [shape: bf16[4,416,128], index: 0, kind: input, shape index: {}]
  %s1 = inlined_call_operand.vmem [shape: bf16[128,128], index: 1, kind: input, shape index: {}]
  %s2 = inlined_call_operand.vmem [shape: f32[1,128], index: 2, kind: input, shape index: {}]
  %s3 = inlined_call_operand.vmem [shape: bf16[416,128], index: 3, kind: output, shape index: {}]
  %s4 = sld [smem:[#allocation0]]
  $region86: #{net_forward.3} parent=0
    _
  %s6 = ssub.s32 1, %s4
  %s7 = scalar_select 0, %s6, %s4
  $region1: #{net_forward.3} parent=0
    #allocation3 [shape = 'u8[425984]{0}', space=vmem, size = 0x68000, scoped, tag = 'input window, operand 0']
    loop: start=0, step=1, limit=4
    $region2: #{net_forward.3} parent=1 // loop_pre_header
      _
    $region3: #{net_forward.3} parent=1 // loop_header
      %s9 = sphi 0, %s13
      %p10 = scmp.ge.s32.totalorder %s9, 4
      %s19 = sphi 0, %s21
      %s22 = sphi 0, %s19
      %s23 = sphi 0, %s22
      %s39 = sphi 0, %s23
      %s43 = sphi 0, %s43
      %s45 = sphi 0, %s43
      %s46 = sphi 0, %s45
      %s60 = sphi 0, %s46
      %s64 = sphi 0, %s64
      %s66 = sphi 0, %s64
      %s67 = sphi 0, %s66
      %s81 = sphi 0, %s67
      %s87 = sphi 0, %s89
      %s90 = sphi 0, %s87
      %s91 = sphi 0, %s90
      %s107 = sphi 0, %s91
    $region4: #{net_forward.3} parent=1 // loop_header_branch
      %12 = sbr.rel (%p10) target = $region8
    $region5: #{net_forward.3} parent=1 // loop_body
      %s14 = ssub.s32 %s9, 1
      %s15 = ssub.s32 %s9, 2
      %s16 = sadd.s32 %s9, 1
      %s17 = ssub.s32 %s9, %s16
      %p18 = scmp.eq.s32.totalorder %s17, 0
      %s20 = sadd.s32 %s19, 1
      %s21 = scalar_select %p18, %s19, %s20
      %p24 = pneg %p18
      %p25 = scmp.eq.s32.totalorder %s9, 1
      %p26 = por %p24, %p25
      %p27 = scmp.ne.s32.totalorder %s19, %s22
      %p28 = scmp.eq.s32.totalorder %s9, 0
      %p29 = por %p27, %p28
      %p30 = scmp.ne.s32.totalorder %s19, %s22
      %p31 = scmp.eq.s32.totalorder %s14, 1
      %p32 = por %p30, %p31
      %p33 = scmp.ne.s32.totalorder %s22, %s23
      %p34 = scmp.eq.s32.totalorder %s14, 0
      %p35 = por %p33, %p34
      %p36 = scmp.ne.s32.totalorder %s22, %s23
      %p37 = scmp.eq.s32.totalorder %s15, 1
      %p38 = por %p36, %p37
      %p40 = scmp.ne.s32.totalorder %s23, %s39
      %p41 = scmp.eq.s32.totalorder %s15, 0
      %p42 = por %p40, %p41
      %s44 = sadd.s32 %s43, 1
      %p47 = scmp.eq.s32.totalorder %s9, 1
      %p48 = scmp.ne.s32.totalorder %s43, %s45
      %p49 = scmp.eq.s32.totalorder %s9, 0
      %p50 = por %p48, %p49
      %p51 = scmp.ne.s32.totalorder %s43, %s45
      %p52 = scmp.eq.s32.totalorder %s14, 1
      %p53 = por %p51, %p52
      %p54 = scmp.ne.s32.totalorder %s45, %s46
      %p55 = scmp.eq.s32.totalorder %s14, 0
      %p56 = por %p54, %p55
      %p57 = scmp.ne.s32.totalorder %s45, %s46
      %p58 = scmp.eq.s32.totalorder %s15, 1
      %p59 = por %p57, %p58
      %p61 = scmp.ne.s32.totalorder %s46, %s60
      %p62 = scmp.eq.s32.totalorder %s15, 0
      %p63 = por %p61, %p62
      %s65 = sadd.s32 %s64, 1
      %p68 = scmp.eq.s32.totalorder %s9, 1
      %p69 = scmp.ne.s32.totalorder %s64, %s66
      %p70 = scmp.eq.s32.totalorder %s9, 0
      %p71 = por %p69, %p70
      %p72 = scmp.ne.s32.totalorder %s64, %s66
      %p73 = scmp.eq.s32.totalorder %s14, 1
      %p74 = por %p72, %p73
      %p75 = scmp.ne.s32.totalorder %s66, %s67
      %p76 = scmp.eq.s32.totalorder %s14, 0
      %p77 = por %p75, %p76
      %p78 = scmp.ne.s32.totalorder %s66, %s67
      %p79 = scmp.eq.s32.totalorder %s15, 1
      %p80 = por %p78, %p79
      %p82 = scmp.ne.s32.totalorder %s67, %s81
      %p83 = scmp.eq.s32.totalorder %s15, 0
      %p84 = por %p82, %p83
      %s85 = ssub.s32 %s9, %s16
      %p86 = scmp.eq.s32.totalorder %s85, 0
      %s88 = sadd.s32 %s87, 1
      %s89 = scalar_select %p86, %s87, %s88
      %p92 = pneg %p86
      %p93 = scmp.eq.s32.totalorder %s9, 1
      %p94 = por %p92, %p93
      %p95 = scmp.ne.s32.totalorder %s87, %s90
      %p96 = scmp.eq.s32.totalorder %s9, 0
      %p97 = por %p95, %p96
      %p98 = scmp.ne.s32.totalorder %s87, %s90
      %p99 = scmp.eq.s32.totalorder %s14, 1
      %p100 = por %p98, %p99
      %p101 = scmp.ne.s32.totalorder %s90, %s91
      %p102 = scmp.eq.s32.totalorder %s14, 0
      %p103 = por %p101, %p102
      %p104 = scmp.ne.s32.totalorder %s90, %s91
      %p105 = scmp.eq.s32.totalorder %s15, 1
      %p106 = por %p104, %p105
      %p108 = scmp.ne.s32.totalorder %s91, %s107
      %p109 = scmp.eq.s32.totalorder %s15, 0
      %p110 = por %p108, %p109
      %p111 = scmp.le.s32.totalorder 1, %s9
      %p112 = scmp.lt.s32.totalorder %s9, 3
      %p113 = pnand %p111, %p112
      %p114 = pneg %p113
      // Predicated region
      $region9: #{net_forward.3} parent=5 // pred_check
        _
      $region10: #{net_forward.3} parent=5 // pred_check_branch
        %116 = sbr.rel (%p113) target = $region12
      $region11: #{net_forward.3} parent=5 // pred_region
        %s117 = ssub.s32 %s9, 1
        // Predicated region
        $region13: #{net_forward.3} parent=11 // pred_check
          %p118 = pneg %p56
        $region14: #{net_forward.3} parent=11 // pred_check_branch
          %120 = sbr.rel (%p118) target = $region16
        $region15: #{net_forward.3} parent=11 // pred_region
          _
        $region16: #{net_forward.3} parent=11 // pred_fallthru
          _
        // Predicated region
        $region17: #{net_forward.3} parent=11 // pred_check
          %p121 = pneg %p77
        $region18: #{net_forward.3} parent=11 // pred_check_branch
          %123 = sbr.rel (%p121) target = $region20
        $region19: #{net_forward.3} parent=11 // pred_region
          _
        $region20: #{net_forward.3} parent=11 // pred_fallthru
          _
      $region12: #{net_forward.3} parent=5 // pred_fallthru
        _
      %p124 = scmp.lt.s32.totalorder %s9, 2
      // Predicated region
      $region21: #{net_forward.3} parent=5 // pred_check
        %p125 = pneg %p124
      $region22: #{net_forward.3} parent=5 // pred_check_branch
        %127 = sbr.rel (%p125) target = $region24
      $region23: #{net_forward.3} parent=5 // pred_region
        // Predicated region
        $region25: #{net_forward.3} parent=23 // pred_check
          %p128 = pneg %p29
        $region26: #{net_forward.3} parent=23 // pred_check_branch
          %130 = sbr.rel (%p128) target = $region28
        $region27: #{net_forward.3} parent=23 // pred_region
          %s131 = sand.u32 %s19, 1
          %s132 = sand.u32 %s19, 1
          %s133 = smul.addr %s132, 416
          %s134 = scalar_lea.vmem [#allocation3], %s133
          %s135 = smul.u32 26, %s9
          %s136 = smul.addr %s135, 4
          %s137 = scalar_lea.vmem %s0, %s136
          // Predicated region
          $region29: #{net_forward.3} parent=27 // pred_check
            _
          $region30: #{net_forward.3} parent=27 // pred_check_branch
            %139 = sbr.rel (0) target = $region32
          $region31: #{net_forward.3} parent=27 // pred_region
            // Predicated region
            $region33: #{net_forward.3} parent=31 // pred_check
              _
            $region34: #{net_forward.3} parent=31 // pred_check_branch
              %141 = sbr.rel target = $region36
            $region35: #{net_forward.3} parent=31 // pred_region
              // Predicated region
              $region48: #{net_forward.3} parent=35 // pred_check
                _
              $region49: #{net_forward.3} parent=35 // pred_check_branch
                %363 = sbr.rel (0) target = $region51
              $region50: #{net_forward.3} parent=35 // pred_region
                loop: start=0, step=1, limit=1
                $region52: #{net_forward.3} parent=50 // loop_pre_header
                  _
                $region53: #{net_forward.3} parent=50 // loop_header
                  %s365 = sphi 0, %s369
                  %p366 = scmp.ge.s32.totalorder %s365, 1
                  %s370 = sphi %s137, %s137
                  %s371 = sphi %s134, %s134
                $region54: #{net_forward.3} parent=50 // loop_header_branch
                  %368 = sbr.rel (%p366) target = $region58
                $region55: #{net_forward.3} parent=50 // loop_body
                  _
                $region56: #{net_forward.3} parent=50 // loop_footer
                  %s369 = sadd.s32 1, %s365
                $region57: #{net_forward.3} parent=50 // loop_footer_branch
                  %364 = sbr.rel target = $region53
                $region58: #{net_forward.3} parent=50 // loop_exit
                  _
                %s373 = ssub.s32 16, 1
                loop: start=0, step=1, limit=1
                $region59: #{net_forward.3} parent=50 // loop_pre_header
                  _
                $region60: #{net_forward.3} parent=50 // loop_header
                  %s375 = sphi 0, %s379
                  %p376 = scmp.ge.s32.totalorder %s375, 1
                  %s380 = sphi %s137, %s137
                  %s381 = sphi %s134, %s134
                $region61: #{net_forward.3} parent=50 // loop_header_branch
                  %378 = sbr.rel (%p376) target = $region65
                $region62: #{net_forward.3} parent=50 // loop_body
                  %v382 = vld [vmem:[%s380] sm:%s373]
                  %383 = vst [vmem:[%s381] sm:%s373] %v382
                  %v384 = vld [vmem:[%s380 + $0x4] sm:%s373]
                  %385 = vst [vmem:[%s381 + $0x4] sm:%s373] %v384
                  %v386 = vld [vmem:[%s380 + $0x8] sm:%s373]
                  %387 = vst [vmem:[%s381 + $0x8] sm:%s373] %v386
                  %v388 = vld [vmem:[%s380 + $0xc] sm:%s373]
                  %389 = vst [vmem:[%s381 + $0xc] sm:%s373] %v388
                  %v390 = vld [vmem:[%s380 + $0x10] sm:%s373]
                  %391 = vst [vmem:[%s381 + $0x10] sm:%s373] %v390
                  %v392 = vld [vmem:[%s380 + $0x14] sm:%s373]
                  %393 = vst [vmem:[%s381 + $0x14] sm:%s373] %v392
                  %v394 = vld [vmem:[%s380 + $0x18] sm:%s373]
                  %395 = vst [vmem:[%s381 + $0x18] sm:%s373] %v394
                  %v396 = vld [vmem:[%s380 + $0x1c] sm:%s373]
                  %397 = vst [vmem:[%s381 + $0x1c] sm:%s373] %v396
                  %v398 = vld [vmem:[%s380 + $0x20] sm:%s373]
                  %399 = vst [vmem:[%s381 + $0x20] sm:%s373] %v398
                  %v400 = vld [vmem:[%s380 + $0x24] sm:%s373]
                  %401 = vst [vmem:[%s381 + $0x24] sm:%s373] %v400
                  %v402 = vld [vmem:[%s380 + $0x28] sm:%s373]
                  %403 = vst [vmem:[%s381 + $0x28] sm:%s373] %v402
                  %v404 = vld [vmem:[%s380 + $0x2c] sm:%s373]
                  %405 = vst [vmem:[%s381 + $0x2c] sm:%s373] %v404
                  %v406 = vld [vmem:[%s380 + $0x30] sm:%s373]
                  %407 = vst [vmem:[%s381 + $0x30] sm:%s373] %v406
                  %v408 = vld [vmem:[%s380 + $0x34] sm:%s373]
                  %409 = vst [vmem:[%s381 + $0x34] sm:%s373] %v408
                  %v410 = vld [vmem:[%s380 + $0x38] sm:%s373]
                  %411 = vst [vmem:[%s381 + $0x38] sm:%s373] %v410
                  %v412 = vld [vmem:[%s380 + $0x3c] sm:%s373]
                  %413 = vst [vmem:[%s381 + $0x3c] sm:%s373] %v412
                  %v414 = vld [vmem:[%s380 + $0x40] sm:%s373]
                  %415 = vst [vmem:[%s381 + $0x40] sm:%s373] %v414
                  %v416 = vld [vmem:[%s380 + $0x44] sm:%s373]
                  %417 = vst [vmem:[%s381 + $0x44] sm:%s373] %v416
                  %v418 = vld [vmem:[%s380 + $0x48] sm:%s373]
                  %419 = vst [vmem:[%s381 + $0x48] sm:%s373] %v418
                  %v420 = vld [vmem:[%s380 + $0x4c] sm:%s373]
                  %421 = vst [vmem:[%s381 + $0x4c] sm:%s373] %v420
                  %v422 = vld [vmem:[%s380 + $0x50] sm:%s373]
                  %423 = vst [vmem:[%s381 + $0x50] sm:%s373] %v422
                  %v424 = vld [vmem:[%s380 + $0x54] sm:%s373]
                  %425 = vst [vmem:[%s381 + $0x54] sm:%s373] %v424
                  %v426 = vld [vmem:[%s380 + $0x58] sm:%s373]
                  %427 = vst [vmem:[%s381 + $0x58] sm:%s373] %v426
                  %v428 = vld [vmem:[%s380 + $0x5c] sm:%s373]
                  %429 = vst [vmem:[%s381 + $0x5c] sm:%s373] %v428
                  %v430 = vld [vmem:[%s380 + $0x60] sm:%s373]
                  %431 = vst [vmem:[%s381 + $0x60] sm:%s373] %v430
                  %v432 = vld [vmem:[%s380 + $0x64] sm:%s373]
                  %433 = vst [vmem:[%s381 + $0x64] sm:%s373] %v432
                  %v434 = vld [vmem:[%s380 + $0xd0] sm:%s373]
                  %435 = vst [vmem:[%s381 + $0x68] sm:%s373] %v434
                  %v436 = vld [vmem:[%s380 + $0xd4] sm:%s373]
                  %437 = vst [vmem:[%s381 + $0x6c] sm:%s373] %v436
                  %v438 = vld [vmem:[%s380 + $0xd8] sm:%s373]
                  %439 = vst [vmem:[%s381 + $0x70] sm:%s373] %v438
                  %v440 = vld [vmem:[%s380 + $0xdc] sm:%s373]
                  %441 = vst [vmem:[%s381 + $0x74] sm:%s373] %v440
                  %v442 = vld [vmem:[%s380 + $0xe0] sm:%s373]
                  %443 = vst [vmem:[%s381 + $0x78] sm:%s373] %v442
                  %v444 = vld [vmem:[%s380 + $0xe4] sm:%s373]
                  %445 = vst [vmem:[%s381 + $0x7c] sm:%s373] %v444
                  %v446 = vld [vmem:[%s380 + $0xe8] sm:%s373]
                  %447 = vst [vmem:[%s381 + $0x80] sm:%s373] %v446
                  %v448 = vld [vmem:[%s380 + $0xec] sm:%s373]
                  %449 = vst [vmem:[%s381 + $0x84] sm:%s373] %v448
                  %v450 = vld [vmem:[%s380 + $0xf0] sm:%s373]
                  %451 = vst [vmem:[%s381 + $0x88] sm:%s373] %v450
                  %v452 = vld [vmem:[%s380 + $0xf4] sm:%s373]
                  %453 = vst [vmem:[%s381 + $0x8c] sm:%s373] %v452
                  %v454 = vld [vmem:[%s380 + $0xf8] sm:%s373]
                  %455 = vst [vmem:[%s381 + $0x90] sm:%s373] %v454
                  %v456 = vld [vmem:[%s380 + $0xfc] sm:%s373]
                  %457 = vst [vmem:[%s381 + $0x94] sm:%s373] %v456
                  %v458 = vld [vmem:[%s380 + $0x100] sm:%s373]
                  %459 = vst [vmem:[%s381 + $0x98] sm:%s373] %v458
                  %v460 = vld [vmem:[%s380 + $0x104] sm:%s373]
                  %461 = vst [vmem:[%s381 + $0x9c] sm:%s373] %v460
                  %v462 = vld [vmem:[%s380 + $0x108] sm:%s373]
                  %463 = vst [vmem:[%s381 + $0xa0] sm:%s373] %v462
                  %v464 = vld [vmem:[%s380 + $0x10c] sm:%s373]
                  %465 = vst [vmem:[%s381 + $0xa4] sm:%s373] %v464
                  %v466 = vld [vmem:[%s380 + $0x110] sm:%s373]
                  %467 = vst [vmem:[%s381 + $0xa8] sm:%s373] %v466
                  %v468 = vld [vmem:[%s380 + $0x114] sm:%s373]
                  %469 = vst [vmem:[%s381 + $0xac] sm:%s373] %v468
                  %v470 = vld [vmem:[%s380 + $0x118] sm:%s373]
                  %471 = vst [vmem:[%s381 + $0xb0] sm:%s373] %v470
                  %v472 = vld [vmem:[%s380 + $0x11c] sm:%s373]
                  %473 = vst [vmem:[%s381 + $0xb4] sm:%s373] %v472
                  %v474 = vld [vmem:[%s380 + $0x120] sm:%s373]
                  %475 = vst [vmem:[%s381 + $0xb8] sm:%s373] %v474
                  %v476 = vld [vmem:[%s380 + $0x124] sm:%s373]
                  %477 = vst [vmem:[%s381 + $0xbc] sm:%s373] %v476
                  %v478 = vld [vmem:[%s380 + $0x128] sm:%s373]
                  %479 = vst [vmem:[%s381 + $0xc0] sm:%s373] %v478
                  %v480 = vld [vmem:[%s380 + $0x12c] sm:%s373]
                  %481 = vst [vmem:[%s381 + $0xc4] sm:%s373] %v480
                  %v482 = vld [vmem:[%s380 + $0x130] sm:%s373]
                  %483 = vst [vmem:[%s381 + $0xc8] sm:%s373] %v482
                  %v484 = vld [vmem:[%s380 + $0x134] sm:%s373]
                  %485 = vst [vmem:[%s381 + $0xcc] sm:%s373] %v484
                  %v486 = vld [vmem:[%s380 + $0x1a0] sm:%s373]
                  %487 = vst [vmem:[%s381 + $0xd0] sm:%s373] %v486
                  %v488 = vld [vmem:[%s380 + $0x1a4] sm:%s373]
                  %489 = vst [vmem:[%s381 + $0xd4] sm:%s373] %v488
                  %v490 = vld [vmem:[%s380 + $0x1a8] sm:%s373]
                  %491 = vst [vmem:[%s381 + $0xd8] sm:%s373] %v490
                  %v492 = vld [vmem:[%s380 + $0x1ac] sm:%s373]
                  %493 = vst [vmem:[%s381 + $0xdc] sm:%s373] %v492
                  %v494 = vld [vmem:[%s380 + $0x1b0] sm:%s373]
                  %495 = vst [vmem:[%s381 + $0xe0] sm:%s373] %v494
                  %v496 = vld [vmem:[%s380 + $0x1b4] sm:%s373]
                  %497 = vst [vmem:[%s381 + $0xe4] sm:%s373] %v496
                  %v498 = vld [vmem:[%s380 + $0x1b8] sm:%s373]
                  %499 = vst [vmem:[%s381 + $0xe8] sm:%s373] %v498
                  %v500 = vld [vmem:[%s380 + $0x1bc] sm:%s373]
                  %501 = vst [vmem:[%s381 + $0xec] sm:%s373] %v500
                  %v502 = vld [vmem:[%s380 + $0x1c0] sm:%s373]
                  %503 = vst [vmem:[%s381 + $0xf0] sm:%s373] %v502
                  %v504 = vld [vmem:[%s380 + $0x1c4] sm:%s373]
                  %505 = vst [vmem:[%s381 + $0xf4] sm:%s373] %v504
                  %v506 = vld [vmem:[%s380 + $0x1c8] sm:%s373]
                  %507 = vst [vmem:[%s381 + $0xf8] sm:%s373] %v506
                  %v508 = vld [vmem:[%s380 + $0x1cc] sm:%s373]
                  %509 = vst [vmem:[%s381 + $0xfc] sm:%s373] %v508
                  %v510 = vld [vmem:[%s380 + $0x1d0] sm:%s373]
                  %511 = vst [vmem:[%s381 + $0x100] sm:%s373] %v510
                  %v512 = vld [vmem:[%s380 + $0x1d4] sm:%s373]
                  %513 = vst [vmem:[%s381 + $0x104] sm:%s373] %v512
                  %v514 = vld [vmem:[%s380 + $0x1d8] sm:%s373]
                  %515 = vst [vmem:[%s381 + $0x108] sm:%s373] %v514
                  %v516 = vld [vmem:[%s380 + $0x1dc] sm:%s373]
                  %517 = vst [vmem:[%s381 + $0x10c] sm:%s373] %v516
                  %v518 = vld [vmem:[%s380 + $0x1e0] sm:%s373]
                  %519 = vst [vmem:[%s381 + $0x110] sm:%s373] %v518
                  %v520 = vld [vmem:[%s380 + $0x1e4] sm:%s373]
                  %521 = vst [vmem:[%s381 + $0x114] sm:%s373] %v520
                  %v522 = vld [vmem:[%s380 + $0x1e8] sm:%s373]
                  %523 = vst [vmem:[%s381 + $0x118] sm:%s373] %v522
                  %v524 = vld [vmem:[%s380 + $0x1ec] sm:%s373]
                  %525 = vst [vmem:[%s381 + $0x11c] sm:%s373] %v524
                  %v526 = vld [vmem:[%s380 + $0x1f0] sm:%s373]
                  %527 = vst [vmem:[%s381 + $0x120] sm:%s373] %v526
                  %v528 = vld [vmem:[%s380 + $0x1f4] sm:%s373]
                  %529 = vst [vmem:[%s381 + $0x124] sm:%s373] %v528
                  %v530 = vld [vmem:[%s380 + $0x1f8] sm:%s373]
                  %531 = vst [vmem:[%s381 + $0x128] sm:%s373] %v530
                  %v532 = vld [vmem:[%s380 + $0x1fc] sm:%s373]
                  %533 = vst [vmem:[%s381 + $0x12c] sm:%s373] %v532
                  %v534 = vld [vmem:[%s380 + $0x200] sm:%s373]
                  %535 = vst [vmem:[%s381 + $0x130] sm:%s373] %v534
                  %v536 = vld [vmem:[%s380 + $0x204] sm:%s373]
                  %537 = vst [vmem:[%s381 + $0x134] sm:%s373] %v536
                  %v538 = vld [vmem:[%s380 + $0x270] sm:%s373]
                  %539 = vst [vmem:[%s381 + $0x138] sm:%s373] %v538
                  %v540 = vld [vmem:[%s380 + $0x274] sm:%s373]
                  %541 = vst [vmem:[%s381 + $0x13c] sm:%s373] %v540
                  %v542 = vld [vmem:[%s380 + $0x278] sm:%s373]
                  %543 = vst [vmem:[%s381 + $0x140] sm:%s373] %v542
                  %v544 = vld [vmem:[%s380 + $0x27c] sm:%s373]
                  %545 = vst [vmem:[%s381 + $0x144] sm:%s373] %v544
                  %v546 = vld [vmem:[%s380 + $0x280] sm:%s373]
                  %547 = vst [vmem:[%s381 + $0x148] sm:%s373] %v546
                  %v548 = vld [vmem:[%s380 + $0x284] sm:%s373]
                  %549 = vst [vmem:[%s381 + $0x14c] sm:%s373] %v548
                  %v550 = vld [vmem:[%s380 + $0x288] sm:%s373]
                  %551 = vst [vmem:[%s381 + $0x150] sm:%s373] %v550
                  %v552 = vld [vmem:[%s380 + $0x28c] sm:%s373]
                  %553 = vst [vmem:[%s381 + $0x154] sm:%s373] %v552
                  %v554 = vld [vmem:[%s380 + $0x290] sm:%s373]
                  %555 = vst [vmem:[%s381 + $0x158] sm:%s373] %v554
                  %v556 = vld [vmem:[%s380 + $0x294] sm:%s373]
                  %557 = vst [vmem:[%s381 + $0x15c] sm:%s373] %v556
                  %v558 = vld [vmem:[%s380 + $0x298] sm:%s373]
                  %559 = vst [vmem:[%s381 + $0x160] sm:%s373] %v558
                  %v560 = vld [vmem:[%s380 + $0x29c] sm:%s373]
                  %561 = vst [vmem:[%s381 + $0x164] sm:%s373] %v560
                  %v562 = vld [vmem:[%s380 + $0x2a0] sm:%s373]
                  %563 = vst [vmem:[%s381 + $0x168] sm:%s373] %v562
                  %v564 = vld [vmem:[%s380 + $0x2a4] sm:%s373]
                  %565 = vst [vmem:[%s381 + $0x16c] sm:%s373] %v564
                  %v566 = vld [vmem:[%s380 + $0x2a8] sm:%s373]
                  %567 = vst [vmem:[%s381 + $0x170] sm:%s373] %v566
                  %v568 = vld [vmem:[%s380 + $0x2ac] sm:%s373]
                  %569 = vst [vmem:[%s381 + $0x174] sm:%s373] %v568
                  %v570 = vld [vmem:[%s380 + $0x2b0] sm:%s373]
                  %571 = vst [vmem:[%s381 + $0x178] sm:%s373] %v570
                  %v572 = vld [vmem:[%s380 + $0x2b4] sm:%s373]
                  %573 = vst [vmem:[%s381 + $0x17c] sm:%s373] %v572
                  %v574 = vld [vmem:[%s380 + $0x2b8] sm:%s373]
                  %575 = vst [vmem:[%s381 + $0x180] sm:%s373] %v574
                  %v576 = vld [vmem:[%s380 + $0x2bc] sm:%s373]
                  %577 = vst [vmem:[%s381 + $0x184] sm:%s373] %v576
                  %v578 = vld [vmem:[%s380 + $0x2c0] sm:%s373]
                  %579 = vst [vmem:[%s381 + $0x188] sm:%s373] %v578
                  %v580 = vld [vmem:[%s380 + $0x2c4] sm:%s373]
                  %581 = vst [vmem:[%s381 + $0x18c] sm:%s373] %v580
                  %v582 = vld [vmem:[%s380 + $0x2c8] sm:%s373]
                  %583 = vst [vmem:[%s381 + $0x190] sm:%s373] %v582
                  %v584 = vld [vmem:[%s380 + $0x2cc] sm:%s373]
                  %585 = vst [vmem:[%s381 + $0x194] sm:%s373] %v584
                  %v586 = vld [vmem:[%s380 + $0x2d0] sm:%s373]
                  %587 = vst [vmem:[%s381 + $0x198] sm:%s373] %v586
                  %v588 = vld [vmem:[%s380 + $0x2d4] sm:%s373]
                  %589 = vst [vmem:[%s381 + $0x19c] sm:%s373] %v588
                $region63: #{net_forward.3} parent=50 // loop_footer
                  %s379 = sadd.s32 1, %s375
                $region64: #{net_forward.3} parent=50 // loop_footer_branch
                  %374 = sbr.rel target = $region60
                $region65: #{net_forward.3} parent=50 // loop_exit
                  _
              $region51: #{net_forward.3} parent=35 // pred_fallthru
                _
            $region36: #{net_forward.3} parent=31 // pred_fallthru
              _
            // Predicated region
            $region37: #{net_forward.3} parent=31 // pred_check
              _
            $region38: #{net_forward.3} parent=31 // pred_check_branch
              %143 = sbr.rel (0) target = $region40
            $region39: #{net_forward.3} parent=31 // pred_region
              %s145 = ssub.s32 16, 1
              loop: start=0, step=1, limit=1
              $region41: #{net_forward.3} parent=39 // loop_pre_header
                _
              $region42: #{net_forward.3} parent=39 // loop_header
                %s147 = sphi 0, %s151
                %p148 = scmp.ge.s32.totalorder %s147, 1
                %s152 = sphi %s137, %s137
                %s153 = sphi %s134, %s134
              $region43: #{net_forward.3} parent=39 // loop_header_branch
                %150 = sbr.rel (%p148) target = $region47
              $region44: #{net_forward.3} parent=39 // loop_body
                %v154 = vld [vmem:[%s152] sm:%s145]
                %155 = vst [vmem:[%s153] sm:%s145] %v154
                %v156 = vld [vmem:[%s152 + $0x4] sm:%s145]
                %157 = vst [vmem:[%s153 + $0x4] sm:%s145] %v156
                %v158 = vld [vmem:[%s152 + $0x8] sm:%s145]
                %159 = vst [vmem:[%s153 + $0x8] sm:%s145] %v158
                %v160 = vld [vmem:[%s152 + $0xc] sm:%s145]
                %161 = vst [vmem:[%s153 + $0xc] sm:%s145] %v160
                %v162 = vld [vmem:[%s152 + $0x10] sm:%s145]
                %163 = vst [vmem:[%s153 + $0x10] sm:%s145] %v162
                %v164 = vld [vmem:[%s152 + $0x14] sm:%s145]
                %165 = vst [vmem:[%s153 + $0x14] sm:%s145] %v164
                %v166 = vld [vmem:[%s152 + $0x18] sm:%s145]
                %167 = vst [vmem:[%s153 + $0x18] sm:%s145] %v166
                %v168 = vld [vmem:[%s152 + $0x1c] sm:%s145]
                %169 = vst [vmem:[%s153 + $0x1c] sm:%s145] %v168
                %v170 = vld [vmem:[%s152 + $0x20] sm:%s145]
                %171 = vst [vmem:[%s153 + $0x20] sm:%s145] %v170
                %v172 = vld [vmem:[%s152 + $0x24] sm:%s145]
                %173 = vst [vmem:[%s153 + $0x24] sm:%s145] %v172
                %v174 = vld [vmem:[%s152 + $0x28] sm:%s145]
                %175 = vst [vmem:[%s153 + $0x28] sm:%s145] %v174
                %v176 = vld [vmem:[%s152 + $0x2c] sm:%s145]
                %177 = vst [vmem:[%s153 + $0x2c] sm:%s145] %v176
                %v178 = vld [vmem:[%s152 + $0x30] sm:%s145]
                %179 = vst [vmem:[%s153 + $0x30] sm:%s145] %v178
                %v180 = vld [vmem:[%s152 + $0x34] sm:%s145]
                %181 = vst [vmem:[%s153 + $0x34] sm:%s145] %v180
                %v182 = vld [vmem:[%s152 + $0x38] sm:%s145]
                %183 = vst [vmem:[%s153 + $0x38] sm:%s145] %v182
                %v184 = vld [vmem:[%s152 + $0x3c] sm:%s145]
                %185 = vst [vmem:[%s153 + $0x3c] sm:%s145] %v184
                %v186 = vld [vmem:[%s152 + $0x40] sm:%s145]
                %187 = vst [vmem:[%s153 + $0x40] sm:%s145] %v186
                %v188 = vld [vmem:[%s152 + $0x44] sm:%s145]
                %189 = vst [vmem:[%s153 + $0x44] sm:%s145] %v188
                %v190 = vld [vmem:[%s152 + $0x48] sm:%s145]
                %191 = vst [vmem:[%s153 + $0x48] sm:%s145] %v190
                %v192 = vld [vmem:[%s152 + $0x4c] sm:%s145]
                %193 = vst [vmem:[%s153 + $0x4c] sm:%s145] %v192
                %v194 = vld [vmem:[%s152 + $0x50] sm:%s145]
                %195 = vst [vmem:[%s153 + $0x50] sm:%s145] %v194
                %v196 = vld [vmem:[%s152 + $0x54] sm:%s145]
                %197 = vst [vmem:[%s153 + $0x54] sm:%s145] %v196
                %v198 = vld [vmem:[%s152 + $0x58] sm:%s145]
                %199 = vst [vmem:[%s153 + $0x58] sm:%s145] %v198
                %v200 = vld [vmem:[%s152 + $0x5c] sm:%s145]
                %201 = vst [vmem:[%s153 + $0x5c] sm:%s145] %v200
                %v202 = vld [vmem:[%s152 + $0x60] sm:%s145]
                %203 = vst [vmem:[%s153 + $0x60] sm:%s145] %v202
                %v204 = vld [vmem:[%s152 + $0x64] sm:%s145]
                %205 = vst [vmem:[%s153 + $0x64] sm:%s145] %v204
                %v206 = vld [vmem:[%s152 + $0xd0] sm:%s145]
                %207 = vst [vmem:[%s153 + $0x68] sm:%s145] %v206
                %v208 = vld [vmem:[%s152 + $0xd4] sm:%s145]
                %209 = vst [vmem:[%s153 + $0x6c] sm:%s145] %v208
                %v210 = vld [vmem:[%s152 + $0xd8] sm:%s145]
                %211 = vst [vmem:[%s153 + $0x70] sm:%s145] %v210
                %v212 = vld [vmem:[%s152 + $0xdc] sm:%s145]
                %213 = vst [vmem:[%s153 + $0x74] sm:%s145] %v212
                %v214 = vld [vmem:[%s152 + $0xe0] sm:%s145]
                %215 = vst [vmem:[%s153 + $0x78] sm:%s145] %v214
                %v216 = vld [vmem:[%s152 + $0xe4] sm:%s145]
                %217 = vst [vmem:[%s153 + $0x7c] sm:%s145] %v216
                %v218 = vld [vmem:[%s152 + $0xe8] sm:%s145]
                %219 = vst [vmem:[%s153 + $0x80] sm:%s145] %v218
                %v220 = vld [vmem:[%s152 + $0xec] sm:%s145]
                %221 = vst [vmem:[%s153 + $0x84] sm:%s145] %v220
                %v222 = vld [vmem:[%s152 + $0xf0] sm:%s145]
                %223 = vst [vmem:[%s153 + $0x88] sm:%s145] %v222
                %v224 = vld [vmem:[%s152 + $0xf4] sm:%s145]
                %225 = vst [vmem:[%s153 + $0x8c] sm:%s145] %v224
                %v226 = vld [vmem:[%s152 + $0xf8] sm:%s145]
                %227 = vst [vmem:[%s153 + $0x90] sm:%s145] %v226
                %v228 = vld [vmem:[%s152 + $0xfc] sm:%s145]
                %229 = vst [vmem:[%s153 + $0x94] sm:%s145] %v228
                %v230 = vld [vmem:[%s152 + $0x100] sm:%s145]
                %231 = vst [vmem:[%s153 + $0x98] sm:%s145] %v230
                %v232 = vld [vmem:[%s152 + $0x104] sm:%s145]
                %233 = vst [vmem:[%s153 + $0x9c] sm:%s145] %v232
                %v234 = vld [vmem:[%s152 + $0x108] sm:%s145]
                %235 = vst [vmem:[%s153 + $0xa0] sm:%s145] %v234
                %v236 = vld [vmem:[%s152 + $0x10c] sm:%s145]
                %237 = vst [vmem:[%s153 + $0xa4] sm:%s145] %v236
                %v238 = vld [vmem:[%s152 + $0x110] sm:%s145]
                %239 = vst [vmem:[%s153 + $0xa8] sm:%s145] %v238
                %v240 = vld [vmem:[%s152 + $0x114] sm:%s145]
                %241 = vst [vmem:[%s153 + $0xac] sm:%s145] %v240
                %v242 = vld [vmem:[%s152 + $0x118] sm:%s145]
                %243 = vst [vmem:[%s153 + $0xb0] sm:%s145] %v242
                %v244 = vld [vmem:[%s152 + $0x11c] sm:%s145]
                %245 = vst [vmem:[%s153 + $0xb4] sm:%s145] %v244
                %v246 = vld [vmem:[%s152 + $0x120] sm:%s145]
                %247 = vst [vmem:[%s153 + $0xb8] sm:%s145] %v246
                %v248 = vld [vmem:[%s152 + $0x124] sm:%s145]
                %249 = vst [vmem:[%s153 + $0xbc] sm:%s145] %v248
                %v250 = vld [vmem:[%s152 + $0x128] sm:%s145]
                %251 = vst [vmem:[%s153 + $0xc0] sm:%s145] %v250
                %v252 = vld [vmem:[%s152 + $0x12c] sm:%s145]
                %253 = vst [vmem:[%s153 + $0xc4] sm:%s145] %v252
                %v254 = vld [vmem:[%s152 + $0x130] sm:%s145]
                %255 = vst [vmem:[%s153 + $0xc8] sm:%s145] %v254
                %v256 = vld [vmem:[%s152 + $0x134] sm:%s145]
                %257 = vst [vmem:[%s153 + $0xcc] sm:%s145] %v256
                %v258 = vld [vmem:[%s152 + $0x1a0] sm:%s145]
                %259 = vst [vmem:[%s153 + $0xd0] sm:%s145] %v258
                %v260 = vld [vmem:[%s152 + $0x1a4] sm:%s145]
                %261 = vst [vmem:[%s153 + $0xd4] sm:%s145] %v260
                %v262 = vld [vmem:[%s152 + $0x1a8] sm:%s145]
                %263 = vst [vmem:[%s153 + $0xd8] sm:%s145] %v262
                %v264 = vld [vmem:[%s152 + $0x1ac] sm:%s145]
                %265 = vst [vmem:[%s153 + $0xdc] sm:%s145] %v264
                %v266 = vld [vmem:[%s152 + $0x1b0] sm:%s145]
                %267 = vst [vmem:[%s153 + $0xe0] sm:%s145] %v266
                %v268 = vld [vmem:[%s152 + $0x1b4] sm:%s145]
                %269 = vst [vmem:[%s153 + $0xe4] sm:%s145] %v268
                %v270 = vld [vmem:[%s152 + $0x1b8] sm:%s145]
                %271 = vst [vmem:[%s153 + $0xe8] sm:%s145] %v270
                %v272 = vld [vmem:[%s152 + $0x1bc] sm:%s145]
                %273 = vst [vmem:[%s153 + $0xec] sm:%s145] %v272
                %v274 = vld [vmem:[%s152 + $0x1c0] sm:%s145]
                %275 = vst [vmem:[%s153 + $0xf0] sm:%s145] %v274
                %v276 = vld [vmem:[%s152 + $0x1c4] sm:%s145]
                %277 = vst [vmem:[%s153 + $0xf4] sm:%s145] %v276
                %v278 = vld [vmem:[%s152 + $0x1c8] sm:%s145]
                %279 = vst [vmem:[%s153 + $0xf8] sm:%s145] %v278
                %v280 = vld [vmem:[%s152 + $0x1cc] sm:%s145]
                %281 = vst [vmem:[%s153 + $0xfc] sm:%s145] %v280
                %v282 = vld [vmem:[%s152 + $0x1d0] sm:%s145]
                %283 = vst [vmem:[%s153 + $0x100] sm:%s145] %v282
                %v284 = vld [vmem:[%s152 + $0x1d4] sm:%s145]
                %285 = vst [vmem:[%s153 + $0x104] sm:%s145] %v284
                %v286 = vld [vmem:[%s152 + $0x1d8] sm:%s145]
                %287 = vst [vmem:[%s153 + $0x108] sm:%s145] %v286
                %v288 = vld [vmem:[%s152 + $0x1dc] sm:%s145]
                %289 = vst [vmem:[%s153 + $0x10c] sm:%s145] %v288
                %v290 = vld [vmem:[%s152 + $0x1e0] sm:%s145]
                %291 = vst [vmem:[%s153 + $0x110] sm:%s145] %v290
                %v292 = vld [vmem:[%s152 + $0x1e4] sm:%s145]
                %293 = vst [vmem:[%s153 + $0x114] sm:%s145] %v292
                %v294 = vld [vmem:[%s152 + $0x1e8] sm:%s145]
                %295 = vst [vmem:[%s153 + $0x118] sm:%s145] %v294
                %v296 = vld [vmem:[%s152 + $0x1ec] sm:%s145]
                %297 = vst [vmem:[%s153 + $0x11c] sm:%s145] %v296
                %v298 = vld [vmem:[%s152 + $0x1f0] sm:%s145]
                %299 = vst [vmem:[%s153 + $0x120] sm:%s145] %v298
                %v300 = vld [vmem:[%s152 + $0x1f4] sm:%s145]
                %301 = vst [vmem:[%s153 + $0x124] sm:%s145] %v300
                %v302 = vld [vmem:[%s152 + $0x1f8] sm:%s145]
                %303 = vst [vmem:[%s153 + $0x128] sm:%s145] %v302
                %v304 = vld [vmem:[%s152 + $0x1fc] sm:%s145]
                %305 = vst [vmem:[%s153 + $0x12c] sm:%s145] %v304
                %v306 = vld [vmem:[%s152 + $0x200] sm:%s145]
                %307 = vst [vmem:[%s153 + $0x130] sm:%s145] %v306
                %v308 = vld [vmem:[%s152 + $0x204] sm:%s145]
                %309 = vst [vmem:[%s153 + $0x134] sm:%s145] %v308
                %v310 = vld [vmem:[%s152 + $0x270] sm:%s145]
                %311 = vst [vmem:[%s153 + $0x138] sm:%s145] %v310
                %v312 = vld [vmem:[%s152 + $0x274] sm:%s145]
                %313 = vst [vmem:[%s153 + $0x13c] sm:%s145] %v312
                %v314 = vld [vmem:[%s152 + $0x278] sm:%s145]
                %315 = vst [vmem:[%s153 + $0x140] sm:%s145] %v314
                %v316 = vld [vmem:[%s152 + $0x27c] sm:%s145]
                %317 = vst [vmem:[%s153 + $0x144] sm:%s145] %v316
                %v318 = vld [vmem:[%s152 + $0x280] sm:%s145]
                %319 = vst [vmem:[%s153 + $0x148] sm:%s145] %v318
                %v320 = vld [vmem:[%s152 + $0x284] sm:%s145]
                %321 = vst [vmem:[%s153 + $0x14c] sm:%s145] %v320
                %v322 = vld [vmem:[%s152 + $0x288] sm:%s145]
                %323 = vst [vmem:[%s153 + $0x150] sm:%s145] %v322
                %v324 = vld [vmem:[%s152 + $0x28c] sm:%s145]
                %325 = vst [vmem:[%s153 + $0x154] sm:%s145] %v324
                %v326 = vld [vmem:[%s152 + $0x290] sm:%s145]
                %327 = vst [vmem:[%s153 + $0x158] sm:%s145] %v326
                %v328 = vld [vmem:[%s152 + $0x294] sm:%s145]
                %329 = vst [vmem:[%s153 + $0x15c] sm:%s145] %v328
                %v330 = vld [vmem:[%s152 + $0x298] sm:%s145]
                %331 = vst [vmem:[%s153 + $0x160] sm:%s145] %v330
                %v332 = vld [vmem:[%s152 + $0x29c] sm:%s145]
                %333 = vst [vmem:[%s153 + $0x164] sm:%s145] %v332
                %v334 = vld [vmem:[%s152 + $0x2a0] sm:%s145]
                %335 = vst [vmem:[%s153 + $0x168] sm:%s145] %v334
                %v336 = vld [vmem:[%s152 + $0x2a4] sm:%s145]
                %337 = vst [vmem:[%s153 + $0x16c] sm:%s145] %v336
                %v338 = vld [vmem:[%s152 + $0x2a8] sm:%s145]
                %339 = vst [vmem:[%s153 + $0x170] sm:%s145] %v338
                %v340 = vld [vmem:[%s152 + $0x2ac] sm:%s145]
                %341 = vst [vmem:[%s153 + $0x174] sm:%s145] %v340
                %v342 = vld [vmem:[%s152 + $0x2b0] sm:%s145]
                %343 = vst [vmem:[%s153 + $0x178] sm:%s145] %v342
                %v344 = vld [vmem:[%s152 + $0x2b4] sm:%s145]
                %345 = vst [vmem:[%s153 + $0x17c] sm:%s145] %v344
                %v346 = vld [vmem:[%s152 + $0x2b8] sm:%s145]
                %347 = vst [vmem:[%s153 + $0x180] sm:%s145] %v346
                %v348 = vld [vmem:[%s152 + $0x2bc] sm:%s145]
                %349 = vst [vmem:[%s153 + $0x184] sm:%s145] %v348
                %v350 = vld [vmem:[%s152 + $0x2c0] sm:%s145]
                %351 = vst [vmem:[%s153 + $0x188] sm:%s145] %v350
                %v352 = vld [vmem:[%s152 + $0x2c4] sm:%s145]
                %353 = vst [vmem:[%s153 + $0x18c] sm:%s145] %v352
                %v354 = vld [vmem:[%s152 + $0x2c8] sm:%s145]
                %355 = vst [vmem:[%s153 + $0x190] sm:%s145] %v354
                %v356 = vld [vmem:[%s152 + $0x2cc] sm:%s145]
                %357 = vst [vmem:[%s153 + $0x194] sm:%s145] %v356
                %v358 = vld [vmem:[%s152 + $0x2d0] sm:%s145]
                %359 = vst [vmem:[%s153 + $0x198] sm:%s145] %v358
                %v360 = vld [vmem:[%s152 + $0x2d4] sm:%s145]
                %361 = vst [vmem:[%s153 + $0x19c] sm:%s145] %v360
              $region45: #{net_forward.3} parent=39 // loop_footer
                %s151 = sadd.s32 1, %s147
              $region46: #{net_forward.3} parent=39 // loop_footer_branch
                %146 = sbr.rel target = $region42
              $region47: #{net_forward.3} parent=39 // loop_exit
                _
            $region40: #{net_forward.3} parent=31 // pred_fallthru
              _
          $region32: #{net_forward.3} parent=27 // pred_fallthru
            _
          %590 = vnop
        $region28: #{net_forward.3} parent=23 // pred_fallthru
          _
      $region24: #{net_forward.3} parent=5 // pred_fallthru
        _
      %p591 = scmp.le.s32.totalorder 1, %s9
      %p592 = scmp.lt.s32.totalorder %s9, 3
      %p593 = pnand %p591, %p592
      %p594 = pneg %p593
      // Predicated region
      $region66: #{net_forward.3} parent=5 // pred_check
        _
      $region67: #{net_forward.3} parent=5 // pred_check_branch
        %596 = sbr.rel (%p593) target = $region69
      $region68: #{net_forward.3} parent=5 // pred_region
        %s597 = ssub.s32 %s9, 1
        %s598 = sand.u32 %s22, 1
        %s599 = sand.u32 %s22, 1
        %s600 = smul.addr %s599, 416
        %s601 = scalar_lea.vmem [#allocation3], %s600
        // Predicated region
        $region70: #{net_forward.3} parent=68 // pred_check
          %p602 = pneg %p35
        $region71: #{net_forward.3} parent=68 // pred_check_branch
          %604 = sbr.rel (%p602) target = $region73
        $region72: #{net_forward.3} parent=68 // pred_region
          _
        $region73: #{net_forward.3} parent=68 // pred_fallthru
          _
        %s605 = sand.u32 %s22, 1
        %s606 = sand.u32 %s22, 1
        %s607 = smul.addr %s606, 416
        %s608 = scalar_lea.vmem [#allocation3], %s607
        %p609 = pneg %p35
        %p610 = pneg %p32
        %p611 = pneg %p56
        %p612 = pneg %p53
        %p613 = pneg %p77
        %p614 = pneg %p74
        %p615 = pneg %p103
        %p616 = pneg %p100
        %s617 = smul.u32 26, %s14
        %p618 = scmp.lt.s32.totalorder %s617, 51
        %s619 = scalar_select %p618, %s617, 51
        %s620 = smul.addr %s619, 4
        %s621 = scalar_lea.vmem %s3, %s620
        %s622 = smul.u32 26, %s14
        %s623 = smul.u32 26, %s14
        %p624 = scmp.lt.s32.totalorder %s623, 51
        %s625 = scalar_select %p624, %s623, 51
        %s626 = smul.addr %s625, 4
        %s627 = scalar_lea.vmem %s3, %s626
        %s628 = smul.u32 26, %s14
        %v629 = vld [vmem:[%s1] sm:$0xf]
        %v630 = vld [vmem:[%s1 + $0x4] sm:$0xf]
        %v631 = vld [vmem:[%s1 + $0x8] sm:$0xf]
        %v632 = vld [vmem:[%s1 + $0xc] sm:$0xf]
        %v633 = vld [vmem:[%s1 + $0x10] sm:$0xf]
        %v634 = vld [vmem:[%s1 + $0x14] sm:$0xf]
        %v635 = vld [vmem:[%s1 + $0x18] sm:$0xf]
        %v636 = vld [vmem:[%s1 + $0x1c] sm:$0xf]
        %v637 = vld [vmem:[%s1 + $0x20] sm:$0xf]
        %v638 = vld [vmem:[%s1 + $0x24] sm:$0xf]
        %v639 = vld [vmem:[%s1 + $0x28] sm:$0xf]
        %v640 = vld [vmem:[%s1 + $0x2c] sm:$0xf]
        %v641 = vld [vmem:[%s1 + $0x30] sm:$0xf]
        %v642 = vld [vmem:[%s1 + $0x34] sm:$0xf]
        %v643 = vld [vmem:[%s1 + $0x38] sm:$0xf]
        %v644 = vld [vmem:[%s1 + $0x3c] sm:$0xf]
        %v645 = vld [vmem:[%s601] sm:$0xf]
        %v646 = vld [vmem:[%s601 + $0x4] sm:$0xf]
        %v647 = vld [vmem:[%s601 + $0x8] sm:$0xf]
        %v648 = vld [vmem:[%s601 + $0xc] sm:$0xf]
        %v649 = vld [vmem:[%s601 + $0x10] sm:$0xf]
        %v650 = vld [vmem:[%s601 + $0x14] sm:$0xf]
        %v651 = vld [vmem:[%s601 + $0x18] sm:$0xf]
        %v652 = vld [vmem:[%s601 + $0x1c] sm:$0xf]
        %v653 = vld [vmem:[%s601 + $0x20] sm:$0xf]
        %v654 = vld [vmem:[%s601 + $0x24] sm:$0xf]
        %v655 = vld [vmem:[%s601 + $0x28] sm:$0xf]
        %v656 = vld [vmem:[%s601 + $0x2c] sm:$0xf]
        %v657 = vld [vmem:[%s601 + $0x30] sm:$0xf]
        %v658 = vld [vmem:[%s601 + $0x34] sm:$0xf]
        %v659 = vld [vmem:[%s601 + $0x38] sm:$0xf]
        %v660 = vld [vmem:[%s601 + $0x3c] sm:$0xf]
        %v661 = vld [vmem:[%s601 + $0x40] sm:$0xf]
        %v662 = vld [vmem:[%s601 + $0x44] sm:$0xf]
        %v663 = vld [vmem:[%s601 + $0x48] sm:$0xf]
        %v664 = vld [vmem:[%s601 + $0x4c] sm:$0xf]
        %v665 = vld [vmem:[%s601 + $0x50] sm:$0xf]
        %v666 = vld [vmem:[%s601 + $0x54] sm:$0xf]
        %v667 = vld [vmem:[%s601 + $0x58] sm:$0xf]
        %v668 = vld [vmem:[%s601 + $0x5c] sm:$0xf]
        %v669 = vld [vmem:[%s601 + $0x60] sm:$0xf]
        %v670 = vld [vmem:[%s601 + $0x64] sm:$0xf]
        %v697 = vunpack.c.l.b16 %v645
        %v698 = vunpack.c.l.b16 %v646
        %v699 = vunpack.c.l.b16 %v647
        %v700 = vunpack.c.l.b16 %v648
        %v701 = vunpack.c.l.b16 %v649
        %v702 = vunpack.c.l.b16 %v650
        %v703 = vunpack.c.l.b16 %v651
        %v704 = vunpack.c.l.b16 %v652
        %v705 = vunpack.c.l.b16 %v653
        %v706 = vunpack.c.l.b16 %v654
        %v707 = vunpack.c.l.b16 %v655
        %v708 = vunpack.c.l.b16 %v656
        %v709 = vunpack.c.l.b16 %v657
        %v710 = vunpack.c.l.b16 %v658
        %v711 = vunpack.c.l.b16 %v659
        %v712 = vunpack.c.l.b16 %v660
        %v713 = vunpack.c.l.b16 %v661
        %v714 = vunpack.c.l.b16 %v662
        %v715 = vunpack.c.l.b16 %v663
        %v716 = vunpack.c.l.b16 %v664
        %v717 = vunpack.c.l.b16 %v665
        %v718 = vunpack.c.l.b16 %v666
        %v719 = vunpack.c.l.b16 %v667
        %v720 = vunpack.c.l.b16 %v668
        %v721 = vunpack.c.l.b16 %v669
        %v722 = vunpack.c.l.b16 %v670
        %v723 = vpack.c.b16 %v698, %v697
        %v724 = vpack.c.b16 %v700, %v699
        %v725 = vpack.c.b16 %v702, %v701
        %v726 = vpack.c.b16 %v704, %v703
        %v727 = vpack.c.b16 %v706, %v705
        %v728 = vpack.c.b16 %v708, %v707
        %v729 = vpack.c.b16 %v710, %v709
        %v730 = vpack.c.b16 %v712, %v711
        %v731 = vpack.c.b16 %v714, %v713
        %v732 = vpack.c.b16 %v716, %v715
        %v733 = vpack.c.b16 %v718, %v717
        %v734 = vpack.c.b16 %v720, %v719
        %v735 = vpack.c.b16 %v722, %v721
        %v765 = vunpack.c.l.b16 %v629
        %v766 = vunpack.c.l.b16 %v630
        %v767 = vunpack.c.l.b16 %v631
        %v768 = vunpack.c.l.b16 %v632
        %v769 = vunpack.c.l.b16 %v633
        %v770 = vunpack.c.l.b16 %v634
        %v771 = vunpack.c.l.b16 %v635
        %v772 = vunpack.c.l.b16 %v636
        %v773 = vunpack.c.l.b16 %v637
        %v774 = vunpack.c.l.b16 %v638
        %v775 = vunpack.c.l.b16 %v639
        %v776 = vunpack.c.l.b16 %v640
        %v777 = vunpack.c.l.b16 %v641
        %v778 = vunpack.c.l.b16 %v642
        %v779 = vunpack.c.l.b16 %v643
        %v780 = vunpack.c.l.b16 %v644
        %v781 = vpack.c.b16 %v766, %v765
        %v782 = vpack.c.b16 %v768, %v767
        %v783 = vpack.c.b16 %v770, %v769
        %v784 = vpack.c.b16 %v772, %v771
        %v785 = vpack.c.b16 %v774, %v773
        %v786 = vpack.c.b16 %v776, %v775
        %v787 = vpack.c.b16 %v778, %v777
        %v788 = vpack.c.b16 %v780, %v779
        %797 = vmatpush.bf16.msra.mxu0 %v788
        %798 = vmatpush.bf16.msra.mxu0 %v787
        %799 = vmatpush.bf16.msra.mxu0 %v786
        %800 = vmatpush.bf16.msra.mxu0 %v785
        %801 = vmatpush.bf16.msra.mxu0 %v784
        %802 = vmatpush.bf16.msra.mxu0 %v783
        %803 = vmatpush.bf16.msra.mxu0 %v782
        %804 = vmatpush.bf16.msra.mxu0 %v781
        %805 = vmatmul.bf16.gmra.mxu0 %v723
        %v806 = vpop.f32.mrf.mxu0
        %v807 = vadd.f32 0.0, %v806
        %v808 = vpop.f32.mrf.mxu0
        %v809 = vadd.f32 0.0, %v808
        %810 = vmatmul.bf16.gmra.mxu0 %v724
        %v811 = vpop.f32.mrf.mxu0
        %v812 = vadd.f32 0.0, %v811
        %v813 = vpop.f32.mrf.mxu0
        %v814 = vadd.f32 0.0, %v813
        %815 = vmatmul.bf16.gmra.mxu0 %v725
        %v816 = vpop.f32.mrf.mxu0
        %v817 = vadd.f32 0.0, %v816
        %v818 = vpop.f32.mrf.mxu0
        %v819 = vadd.f32 0.0, %v818
        %820 = vmatmul.bf16.gmra.mxu0 %v726
        %v821 = vpop.f32.mrf.mxu0
        %v822 = vadd.f32 0.0, %v821
        %v823 = vpop.f32.mrf.mxu0
        %v824 = vadd.f32 0.0, %v823
        %825 = vmatmul.bf16.gmra.mxu0 %v727
        %v826 = vpop.f32.mrf.mxu0
        %v827 = vadd.f32 0.0, %v826
        %v828 = vpop.f32.mrf.mxu0
        %v829 = vadd.f32 0.0, %v828
        %830 = vmatmul.bf16.gmra.mxu0 %v728
        %v831 = vpop.f32.mrf.mxu0
        %v832 = vadd.f32 0.0, %v831
        %v833 = vpop.f32.mrf.mxu0
        %v834 = vadd.f32 0.0, %v833
        %835 = vmatmul.bf16.gmra.mxu0 %v729
        %v836 = vpop.f32.mrf.mxu0
        %v837 = vadd.f32 0.0, %v836
        %v838 = vpop.f32.mrf.mxu0
        %v839 = vadd.f32 0.0, %v838
        %840 = vmatmul.bf16.gmra.mxu0 %v730
        %v841 = vpop.f32.mrf.mxu0
        %v842 = vadd.f32 0.0, %v841
        %v843 = vpop.f32.mrf.mxu0
        %v844 = vadd.f32 0.0, %v843
        %845 = vmatmul.bf16.gmra.mxu0 %v731
        %v846 = vpop.f32.mrf.mxu0
        %v847 = vadd.f32 0.0, %v846
        %v848 = vpop.f32.mrf.mxu0
        %v849 = vadd.f32 0.0, %v848
        %850 = vmatmul.bf16.gmra.mxu0 %v732
        %v851 = vpop.f32.mrf.mxu0
        %v852 = vadd.f32 0.0, %v851
        %v853 = vpop.f32.mrf.mxu0
        %v854 = vadd.f32 0.0, %v853
        %855 = vmatmul.bf16.gmra.mxu0 %v733
        %v856 = vpop.f32.mrf.mxu0
        %v857 = vadd.f32 0.0, %v856
        %v858 = vpop.f32.mrf.mxu0
        %v859 = vadd.f32 0.0, %v858
        %860 = vmatmul.bf16.gmra.mxu0 %v734
        %v861 = vpop.f32.mrf.mxu0
        %v862 = vadd.f32 0.0, %v861
        %v863 = vpop.f32.mrf.mxu0
        %v864 = vadd.f32 0.0, %v863
        %865 = vmatmul.bf16.gmra.mxu0 %v735
        %v866 = vpop.f32.mrf.mxu0
        %v867 = vadd.f32 0.0, %v866
        %v868 = vpop.f32.mrf.mxu0
        %v869 = vadd.f32 0.0, %v868
        %870 = vdwg.mxu0
        %871 = vst [vmem:[#allocation2] sm:$0xff] %v807
        %872 = vst [vmem:[#allocation2 + $0x8] sm:$0xff] %v809
        %873 = vst [vmem:[#allocation2 + $0x10] sm:$0xff] %v812
        %874 = vst [vmem:[#allocation2 + $0x18] sm:$0xff] %v814
        %875 = vst [vmem:[#allocation2 + $0x20] sm:$0xff] %v817
        %876 = vst [vmem:[#allocation2 + $0x28] sm:$0xff] %v819
        %877 = vst [vmem:[#allocation2 + $0x30] sm:$0xff] %v822
        %878 = vst [vmem:[#allocation2 + $0x38] sm:$0xff] %v824
        %879 = vst [vmem:[#allocation2 + $0x40] sm:$0xff] %v827
        %880 = vst [vmem:[#allocation2 + $0x48] sm:$0xff] %v829
        %881 = vst [vmem:[#allocation2 + $0x50] sm:$0xff] %v832
        %882 = vst [vmem:[#allocation2 + $0x58] sm:$0xff] %v834
        %883 = vst [vmem:[#allocation2 + $0x60] sm:$0xff] %v837
        %884 = vst [vmem:[#allocation2 + $0x68] sm:$0xff] %v839
        %885 = vst [vmem:[#allocation2 + $0x70] sm:$0xff] %v842
        %886 = vst [vmem:[#allocation2 + $0x78] sm:$0xff] %v844
        %887 = vst [vmem:[#allocation2 + $0x80] sm:$0xff] %v847
        %888 = vst [vmem:[#allocation2 + $0x88] sm:$0xff] %v849
        %889 = vst [vmem:[#allocation2 + $0x90] sm:$0xff] %v852
        %890 = vst [vmem:[#allocation2 + $0x98] sm:$0xff] %v854
        %891 = vst [vmem:[#allocation2 + $0xa0] sm:$0xff] %v857
        %892 = vst [vmem:[#allocation2 + $0xa8] sm:$0xff] %v859
        %893 = vst [vmem:[#allocation2 + $0xb0] sm:$0xff] %v862
        %894 = vst [vmem:[#allocation2 + $0xb8] sm:$0xff] %v864
        %895 = vst [vmem:[#allocation2 + $0xc0] sm:$0xff] %v867
        %896 = vst [vmem:[#allocation2 + $0xc8] sm:$0xff] %v869
        %v897 = vld [vmem:[#allocation2] sm:$0xff]
        %v898 = vld [vmem:[#allocation2 + $0x8] sm:$0xff]
        %v899 = vld [vmem:[#allocation2 + $0x10] sm:$0xff]
        %v900 = vld [vmem:[#allocation2 + $0x18] sm:$0xff]
        %v901 = vld [vmem:[#allocation2 + $0x20] sm:$0xff]
        %v902 = vld [vmem:[#allocation2 + $0x28] sm:$0xff]
        %v903 = vld [vmem:[#allocation2 + $0x30] sm:$0xff]
        %v904 = vld [vmem:[#allocation2 + $0x38] sm:$0xff]
        %v905 = vld [vmem:[#allocation2 + $0x40] sm:$0xff]
        %v906 = vld [vmem:[#allocation2 + $0x48] sm:$0xff]
        %v907 = vld [vmem:[#allocation2 + $0x50] sm:$0xff]
        %v908 = vld [vmem:[#allocation2 + $0x58] sm:$0xff]
        %v909 = vld [vmem:[#allocation2 + $0x60] sm:$0xff]
        %v910 = vld [vmem:[#allocation2 + $0x68] sm:$0xff]
        %v911 = vld [vmem:[#allocation2 + $0x70] sm:$0xff]
        %v912 = vld [vmem:[#allocation2 + $0x78] sm:$0xff]
        %v913 = vld [vmem:[#allocation2 + $0x80] sm:$0xff]
        %v914 = vld [vmem:[#allocation2 + $0x88] sm:$0xff]
        %v915 = vld [vmem:[#allocation2 + $0x90] sm:$0xff]
        %v916 = vld [vmem:[#allocation2 + $0x98] sm:$0xff]
        %v917 = vld [vmem:[#allocation2 + $0xa0] sm:$0xff]
        %v918 = vld [vmem:[#allocation2 + $0xa8] sm:$0xff]
        %v919 = vld [vmem:[#allocation2 + $0xb0] sm:$0xff]
        %v920 = vld [vmem:[#allocation2 + $0xb8] sm:$0xff]
        %v921 = vld [vmem:[#allocation2 + $0xc0] sm:$0xff]
        %v922 = vld [vmem:[#allocation2 + $0xc8] sm:$0xff]
        %s923 = scalar_lea.vmem %s601, 104 [#allocation3]
        %v924 = vld [vmem:[%s923] sm:$0xf]
        %v925 = vld [vmem:[%s923 + $0x4] sm:$0xf]
        %v926 = vld [vmem:[%s923 + $0x8] sm:$0xf]
        %v927 = vld [vmem:[%s923 + $0xc] sm:$0xf]
        %v928 = vld [vmem:[%s923 + $0x10] sm:$0xf]
        %v929 = vld [vmem:[%s923 + $0x14] sm:$0xf]
        %v930 = vld [vmem:[%s923 + $0x18] sm:$0xf]
        %v931 = vld [vmem:[%s923 + $0x1c] sm:$0xf]
        %v932 = vld [vmem:[%s923 + $0x20] sm:$0xf]
        %v933 = vld [vmem:[%s923 + $0x24] sm:$0xf]
        %v934 = vld [vmem:[%s923 + $0x28] sm:$0xf]
        %v935 = vld [vmem:[%s923 + $0x2c] sm:$0xf]
        %v936 = vld [vmem:[%s923 + $0x30] sm:$0xf]
        %v937 = vld [vmem:[%s923 + $0x34] sm:$0xf]
        %v938 = vld [vmem:[%s923 + $0x38] sm:$0xf]
        %v939 = vld [vmem:[%s923 + $0x3c] sm:$0xf]
        %v940 = vld [vmem:[%s923 + $0x40] sm:$0xf]
        %v941 = vld [vmem:[%s923 + $0x44] sm:$0xf]
        %v942 = vld [vmem:[%s923 + $0x48] sm:$0xf]
        %v943 = vld [vmem:[%s923 + $0x4c] sm:$0xf]
        %v944 = vld [vmem:[%s923 + $0x50] sm:$0xf]
        %v945 = vld [vmem:[%s923 + $0x54] sm:$0xf]
        %v946 = vld [vmem:[%s923 + $0x58] sm:$0xf]
        %v947 = vld [vmem:[%s923 + $0x5c] sm:$0xf]
        %v948 = vld [vmem:[%s923 + $0x60] sm:$0xf]
        %v949 = vld [vmem:[%s923 + $0x64] sm:$0xf]
        %v976 = vunpack.c.l.b16 %v924
        %v977 = vunpack.c.l.b16 %v925
        %v978 = vunpack.c.l.b16 %v926
        %v979 = vunpack.c.l.b16 %v927
        %v980 = vunpack.c.l.b16 %v928
        %v981 = vunpack.c.l.b16 %v929
        %v982 = vunpack.c.l.b16 %v930
        %v983 = vunpack.c.l.b16 %v931
        %v984 = vunpack.c.l.b16 %v932
        %v985 = vunpack.c.l.b16 %v933
        %v986 = vunpack.c.l.b16 %v934
        %v987 = vunpack.c.l.b16 %v935
        %v988 = vunpack.c.l.b16 %v936
        %v989 = vunpack.c.l.b16 %v937
        %v990 = vunpack.c.l.b16 %v938
        %v991 = vunpack.c.l.b16 %v939
        %v992 = vunpack.c.l.b16 %v940
        %v993 = vunpack.c.l.b16 %v941
        %v994 = vunpack.c.l.b16 %v942
        %v995 = vunpack.c.l.b16 %v943
        %v996 = vunpack.c.l.b16 %v944
        %v997 = vunpack.c.l.b16 %v945
        %v998 = vunpack.c.l.b16 %v946
        %v999 = vunpack.c.l.b16 %v947
        %v1000 = vunpack.c.l.b16 %v948
        %v1001 = vunpack.c.l.b16 %v949
        %v1002 = vpack.c.b16 %v977, %v976
        %v1003 = vpack.c.b16 %v979, %v978
        %v1004 = vpack.c.b16 %v981, %v980
        %v1005 = vpack.c.b16 %v983, %v982
        %v1006 = vpack.c.b16 %v985, %v984
        %v1007 = vpack.c.b16 %v987, %v986
        %v1008 = vpack.c.b16 %v989, %v988
        %v1009 = vpack.c.b16 %v991, %v990
        %v1010 = vpack.c.b16 %v993, %v992
        %v1011 = vpack.c.b16 %v995, %v994
        %v1012 = vpack.c.b16 %v997, %v996
        %v1013 = vpack.c.b16 %v999, %v998
        %v1014 = vpack.c.b16 %v1001, %v1000
        %1028 = vmatpush.bf16.msra.mxu0 %v788
        %1029 = vmatpush.bf16.msra.mxu0 %v787
        %1030 = vmatpush.bf16.msra.mxu0 %v786
        %1031 = vmatpush.bf16.msra.mxu0 %v785
        %1032 = vmatpush.bf16.msra.mxu0 %v784
        %1033 = vmatpush.bf16.msra.mxu0 %v783
        %1034 = vmatpush.bf16.msra.mxu0 %v782
        %1035 = vmatpush.bf16.msra.mxu0 %v781
        %1036 = vmatmul.bf16.gmra.mxu0 %v1002
        %v1037 = vpop.f32.mrf.mxu0
        %v1038 = vadd.f32 0.0, %v1037
        %v1039 = vpop.f32.mrf.mxu0
        %v1040 = vadd.f32 0.0, %v1039
        %1041 = vmatmul.bf16.gmra.mxu0 %v1003
        %v1042 = vpop.f32.mrf.mxu0
        %v1043 = vadd.f32 0.0, %v1042
        %v1044 = vpop.f32.mrf.mxu0
        %v1045 = vadd.f32 0.0, %v1044
        %1046 = vmatmul.bf16.gmra.mxu0 %v1004
        %v1047 = vpop.f32.mrf.mxu0
        %v1048 = vadd.f32 0.0, %v1047
        %v1049 = vpop.f32.mrf.mxu0
        %v1050 = vadd.f32 0.0, %v1049
        %1051 = vmatmul.bf16.gmra.mxu0 %v1005
        %v1052 = vpop.f32.mrf.mxu0
        %v1053 = vadd.f32 0.0, %v1052
        %v1054 = vpop.f32.mrf.mxu0
        %v1055 = vadd.f32 0.0, %v1054
        %1056 = vmatmul.bf16.gmra.mxu0 %v1006
        %v1057 = vpop.f32.mrf.mxu0
        %v1058 = vadd.f32 0.0, %v1057
        %v1059 = vpop.f32.mrf.mxu0
        %v1060 = vadd.f32 0.0, %v1059
        %1061 = vmatmul.bf16.gmra.mxu0 %v1007
        %v1062 = vpop.f32.mrf.mxu0
        %v1063 = vadd.f32 0.0, %v1062
        %v1064 = vpop.f32.mrf.mxu0
        %v1065 = vadd.f32 0.0, %v1064
        %1066 = vmatmul.bf16.gmra.mxu0 %v1008
        %v1067 = vpop.f32.mrf.mxu0
        %v1068 = vadd.f32 0.0, %v1067
        %v1069 = vpop.f32.mrf.mxu0
        %v1070 = vadd.f32 0.0, %v1069
        %1071 = vmatmul.bf16.gmra.mxu0 %v1009
        %v1072 = vpop.f32.mrf.mxu0
        %v1073 = vadd.f32 0.0, %v1072
        %v1074 = vpop.f32.mrf.mxu0
        %v1075 = vadd.f32 0.0, %v1074
        %1076 = vmatmul.bf16.gmra.mxu0 %v1010
        %v1077 = vpop.f32.mrf.mxu0
        %v1078 = vadd.f32 0.0, %v1077
        %v1079 = vpop.f32.mrf.mxu0
        %v1080 = vadd.f32 0.0, %v1079
        %1081 = vmatmul.bf16.gmra.mxu0 %v1011
        %v1082 = vpop.f32.mrf.mxu0
        %v1083 = vadd.f32 0.0, %v1082
        %v1084 = vpop.f32.mrf.mxu0
        %v1085 = vadd.f32 0.0, %v1084
        %1086 = vmatmul.bf16.gmra.mxu0 %v1012
        %v1087 = vpop.f32.mrf.mxu0
        %v1088 = vadd.f32 0.0, %v1087
        %v1089 = vpop.f32.mrf.mxu0
        %v1090 = vadd.f32 0.0, %v1089
        %1091 = vmatmul.bf16.gmra.mxu0 %v1013
        %v1092 = vpop.f32.mrf.mxu0
        %v1093 = vadd.f32 0.0, %v1092
        %v1094 = vpop.f32.mrf.mxu0
        %v1095 = vadd.f32 0.0, %v1094
        %1096 = vmatmul.bf16.gmra.mxu0 %v1014
        %v1097 = vpop.f32.mrf.mxu0
        %v1098 = vadd.f32 0.0, %v1097
        %v1099 = vpop.f32.mrf.mxu0
        %v1100 = vadd.f32 0.0, %v1099
        %1101 = vdwg.mxu0
        %v1102 = vmax.f32 %v897, %v1038
        %v1103 = vmax.f32 %v898, %v1040
        %v1104 = vmax.f32 %v899, %v1043
        %v1105 = vmax.f32 %v900, %v1045
        %v1106 = vmax.f32 %v901, %v1048
        %v1107 = vmax.f32 %v902, %v1050
        %v1108 = vmax.f32 %v903, %v1053
        %v1109 = vmax.f32 %v904, %v1055
        %v1110 = vmax.f32 %v905, %v1058
        %v1111 = vmax.f32 %v906, %v1060
        %v1112 = vmax.f32 %v907, %v1063
        %v1113 = vmax.f32 %v908, %v1065
        %v1114 = vmax.f32 %v909, %v1068
        %v1115 = vmax.f32 %v910, %v1070
        %v1116 = vmax.f32 %v911, %v1073
        %v1117 = vmax.f32 %v912, %v1075
        %v1118 = vmax.f32 %v913, %v1078
        %v1119 = vmax.f32 %v914, %v1080
        %v1120 = vmax.f32 %v915, %v1083
        %v1121 = vmax.f32 %v916, %v1085
        %v1122 = vmax.f32 %v917, %v1088
        %v1123 = vmax.f32 %v918, %v1090
        %v1124 = vmax.f32 %v919, %v1093
        %v1125 = vmax.f32 %v920, %v1095
        %v1126 = vmax.f32 %v921, %v1098
        %v1127 = vmax.f32 %v922, %v1100
        %1128 = vst [vmem:[#allocation2] sm:$0xff] %v1102
        %1129 = vst [vmem:[#allocation2 + $0x8] sm:$0xff] %v1103
        %1130 = vst [vmem:[#allocation2 + $0x10] sm:$0xff] %v1104
        %1131 = vst [vmem:[#allocation2 + $0x18] sm:$0xff] %v1105
        %1132 = vst [vmem:[#allocation2 + $0x20] sm:$0xff] %v1106
        %1133 = vst [vmem:[#allocation2 + $0x28] sm:$0xff] %v1107
        %1134 = vst [vmem:[#allocation2 + $0x30] sm:$0xff] %v1108
        %1135 = vst [vmem:[#allocation2 + $0x38] sm:$0xff] %v1109
        %1136 = vst [vmem:[#allocation2 + $0x40] sm:$0xff] %v1110
        %1137 = vst [vmem:[#allocation2 + $0x48] sm:$0xff] %v1111
        %1138 = vst [vmem:[#allocation2 + $0x50] sm:$0xff] %v1112
        %1139 = vst [vmem:[#allocation2 + $0x58] sm:$0xff] %v1113
        %1140 = vst [vmem:[#allocation2 + $0x60] sm:$0xff] %v1114
        %1141 = vst [vmem:[#allocation2 + $0x68] sm:$0xff] %v1115
        %1142 = vst [vmem:[#allocation2 + $0x70] sm:$0xff] %v1116
        %1143 = vst [vmem:[#allocation2 + $0x78] sm:$0xff] %v1117
        %1144 = vst [vmem:[#allocation2 + $0x80] sm:$0xff] %v1118
        %1145 = vst [vmem:[#allocation2 + $0x88] sm:$0xff] %v1119
        %1146 = vst [vmem:[#allocation2 + $0x90] sm:$0xff] %v1120
        %1147 = vst [vmem:[#allocation2 + $0x98] sm:$0xff] %v1121
        %1148 = vst [vmem:[#allocation2 + $0xa0] sm:$0xff] %v1122
        %1149 = vst [vmem:[#allocation2 + $0xa8] sm:$0xff] %v1123
        %1150 = vst [vmem:[#allocation2 + $0xb0] sm:$0xff] %v1124
        %1151 = vst [vmem:[#allocation2 + $0xb8] sm:$0xff] %v1125
        %1152 = vst [vmem:[#allocation2 + $0xc0] sm:$0xff] %v1126
        %1153 = vst [vmem:[#allocation2 + $0xc8] sm:$0xff] %v1127
        %v1154 = vld [vmem:[#allocation2] sm:$0xff]
        %v1155 = vld [vmem:[#allocation2 + $0x8] sm:$0xff]
        %v1156 = vld [vmem:[#allocation2 + $0x10] sm:$0xff]
        %v1157 = vld [vmem:[#allocation2 + $0x18] sm:$0xff]
        %v1158 = vld [vmem:[#allocation2 + $0x20] sm:$0xff]
        %v1159 = vld [vmem:[#allocation2 + $0x28] sm:$0xff]
        %v1160 = vld [vmem:[#allocation2 + $0x30] sm:$0xff]
        %v1161 = vld [vmem:[#allocation2 + $0x38] sm:$0xff]
        %v1162 = vld [vmem:[#allocation2 + $0x40] sm:$0xff]
        %v1163 = vld [vmem:[#allocation2 + $0x48] sm:$0xff]
        %v1164 = vld [vmem:[#allocation2 + $0x50] sm:$0xff]
        %v1165 = vld [vmem:[#allocation2 + $0x58] sm:$0xff]
        %v1166 = vld [vmem:[#allocation2 + $0x60] sm:$0xff]
        %v1167 = vld [vmem:[#allocation2 + $0x68] sm:$0xff]
        %v1168 = vld [vmem:[#allocation2 + $0x70] sm:$0xff]
        %v1169 = vld [vmem:[#allocation2 + $0x78] sm:$0xff]
        %v1170 = vld [vmem:[#allocation2 + $0x80] sm:$0xff]
        %v1171 = vld [vmem:[#allocation2 + $0x88] sm:$0xff]
        %v1172 = vld [vmem:[#allocation2 + $0x90] sm:$0xff]
        %v1173 = vld [vmem:[#allocation2 + $0x98] sm:$0xff]
        %v1174 = vld [vmem:[#allocation2 + $0xa0] sm:$0xff]
        %v1175 = vld [vmem:[#allocation2 + $0xa8] sm:$0xff]
        %v1176 = vld [vmem:[#allocation2 + $0xb0] sm:$0xff]
        %v1177 = vld [vmem:[#allocation2 + $0xb8] sm:$0xff]
        %v1178 = vld [vmem:[#allocation2 + $0xc0] sm:$0xff]
        %v1179 = vld [vmem:[#allocation2 + $0xc8] sm:$0xff]
        %s1180 = scalar_lea.vmem %s601, 208 [#allocation3]
        %v1181 = vld [vmem:[%s1180] sm:$0xf]
        %v1182 = vld [vmem:[%s1180 + $0x4] sm:$0xf]
        %v1183 = vld [vmem:[%s1180 + $0x8] sm:$0xf]
        %v1184 = vld [vmem:[%s1180 + $0xc] sm:$0xf]
        %v1185 = vld [vmem:[%s1180 + $0x10] sm:$0xf]
        %v1186 = vld [vmem:[%s1180 + $0x14] sm:$0xf]
        %v1187 = vld [vmem:[%s1180 + $0x18] sm:$0xf]
        %v1188 = vld [vmem:[%s1180 + $0x1c] sm:$0xf]
        %v1189 = vld [vmem:[%s1180 + $0x20] sm:$0xf]
        %v1190 = vld [vmem:[%s1180 + $0x24] sm:$0xf]
        %v1191 = vld [vmem:[%s1180 + $0x28] sm:$0xf]
        %v1192 = vld [vmem:[%s1180 + $0x2c] sm:$0xf]
        %v1193 = vld [vmem:[%s1180 + $0x30] sm:$0xf]
        %v1194 = vld [vmem:[%s1180 + $0x34] sm:$0xf]
        %v1195 = vld [vmem:[%s1180 + $0x38] sm:$0xf]
        %v1196 = vld [vmem:[%s1180 + $0x3c] sm:$0xf]
        %v1197 = vld [vmem:[%s1180 + $0x40] sm:$0xf]
        %v1198 = vld [vmem:[%s1180 + $0x44] sm:$0xf]
        %v1199 = vld [vmem:[%s1180 + $0x48] sm:$0xf]
        %v1200 = vld [vmem:[%s1180 + $0x4c] sm:$0xf]
        %v1201 = vld [vmem:[%s1180 + $0x50] sm:$0xf]
        %v1202 = vld [vmem:[%s1180 + $0x54] sm:$0xf]
        %v1203 = vld [vmem:[%s1180 + $0x58] sm:$0xf]
        %v1204 = vld [vmem:[%s1180 + $0x5c] sm:$0xf]
        %v1205 = vld [vmem:[%s1180 + $0x60] sm:$0xf]
        %v1206 = vld [vmem:[%s1180 + $0x64] sm:$0xf]
        %v1233 = vunpack.c.l.b16 %v1181
        %v1234 = vunpack.c.l.b16 %v1182
        %v1235 = vunpack.c.l.b16 %v1183
        %v1236 = vunpack.c.l.b16 %v1184
        %v1237 = vunpack.c.l.b16 %v1185
        %v1238 = vunpack.c.l.b16 %v1186
        %v1239 = vunpack.c.l.b16 %v1187
        %v1240 = vunpack.c.l.b16 %v1188
        %v1241 = vunpack.c.l.b16 %v1189
        %v1242 = vunpack.c.l.b16 %v1190
        %v1243 = vunpack.c.l.b16 %v1191
        %v1244 = vunpack.c.l.b16 %v1192
        %v1245 = vunpack.c.l.b16 %v1193
        %v1246 = vunpack.c.l.b16 %v1194
        %v1247 = vunpack.c.l.b16 %v1195
        %v1248 = vunpack.c.l.b16 %v1196
        %v1249 = vunpack.c.l.b16 %v1197
        %v1250 = vunpack.c.l.b16 %v1198
        %v1251 = vunpack.c.l.b16 %v1199
        %v1252 = vunpack.c.l.b16 %v1200
        %v1253 = vunpack.c.l.b16 %v1201
        %v1254 = vunpack.c.l.b16 %v1202
        %v1255 = vunpack.c.l.b16 %v1203
        %v1256 = vunpack.c.l.b16 %v1204
        %v1257 = vunpack.c.l.b16 %v1205
        %v1258 = vunpack.c.l.b16 %v1206
        %v1259 = vpack.c.b16 %v1234, %v1233
        %v1260 = vpack.c.b16 %v1236, %v1235
        %v1261 = vpack.c.b16 %v1238, %v1237
        %v1262 = vpack.c.b16 %v1240, %v1239
        %v1263 = vpack.c.b16 %v1242, %v1241
        %v1264 = vpack.c.b16 %v1244, %v1243
        %v1265 = vpack.c.b16 %v1246, %v1245
        %v1266 = vpack.c.b16 %v1248, %v1247
        %v1267 = vpack.c.b16 %v1250, %v1249
        %v1268 = vpack.c.b16 %v1252, %v1251
        %v1269 = vpack.c.b16 %v1254, %v1253
        %v1270 = vpack.c.b16 %v1256, %v1255
        %v1271 = vpack.c.b16 %v1258, %v1257
        %1285 = vmatpush.bf16.msra.mxu0 %v788
        %1286 = vmatpush.bf16.msra.mxu0 %v787
        %1287 = vmatpush.bf16.msra.mxu0 %v786
        %1288 = vmatpush.bf16.msra.mxu0 %v785
        %1289 = vmatpush.bf16.msra.mxu0 %v784
        %1290 = vmatpush.bf16.msra.mxu0 %v783
        %1291 = vmatpush.bf16.msra.mxu0 %v782
        %1292 = vmatpush.bf16.msra.mxu0 %v781
        %1293 = vmatmul.bf16.gmra.mxu0 %v1259
        %v1294 = vpop.f32.mrf.mxu0
        %v1295 = vadd.f32 0.0, %v1294
        %v1296 = vpop.f32.mrf.mxu0
        %v1297 = vadd.f32 0.0, %v1296
        %1298 = vmatmul.bf16.gmra.mxu0 %v1260
        %v1299 = vpop.f32.mrf.mxu0
        %v1300 = vadd.f32 0.0, %v1299
        %v1301 = vpop.f32.mrf.mxu0
        %v1302 = vadd.f32 0.0, %v1301
        %1303 = vmatmul.bf16.gmra.mxu0 %v1261
        %v1304 = vpop.f32.mrf.mxu0
        %v1305 = vadd.f32 0.0, %v1304
        %v1306 = vpop.f32.mrf.mxu0
        %v1307 = vadd.f32 0.0, %v1306
        %1308 = vmatmul.bf16.gmra.mxu0 %v1262
        %v1309 = vpop.f32.mrf.mxu0
        %v1310 = vadd.f32 0.0, %v1309
        %v1311 = vpop.f32.mrf.mxu0
        %v1312 = vadd.f32 0.0, %v1311
        %1313 = vmatmul.bf16.gmra.mxu0 %v1263
        %v1314 = vpop.f32.mrf.mxu0
        %v1315 = vadd.f32 0.0, %v1314
        %v1316 = vpop.f32.mrf.mxu0
        %v1317 = vadd.f32 0.0, %v1316
        %1318 = vmatmul.bf16.gmra.mxu0 %v1264
        %v1319 = vpop.f32.mrf.mxu0
        %v1320 = vadd.f32 0.0, %v1319
        %v1321 = vpop.f32.mrf.mxu0
        %v1322 = vadd.f32 0.0, %v1321
        %1323 = vmatmul.bf16.gmra.mxu0 %v1265
        %v1324 = vpop.f32.mrf.mxu0
        %v1325 = vadd.f32 0.0, %v1324
        %v1326 = vpop.f32.mrf.mxu0
        %v1327 = vadd.f32 0.0, %v1326
        %1328 = vmatmul.bf16.gmra.mxu0 %v1266
        %v1329 = vpop.f32.mrf.mxu0
        %v1330 = vadd.f32 0.0, %v1329
        %v1331 = vpop.f32.mrf.mxu0
        %v1332 = vadd.f32 0.0, %v1331
        %1333 = vmatmul.bf16.gmra.mxu0 %v1267
        %v1334 = vpop.f32.mrf.mxu0
        %v1335 = vadd.f32 0.0, %v1334
        %v1336 = vpop.f32.mrf.mxu0
        %v1337 = vadd.f32 0.0, %v1336
        %1338 = vmatmul.bf16.gmra.mxu0 %v1268
        %v1339 = vpop.f32.mrf.mxu0
        %v1340 = vadd.f32 0.0, %v1339
        %v1341 = vpop.f32.mrf.mxu0
        %v1342 = vadd.f32 0.0, %v1341
        %1343 = vmatmul.bf16.gmra.mxu0 %v1269
        %v1344 = vpop.f32.mrf.mxu0
        %v1345 = vadd.f32 0.0, %v1344
        %v1346 = vpop.f32.mrf.mxu0
        %v1347 = vadd.f32 0.0, %v1346
        %1348 = vmatmul.bf16.gmra.mxu0 %v1270
        %v1349 = vpop.f32.mrf.mxu0
        %v1350 = vadd.f32 0.0, %v1349
        %v1351 = vpop.f32.mrf.mxu0
        %v1352 = vadd.f32 0.0, %v1351
        %1353 = vmatmul.bf16.gmra.mxu0 %v1271
        %v1354 = vpop.f32.mrf.mxu0
        %v1355 = vadd.f32 0.0, %v1354
        %v1356 = vpop.f32.mrf.mxu0
        %v1357 = vadd.f32 0.0, %v1356
        %1358 = vdwg.mxu0
        %v1359 = vmax.f32 %v1154, %v1295
        %v1360 = vmax.f32 %v1155, %v1297
        %v1361 = vmax.f32 %v1156, %v1300
        %v1362 = vmax.f32 %v1157, %v1302
        %v1363 = vmax.f32 %v1158, %v1305
        %v1364 = vmax.f32 %v1159, %v1307
        %v1365 = vmax.f32 %v1160, %v1310
        %v1366 = vmax.f32 %v1161, %v1312
        %v1367 = vmax.f32 %v1162, %v1315
        %v1368 = vmax.f32 %v1163, %v1317
        %v1369 = vmax.f32 %v1164, %v1320
        %v1370 = vmax.f32 %v1165, %v1322
        %v1371 = vmax.f32 %v1166, %v1325
        %v1372 = vmax.f32 %v1167, %v1327
        %v1373 = vmax.f32 %v1168, %v1330
        %v1374 = vmax.f32 %v1169, %v1332
        %v1375 = vmax.f32 %v1170, %v1335
        %v1376 = vmax.f32 %v1171, %v1337
        %v1377 = vmax.f32 %v1172, %v1340
        %v1378 = vmax.f32 %v1173, %v1342
        %v1379 = vmax.f32 %v1174, %v1345
        %v1380 = vmax.f32 %v1175, %v1347
        %v1381 = vmax.f32 %v1176, %v1350
        %v1382 = vmax.f32 %v1177, %v1352
        %v1383 = vmax.f32 %v1178, %v1355
        %v1384 = vmax.f32 %v1179, %v1357
        %1385 = vst [vmem:[#allocation2] sm:$0xff] %v1359
        %1386 = vst [vmem:[#allocation2 + $0x8] sm:$0xff] %v1360
        %1387 = vst [vmem:[#allocation2 + $0x10] sm:$0xff] %v1361
        %1388 = vst [vmem:[#allocation2 + $0x18] sm:$0xff] %v1362
        %1389 = vst [vmem:[#allocation2 + $0x20] sm:$0xff] %v1363
        %1390 = vst [vmem:[#allocation2 + $0x28] sm:$0xff] %v1364
        %1391 = vst [vmem:[#allocation2 + $0x30] sm:$0xff] %v1365
        %1392 = vst [vmem:[#allocation2 + $0x38] sm:$0xff] %v1366
        %1393 = vst [vmem:[#allocation2 + $0x40] sm:$0xff] %v1367
        %1394 = vst [vmem:[#allocation2 + $0x48] sm:$0xff] %v1368
        %1395 = vst [vmem:[#allocation2 + $0x50] sm:$0xff] %v1369
        %1396 = vst [vmem:[#allocation2 + $0x58] sm:$0xff] %v1370
        %1397 = vst [vmem:[#allocation2 + $0x60] sm:$0xff] %v1371
        %1398 = vst [vmem:[#allocation2 + $0x68] sm:$0xff] %v1372
        %1399 = vst [vmem:[#allocation2 + $0x70] sm:$0xff] %v1373
        %1400 = vst [vmem:[#allocation2 + $0x78] sm:$0xff] %v1374
        %1401 = vst [vmem:[#allocation2 + $0x80] sm:$0xff] %v1375
        %1402 = vst [vmem:[#allocation2 + $0x88] sm:$0xff] %v1376
        %1403 = vst [vmem:[#allocation2 + $0x90] sm:$0xff] %v1377
        %1404 = vst [vmem:[#allocation2 + $0x98] sm:$0xff] %v1378
        %1405 = vst [vmem:[#allocation2 + $0xa0] sm:$0xff] %v1379
        %1406 = vst [vmem:[#allocation2 + $0xa8] sm:$0xff] %v1380
        %1407 = vst [vmem:[#allocation2 + $0xb0] sm:$0xff] %v1381
        %1408 = vst [vmem:[#allocation2 + $0xb8] sm:$0xff] %v1382
        %1409 = vst [vmem:[#allocation2 + $0xc0] sm:$0xff] %v1383
        %1410 = vst [vmem:[#allocation2 + $0xc8] sm:$0xff] %v1384
        %v1411 = vld [vmem:[#allocation2] sm:$0xff]
        %v1412 = vld [vmem:[#allocation2 + $0x8] sm:$0xff]
        %v1413 = vld [vmem:[#allocation2 + $0x10] sm:$0xff]
        %v1414 = vld [vmem:[#allocation2 + $0x18] sm:$0xff]
        %v1415 = vld [vmem:[#allocation2 + $0x20] sm:$0xff]
        %v1416 = vld [vmem:[#allocation2 + $0x28] sm:$0xff]
        %v1417 = vld [vmem:[#allocation2 + $0x30] sm:$0xff]
        %v1418 = vld [vmem:[#allocation2 + $0x38] sm:$0xff]
        %v1419 = vld [vmem:[#allocation2 + $0x40] sm:$0xff]
        %v1420 = vld [vmem:[#allocation2 + $0x48] sm:$0xff]
        %v1421 = vld [vmem:[#allocation2 + $0x50] sm:$0xff]
        %v1422 = vld [vmem:[#allocation2 + $0x58] sm:$0xff]
        %v1423 = vld [vmem:[#allocation2 + $0x60] sm:$0xff]
        %v1424 = vld [vmem:[#allocation2 + $0x68] sm:$0xff]
        %v1425 = vld [vmem:[#allocation2 + $0x70] sm:$0xff]
        %v1426 = vld [vmem:[#allocation2 + $0x78] sm:$0xff]
        %v1427 = vld [vmem:[#allocation2 + $0x80] sm:$0xff]
        %v1428 = vld [vmem:[#allocation2 + $0x88] sm:$0xff]
        %v1429 = vld [vmem:[#allocation2 + $0x90] sm:$0xff]
        %v1430 = vld [vmem:[#allocation2 + $0x98] sm:$0xff]
        %v1431 = vld [vmem:[#allocation2 + $0xa0] sm:$0xff]
        %v1432 = vld [vmem:[#allocation2 + $0xa8] sm:$0xff]
        %v1433 = vld [vmem:[#allocation2 + $0xb0] sm:$0xff]
        %v1434 = vld [vmem:[#allocation2 + $0xb8] sm:$0xff]
        %v1435 = vld [vmem:[#allocation2 + $0xc0] sm:$0xff]
        %v1436 = vld [vmem:[#allocation2 + $0xc8] sm:$0xff]
        %s1437 = scalar_lea.vmem %s601, 312 [#allocation3]
        %v1438 = vld [vmem:[%s1437] sm:$0xf]
        %v1439 = vld [vmem:[%s1437 + $0x4] sm:$0xf]
        %v1440 = vld [vmem:[%s1437 + $0x8] sm:$0xf]
        %v1441 = vld [vmem:[%s1437 + $0xc] sm:$0xf]
        %v1442 = vld [vmem:[%s1437 + $0x10] sm:$0xf]
        %v1443 = vld [vmem:[%s1437 + $0x14] sm:$0xf]
        %v1444 = vld [vmem:[%s1437 + $0x18] sm:$0xf]
        %v1445 = vld [vmem:[%s1437 + $0x1c] sm:$0xf]
        %v1446 = vld [vmem:[%s1437 + $0x20] sm:$0xf]
        %v1447 = vld [vmem:[%s1437 + $0x24] sm:$0xf]
        %v1448 = vld [vmem:[%s1437 + $0x28] sm:$0xf]
        %v1449 = vld [vmem:[%s1437 + $0x2c] sm:$0xf]
        %v1450 = vld [vmem:[%s1437 + $0x30] sm:$0xf]
        %v1451 = vld [vmem:[%s1437 + $0x34] sm:$0xf]
        %v1452 = vld [vmem:[%s1437 + $0x38] sm:$0xf]
        %v1453 = vld [vmem:[%s1437 + $0x3c] sm:$0xf]
        %v1454 = vld [vmem:[%s1437 + $0x40] sm:$0xf]
        %v1455 = vld [vmem:[%s1437 + $0x44] sm:$0xf]
        %v1456 = vld [vmem:[%s1437 + $0x48] sm:$0xf]
        %v1457 = vld [vmem:[%s1437 + $0x4c] sm:$0xf]
        %v1458 = vld [vmem:[%s1437 + $0x50] sm:$0xf]
        %v1459 = vld [vmem:[%s1437 + $0x54] sm:$0xf]
        %v1460 = vld [vmem:[%s1437 + $0x58] sm:$0xf]
        %v1461 = vld [vmem:[%s1437 + $0x5c] sm:$0xf]
        %v1462 = vld [vmem:[%s1437 + $0x60] sm:$0xf]
        %v1463 = vld [vmem:[%s1437 + $0x64] sm:$0xf]
        %v1490 = vunpack.c.l.b16 %v1438
        %v1491 = vunpack.c.l.b16 %v1439
        %v1492 = vunpack.c.l.b16 %v1440
        %v1493 = vunpack.c.l.b16 %v1441
        %v1494 = vunpack.c.l.b16 %v1442
        %v1495 = vunpack.c.l.b16 %v1443
        %v1496 = vunpack.c.l.b16 %v1444
        %v1497 = vunpack.c.l.b16 %v1445
        %v1498 = vunpack.c.l.b16 %v1446
        %v1499 = vunpack.c.l.b16 %v1447
        %v1500 = vunpack.c.l.b16 %v1448
        %v1501 = vunpack.c.l.b16 %v1449
        %v1502 = vunpack.c.l.b16 %v1450
        %v1503 = vunpack.c.l.b16 %v1451
        %v1504 = vunpack.c.l.b16 %v1452
        %v1505 = vunpack.c.l.b16 %v1453
        %v1506 = vunpack.c.l.b16 %v1454
        %v1507 = vunpack.c.l.b16 %v1455
        %v1508 = vunpack.c.l.b16 %v1456
        %v1509 = vunpack.c.l.b16 %v1457
        %v1510 = vunpack.c.l.b16 %v1458
        %v1511 = vunpack.c.l.b16 %v1459
        %v1512 = vunpack.c.l.b16 %v1460
        %v1513 = vunpack.c.l.b16 %v1461
        %v1514 = vunpack.c.l.b16 %v1462
        %v1515 = vunpack.c.l.b16 %v1463
        %v1516 = vpack.c.b16 %v1491, %v1490
        %v1517 = vpack.c.b16 %v1493, %v1492
        %v1518 = vpack.c.b16 %v1495, %v1494
        %v1519 = vpack.c.b16 %v1497, %v1496
        %v1520 = vpack.c.b16 %v1499, %v1498
        %v1521 = vpack.c.b16 %v1501, %v1500
        %v1522 = vpack.c.b16 %v1503, %v1502
        %v1523 = vpack.c.b16 %v1505, %v1504
        %v1524 = vpack.c.b16 %v1507, %v1506
        %v1525 = vpack.c.b16 %v1509, %v1508
        %v1526 = vpack.c.b16 %v1511, %v1510
        %v1527 = vpack.c.b16 %v1513, %v1512
        %v1528 = vpack.c.b16 %v1515, %v1514
        %1542 = vmatpush.bf16.msra.mxu0 %v788
        %1543 = vmatpush.bf16.msra.mxu0 %v787
        %1544 = vmatpush.bf16.msra.mxu0 %v786
        %1545 = vmatpush.bf16.msra.mxu0 %v785
        %1546 = vmatpush.bf16.msra.mxu0 %v784
        %1547 = vmatpush.bf16.msra.mxu0 %v783
        %1548 = vmatpush.bf16.msra.mxu0 %v782
        %1549 = vmatpush.bf16.msra.mxu0 %v781
        %1550 = vmatmul.bf16.gmra.mxu0 %v1516
        %v1551 = vpop.f32.mrf.mxu0
        %v1552 = vadd.f32 0.0, %v1551
        %v1553 = vpop.f32.mrf.mxu0
        %v1554 = vadd.f32 0.0, %v1553
        %1555 = vmatmul.bf16.gmra.mxu0 %v1517
        %v1556 = vpop.f32.mrf.mxu0
        %v1557 = vadd.f32 0.0, %v1556
        %v1558 = vpop.f32.mrf.mxu0
        %v1559 = vadd.f32 0.0, %v1558
        %1560 = vmatmul.bf16.gmra.mxu0 %v1518
        %v1561 = vpop.f32.mrf.mxu0
        %v1562 = vadd.f32 0.0, %v1561
        %v1563 = vpop.f32.mrf.mxu0
        %v1564 = vadd.f32 0.0, %v1563
        %1565 = vmatmul.bf16.gmra.mxu0 %v1519
        %v1566 = vpop.f32.mrf.mxu0
        %v1567 = vadd.f32 0.0, %v1566
        %v1568 = vpop.f32.mrf.mxu0
        %v1569 = vadd.f32 0.0, %v1568
        %1570 = vmatmul.bf16.gmra.mxu0 %v1520
        %v1571 = vpop.f32.mrf.mxu0
        %v1572 = vadd.f32 0.0, %v1571
        %v1573 = vpop.f32.mrf.mxu0
        %v1574 = vadd.f32 0.0, %v1573
        %1575 = vmatmul.bf16.gmra.mxu0 %v1521
        %v1576 = vpop.f32.mrf.mxu0
        %v1577 = vadd.f32 0.0, %v1576
        %v1578 = vpop.f32.mrf.mxu0
        %v1579 = vadd.f32 0.0, %v1578
        %1580 = vmatmul.bf16.gmra.mxu0 %v1522
        %v1581 = vpop.f32.mrf.mxu0
        %v1582 = vadd.f32 0.0, %v1581
        %v1583 = vpop.f32.mrf.mxu0
        %v1584 = vadd.f32 0.0, %v1583
        %1585 = vmatmul.bf16.gmra.mxu0 %v1523
        %v1586 = vpop.f32.mrf.mxu0
        %v1587 = vadd.f32 0.0, %v1586
        %v1588 = vpop.f32.mrf.mxu0
        %v1589 = vadd.f32 0.0, %v1588
        %1590 = vmatmul.bf16.gmra.mxu0 %v1524
        %v1591 = vpop.f32.mrf.mxu0
        %v1592 = vadd.f32 0.0, %v1591
        %v1593 = vpop.f32.mrf.mxu0
        %v1594 = vadd.f32 0.0, %v1593
        %1595 = vmatmul.bf16.gmra.mxu0 %v1525
        %v1596 = vpop.f32.mrf.mxu0
        %v1597 = vadd.f32 0.0, %v1596
        %v1598 = vpop.f32.mrf.mxu0
        %v1599 = vadd.f32 0.0, %v1598
        %1600 = vmatmul.bf16.gmra.mxu0 %v1526
        %v1601 = vpop.f32.mrf.mxu0
        %v1602 = vadd.f32 0.0, %v1601
        %v1603 = vpop.f32.mrf.mxu0
        %v1604 = vadd.f32 0.0, %v1603
        %1605 = vmatmul.bf16.gmra.mxu0 %v1527
        %v1606 = vpop.f32.mrf.mxu0
        %v1607 = vadd.f32 0.0, %v1606
        %v1608 = vpop.f32.mrf.mxu0
        %v1609 = vadd.f32 0.0, %v1608
        %1610 = vmatmul.bf16.gmra.mxu0 %v1528
        %v1611 = vpop.f32.mrf.mxu0
        %v1612 = vadd.f32 0.0, %v1611
        %v1613 = vpop.f32.mrf.mxu0
        %v1614 = vadd.f32 0.0, %v1613
        %1615 = vdwg.mxu0
        %v1616 = vmax.f32 %v1411, %v1552
        %v1617 = vmax.f32 %v1412, %v1554
        %v1618 = vmax.f32 %v1413, %v1557
        %v1619 = vmax.f32 %v1414, %v1559
        %v1620 = vmax.f32 %v1415, %v1562
        %v1621 = vmax.f32 %v1416, %v1564
        %v1622 = vmax.f32 %v1417, %v1567
        %v1623 = vmax.f32 %v1418, %v1569
        %v1624 = vmax.f32 %v1419, %v1572
        %v1625 = vmax.f32 %v1420, %v1574
        %v1626 = vmax.f32 %v1421, %v1577
        %v1627 = vmax.f32 %v1422, %v1579
        %v1628 = vmax.f32 %v1423, %v1582
        %v1629 = vmax.f32 %v1424, %v1584
        %v1630 = vmax.f32 %v1425, %v1587
        %v1631 = vmax.f32 %v1426, %v1589
        %v1632 = vmax.f32 %v1427, %v1592
        %v1633 = vmax.f32 %v1428, %v1594
        %v1634 = vmax.f32 %v1429, %v1597
        %v1635 = vmax.f32 %v1430, %v1599
        %v1636 = vmax.f32 %v1431, %v1602
        %v1637 = vmax.f32 %v1432, %v1604
        %v1638 = vmax.f32 %v1433, %v1607
        %v1639 = vmax.f32 %v1434, %v1609
        %v1640 = vmax.f32 %v1435, %v1612
        %v1641 = vmax.f32 %v1436, %v1614
        %1642 = vst [vmem:[#allocation2] sm:$0xff] %v1616
        %1643 = vst [vmem:[#allocation2 + $0x8] sm:$0xff] %v1617
        %1644 = vst [vmem:[#allocation2 + $0x10] sm:$0xff] %v1618
        %1645 = vst [vmem:[#allocation2 + $0x18] sm:$0xff] %v1619
        %1646 = vst [vmem:[#allocation2 + $0x20] sm:$0xff] %v1620
        %1647 = vst [vmem:[#allocation2 + $0x28] sm:$0xff] %v1621
        %1648 = vst [vmem:[#allocation2 + $0x30] sm:$0xff] %v1622
        %1649 = vst [vmem:[#allocation2 + $0x38] sm:$0xff] %v1623
        %1650 = vst [vmem:[#allocation2 + $0x40] sm:$0xff] %v1624
        %1651 = vst [vmem:[#allocation2 + $0x48] sm:$0xff] %v1625
        %1652 = vst [vmem:[#allocation2 + $0x50] sm:$0xff] %v1626
        %1653 = vst [vmem:[#allocation2 + $0x58] sm:$0xff] %v1627
        %1654 = vst [vmem:[#allocation2 + $0x60] sm:$0xff] %v1628
        %1655 = vst [vmem:[#allocation2 + $0x68] sm:$0xff] %v1629
        %1656 = vst [vmem:[#allocation2 + $0x70] sm:$0xff] %v1630
        %1657 = vst [vmem:[#allocation2 + $0x78] sm:$0xff] %v1631
        %1658 = vst [vmem:[#allocation2 + $0x80] sm:$0xff] %v1632
        %1659 = vst [vmem:[#allocation2 + $0x88] sm:$0xff] %v1633
        %1660 = vst [vmem:[#allocation2 + $0x90] sm:$0xff] %v1634
        %1661 = vst [vmem:[#allocation2 + $0x98] sm:$0xff] %v1635
        %1662 = vst [vmem:[#allocation2 + $0xa0] sm:$0xff] %v1636
        %1663 = vst [vmem:[#allocation2 + $0xa8] sm:$0xff] %v1637
        %1664 = vst [vmem:[#allocation2 + $0xb0] sm:$0xff] %v1638
        %1665 = vst [vmem:[#allocation2 + $0xb8] sm:$0xff] %v1639
        %1666 = vst [vmem:[#allocation2 + $0xc0] sm:$0xff] %v1640
        %1667 = vst [vmem:[#allocation2 + $0xc8] sm:$0xff] %v1641
        %v1668 = vld [vmem:[#allocation2] sm:$0xff]
        %v1669 = vld [vmem:[#allocation2 + $0x8] sm:$0xff]
        %v1670 = vld [vmem:[#allocation2 + $0x10] sm:$0xff]
        %v1671 = vld [vmem:[#allocation2 + $0x18] sm:$0xff]
        %v1672 = vld [vmem:[#allocation2 + $0x20] sm:$0xff]
        %v1673 = vld [vmem:[#allocation2 + $0x28] sm:$0xff]
        %v1674 = vld [vmem:[#allocation2 + $0x30] sm:$0xff]
        %v1675 = vld [vmem:[#allocation2 + $0x38] sm:$0xff]
        %v1676 = vld [vmem:[#allocation2 + $0x40] sm:$0xff]
        %v1677 = vld [vmem:[#allocation2 + $0x48] sm:$0xff]
        %v1678 = vld [vmem:[#allocation2 + $0x50] sm:$0xff]
        %v1679 = vld [vmem:[#allocation2 + $0x58] sm:$0xff]
        %v1680 = vld [vmem:[#allocation2 + $0x60] sm:$0xff]
        %v1681 = vld [vmem:[#allocation2 + $0x68] sm:$0xff]
        %v1682 = vld [vmem:[#allocation2 + $0x70] sm:$0xff]
        %v1683 = vld [vmem:[#allocation2 + $0x78] sm:$0xff]
        %v1684 = vld [vmem:[#allocation2 + $0x80] sm:$0xff]
        %v1685 = vld [vmem:[#allocation2 + $0x88] sm:$0xff]
        %v1686 = vld [vmem:[#allocation2 + $0x90] sm:$0xff]
        %v1687 = vld [vmem:[#allocation2 + $0x98] sm:$0xff]
        %v1688 = vld [vmem:[#allocation2 + $0xa0] sm:$0xff]
        %v1689 = vld [vmem:[#allocation2 + $0xa8] sm:$0xff]
        %v1690 = vld [vmem:[#allocation2 + $0xb0] sm:$0xff]
        %v1691 = vld [vmem:[#allocation2 + $0xb8] sm:$0xff]
        %v1692 = vld [vmem:[#allocation2 + $0xc0] sm:$0xff]
        %v1693 = vld [vmem:[#allocation2 + $0xc8] sm:$0xff]
        %v1694 = vld [vmem:[%s2] sm:$0x1]
        %v1696 = vperm.slane %v1694, 0
        %v1698 = vadd.f32 %v1668, %v1696
        %v1699 = vadd.f32 %v1669, %v1696
        %v1700 = vadd.f32 %v1670, %v1696
        %v1701 = vadd.f32 %v1671, %v1696
        %v1702 = vadd.f32 %v1672, %v1696
        %v1703 = vadd.f32 %v1673, %v1696
        %v1704 = vadd.f32 %v1674, %v1696
        %v1705 = vadd.f32 %v1675, %v1696
        %v1706 = vadd.f32 %v1676, %v1696
        %v1707 = vadd.f32 %v1677, %v1696
        %v1708 = vadd.f32 %v1678, %v1696
        %v1709 = vadd.f32 %v1679, %v1696
        %v1710 = vadd.f32 %v1680, %v1696
        %v1711 = vadd.f32 %v1681, %v1696
        %v1712 = vadd.f32 %v1682, %v1696
        %v1713 = vadd.f32 %v1683, %v1696
        %v1714 = vadd.f32 %v1684, %v1696
        %v1715 = vadd.f32 %v1685, %v1696
        %v1716 = vadd.f32 %v1686, %v1696
        %v1717 = vadd.f32 %v1687, %v1696
        %v1718 = vadd.f32 %v1688, %v1696
        %v1719 = vadd.f32 %v1689, %v1696
        %v1720 = vadd.f32 %v1690, %v1696
        %v1721 = vadd.f32 %v1691, %v1696
        %v1722 = vadd.f32 %v1692, %v1696
        %v1723 = vadd.f32 %v1693, %v1696
        %v1724 = vmax.f32 %v1698, 0.0
        %v1725 = vmax.f32 %v1699, 0.0
        %v1726 = vmax.f32 %v1700, 0.0
        %v1727 = vmax.f32 %v1701, 0.0
        %v1728 = vmax.f32 %v1702, 0.0
        %v1729 = vmax.f32 %v1703, 0.0
        %v1730 = vmax.f32 %v1704, 0.0
        %v1731 = vmax.f32 %v1705, 0.0
        %v1732 = vmax.f32 %v1706, 0.0
        %v1733 = vmax.f32 %v1707, 0.0
        %v1734 = vmax.f32 %v1708, 0.0
        %v1735 = vmax.f32 %v1709, 0.0
        %v1736 = vmax.f32 %v1710, 0.0
        %v1737 = vmax.f32 %v1711, 0.0
        %v1738 = vmax.f32 %v1712, 0.0
        %v1739 = vmax.f32 %v1713, 0.0
        %v1740 = vmax.f32 %v1714, 0.0
        %v1741 = vmax.f32 %v1715, 0.0
        %v1742 = vmax.f32 %v1716, 0.0
        %v1743 = vmax.f32 %v1717, 0.0
        %v1744 = vmax.f32 %v1718, 0.0
        %v1745 = vmax.f32 %v1719, 0.0
        %v1746 = vmax.f32 %v1720, 0.0
        %v1747 = vmax.f32 %v1721, 0.0
        %v1748 = vmax.f32 %v1722, 0.0
        %v1749 = vmax.f32 %v1723, 0.0
        %v1750 = vpack.c.bf16 %v1724, %v1724
        %v1751 = vpack.c.bf16 %v1725, %v1725
        %v1752 = vpack.c.bf16 %v1726, %v1726
        %v1753 = vpack.c.bf16 %v1727, %v1727
        %v1754 = vpack.c.bf16 %v1728, %v1728
        %v1755 = vpack.c.bf16 %v1729, %v1729
        %v1756 = vpack.c.bf16 %v1730, %v1730
        %v1757 = vpack.c.bf16 %v1731, %v1731
        %v1758 = vpack.c.bf16 %v1732, %v1732
        %v1759 = vpack.c.bf16 %v1733, %v1733
        %v1760 = vpack.c.bf16 %v1734, %v1734
        %v1761 = vpack.c.bf16 %v1735, %v1735
        %v1762 = vpack.c.bf16 %v1736, %v1736
        %v1763 = vpack.c.bf16 %v1737, %v1737
        %v1764 = vpack.c.bf16 %v1738, %v1738
        %v1765 = vpack.c.bf16 %v1739, %v1739
        %v1766 = vpack.c.bf16 %v1740, %v1740
        %v1767 = vpack.c.bf16 %v1741, %v1741
        %v1768 = vpack.c.bf16 %v1742, %v1742
        %v1769 = vpack.c.bf16 %v1743, %v1743
        %v1770 = vpack.c.bf16 %v1744, %v1744
        %v1771 = vpack.c.bf16 %v1745, %v1745
        %v1772 = vpack.c.bf16 %v1746, %v1746
        %v1773 = vpack.c.bf16 %v1747, %v1747
        %v1774 = vpack.c.bf16 %v1748, %v1748
        %v1775 = vpack.c.bf16 %v1749, %v1749
        %1776 = vst [vmem:[%s627] sm:$0xf] %v1750
        %1777 = vst [vmem:[%s627 + $0x4] sm:$0xf] %v1751
        %1778 = vst [vmem:[%s627 + $0x8] sm:$0xf] %v1752
        %1779 = vst [vmem:[%s627 + $0xc] sm:$0xf] %v1753
        %1780 = vst [vmem:[%s627 + $0x10] sm:$0xf] %v1754
        %1781 = vst [vmem:[%s627 + $0x14] sm:$0xf] %v1755
        %1782 = vst [vmem:[%s627 + $0x18] sm:$0xf] %v1756
        %1783 = vst [vmem:[%s627 + $0x1c] sm:$0xf] %v1757
        %1784 = vst [vmem:[%s627 + $0x20] sm:$0xf] %v1758
        %1785 = vst [vmem:[%s627 + $0x24] sm:$0xf] %v1759
        %1786 = vst [vmem:[%s627 + $0x28] sm:$0xf] %v1760
        %1787 = vst [vmem:[%s627 + $0x2c] sm:$0xf] %v1761
        %1788 = vst [vmem:[%s627 + $0x30] sm:$0xf] %v1762
        %1789 = vst [vmem:[%s627 + $0x34] sm:$0xf] %v1763
        %1790 = vst [vmem:[%s627 + $0x38] sm:$0xf] %v1764
        %1791 = vst [vmem:[%s627 + $0x3c] sm:$0xf] %v1765
        %1792 = vst [vmem:[%s627 + $0x40] sm:$0xf] %v1766
        %1793 = vst [vmem:[%s627 + $0x44] sm:$0xf] %v1767
        %1794 = vst [vmem:[%s627 + $0x48] sm:$0xf] %v1768
        %1795 = vst [vmem:[%s627 + $0x4c] sm:$0xf] %v1769
        %1796 = vst [vmem:[%s627 + $0x50] sm:$0xf] %v1770
        %1797 = vst [vmem:[%s627 + $0x54] sm:$0xf] %v1771
        %1798 = vst [vmem:[%s627 + $0x58] sm:$0xf] %v1772
        %1799 = vst [vmem:[%s627 + $0x5c] sm:$0xf] %v1773
        %1800 = vst [vmem:[%s627 + $0x60] sm:$0xf] %v1774
        %1801 = vst [vmem:[%s627 + $0x64] sm:$0xf] %v1775
        %s1802 = smul.u32 26, %s14
        %p1803 = scmp.lt.s32.totalorder %s1802, 51
        %s1804 = scalar_select %p1803, %s1802, 51
        %s1805 = smul.addr %s1804, 4
        %s1806 = scalar_lea.vmem %s3, %s1805
        // Predicated region
        $region74: #{net_forward.3} parent=68 // pred_check
          %p1807 = pneg %p100
        $region75: #{net_forward.3} parent=68 // pred_check_branch
          %1809 = sbr.rel (%p1807) target = $region77
        $region76: #{net_forward.3} parent=68 // pred_region
          %s1810 = smul.u32 26, %s14
        $region77: #{net_forward.3} parent=68 // pred_fallthru
          _
      $region69: #{net_forward.3} parent=5 // pred_fallthru
        _
      %p1811 = scmp.le.s32.totalorder 2, %s9
      // Predicated region
      $region78: #{net_forward.3} parent=5 // pred_check
        %p1812 = pneg %p1811
      $region79: #{net_forward.3} parent=5 // pred_check_branch
        %1814 = sbr.rel (%p1812) target = $region81
      $region80: #{net_forward.3} parent=5 // pred_region
        %s1815 = ssub.s32 %s9, 2
        // Predicated region
        $region82: #{net_forward.3} parent=80 // pred_check
          %p1816 = pneg %p106
        $region83: #{net_forward.3} parent=80 // pred_check_branch
          %1818 = sbr.rel (%p1816) target = $region85
        $region84: #{net_forward.3} parent=80 // pred_region
          %s1819 = smul.u32 26, %s15
          %p1820 = scmp.lt.s32.totalorder %s1819, 51
          %s1821 = scalar_select %p1820, %s1819, 51
          %s1822 = smul.addr %s1821, 4
          %s1823 = scalar_lea.vmem %s3, %s1822
        $region85: #{net_forward.3} parent=80 // pred_fallthru
          _
      $region81: #{net_forward.3} parent=5 // pred_fallthru
        _
    $region6: #{net_forward.3} parent=1 // loop_footer
      %s13 = sadd.s32 1, %s9
    $region7: #{net_forward.3} parent=1 // loop_footer_branch
      %8 = sbr.rel target = $region3
    $region8: #{net_forward.3} parent=1 // loop_exit
      _

// kernel: net_forward.4
$region0: #{net_forward.4}
  #allocation0 [shape = 'u32[]', space=smem, size = 0x4, offset = 0x4, fixed_abs, tag = 'smem constant byte address 0x4 - core index']
  #allocation1 [shape = 'u32[72,128]{1,0:T(1,128)}', space=vmem, size = 0x9000, scoped, tag = 'internal scratch']
  #allocation2 [shape = 'f32[32,128]{1,0:T(8,128)}', space=vmem, size = 0x4000, scoped, tag = 'scratch operand']
  %s0 = inlined_call_operand.vmem [shape: bf16[4,64,256], index: 0, kind: input, shape index: {}]
  %s1 = inlined_call_operand.vmem [shape: bf16[256,128], index: 1, kind: input, shape index: {}]
  %s2 = inlined_call_operand.vmem [shape: f32[1,128], index: 2, kind: input, shape index: {}]
  %s3 = inlined_call_operand.vmem [shape: bf16[64,128], index: 3, kind: output, shape index: {}]
  %s4 = sld [smem:[#allocation0]]
  $region83: #{net_forward.4} parent=0
    _
  %s6 = ssub.s32 1, %s4
  %s7 = scalar_select 0, %s6, %s4
  $region1: #{net_forward.4} parent=0
    #allocation3 [shape = 'u8[131072]{0}', space=vmem, size = 0x20000, scoped, tag = 'input window, operand 0']
    loop: start=0, step=1, limit=4
    $region2: #{net_forward.4} parent=1 // loop_pre_header
      _
    $region3: #{net_forward.4} parent=1 // loop_header
      %s9 = sphi 0, %s13
      %p10 = scmp.ge.s32.totalorder %s9, 4
      %s19 = sphi 0, %s21
      %s22 = sphi 0, %s19
      %s23 = sphi 0, %s22
      %s39 = sphi 0, %s23
      %s43 = sphi 0, %s43
      %s45 = sphi 0, %s43
      %s46 = sphi 0, %s45
      %s60 = sphi 0, %s46
      %s64 = sphi 0, %s64
      %s66 = sphi 0, %s64
      %s67 = sphi 0, %s66
      %s81 = sphi 0, %s67
      %s87 = sphi 0, %s89
      %s90 = sphi 0, %s87
      %s91 = sphi 0, %s90
      %s107 = sphi 0, %s91
    $region4: #{net_forward.4} parent=1 // loop_header_branch
      %12 = sbr.rel (%p10) target = $region8
    $region5: #{net_forward.4} parent=1 // loop_body
      %s14 = ssub.s32 %s9, 1
      %s15 = ssub.s32 %s9, 2
      %s16 = sadd.s32 %s9, 1
      %s17 = ssub.s32 %s9, %s16
      %p18 = scmp.eq.s32.totalorder %s17, 0
      %s20 = sadd.s32 %s19, 1
      %s21 = scalar_select %p18, %s19, %s20
      %p24 = pneg %p18
      %p25 = scmp.eq.s32.totalorder %s9, 1
      %p26 = por %p24, %p25
      %p27 = scmp.ne.s32.totalorder %s19, %s22
      %p28 = scmp.eq.s32.totalorder %s9, 0
      %p29 = por %p27, %p28
      %p30 = scmp.ne.s32.totalorder %s19, %s22
      %p31 = scmp.eq.s32.totalorder %s14, 1
      %p32 = por %p30, %p31
      %p33 = scmp.ne.s32.totalorder %s22, %s23
      %p34 = scmp.eq.s32.totalorder %s14, 0
      %p35 = por %p33, %p34
      %p36 = scmp.ne.s32.totalorder %s22, %s23
      %p37 = scmp.eq.s32.totalorder %s15, 1
      %p38 = por %p36, %p37
      %p40 = scmp.ne.s32.totalorder %s23, %s39
      %p41 = scmp.eq.s32.totalorder %s15, 0
      %p42 = por %p40, %p41
      %s44 = sadd.s32 %s43, 1
      %p47 = scmp.eq.s32.totalorder %s9, 1
      %p48 = scmp.ne.s32.totalorder %s43, %s45
      %p49 = scmp.eq.s32.totalorder %s9, 0
      %p50 = por %p48, %p49
      %p51 = scmp.ne.s32.totalorder %s43, %s45
      %p52 = scmp.eq.s32.totalorder %s14, 1
      %p53 = por %p51, %p52
      %p54 = scmp.ne.s32.totalorder %s45, %s46
      %p55 = scmp.eq.s32.totalorder %s14, 0
      %p56 = por %p54, %p55
      %p57 = scmp.ne.s32.totalorder %s45, %s46
      %p58 = scmp.eq.s32.totalorder %s15, 1
      %p59 = por %p57, %p58
      %p61 = scmp.ne.s32.totalorder %s46, %s60
      %p62 = scmp.eq.s32.totalorder %s15, 0
      %p63 = por %p61, %p62
      %s65 = sadd.s32 %s64, 1
      %p68 = scmp.eq.s32.totalorder %s9, 1
      %p69 = scmp.ne.s32.totalorder %s64, %s66
      %p70 = scmp.eq.s32.totalorder %s9, 0
      %p71 = por %p69, %p70
      %p72 = scmp.ne.s32.totalorder %s64, %s66
      %p73 = scmp.eq.s32.totalorder %s14, 1
      %p74 = por %p72, %p73
      %p75 = scmp.ne.s32.totalorder %s66, %s67
      %p76 = scmp.eq.s32.totalorder %s14, 0
      %p77 = por %p75, %p76
      %p78 = scmp.ne.s32.totalorder %s66, %s67
      %p79 = scmp.eq.s32.totalorder %s15, 1
      %p80 = por %p78, %p79
      %p82 = scmp.ne.s32.totalorder %s67, %s81
      %p83 = scmp.eq.s32.totalorder %s15, 0
      %p84 = por %p82, %p83
      %s85 = ssub.s32 %s9, %s16
      %p86 = scmp.eq.s32.totalorder %s85, 0
      %s88 = sadd.s32 %s87, 1
      %s89 = scalar_select %p86, %s87, %s88
      %p92 = pneg %p86
      %p93 = scmp.eq.s32.totalorder %s9, 1
      %p94 = por %p92, %p93
      %p95 = scmp.ne.s32.totalorder %s87, %s90
      %p96 = scmp.eq.s32.totalorder %s9, 0
      %p97 = por %p95, %p96
      %p98 = scmp.ne.s32.totalorder %s87, %s90
      %p99 = scmp.eq.s32.totalorder %s14, 1
      %p100 = por %p98, %p99
      %p101 = scmp.ne.s32.totalorder %s90, %s91
      %p102 = scmp.eq.s32.totalorder %s14, 0
      %p103 = por %p101, %p102
      %p104 = scmp.ne.s32.totalorder %s90, %s91
      %p105 = scmp.eq.s32.totalorder %s15, 1
      %p106 = por %p104, %p105
      %p108 = scmp.ne.s32.totalorder %s91, %s107
      %p109 = scmp.eq.s32.totalorder %s15, 0
      %p110 = por %p108, %p109
      %p111 = scmp.le.s32.totalorder 1, %s9
      %p112 = scmp.lt.s32.totalorder %s9, 3
      %p113 = pnand %p111, %p112
      %p114 = pneg %p113
      // Predicated region
      $region9: #{net_forward.4} parent=5 // pred_check
        _
      $region10: #{net_forward.4} parent=5 // pred_check_branch
        %116 = sbr.rel (%p113) target = $region12
      $region11: #{net_forward.4} parent=5 // pred_region
        %s117 = ssub.s32 %s9, 1
        // Predicated region
        $region13: #{net_forward.4} parent=11 // pred_check
          %p118 = pneg %p56
        $region14: #{net_forward.4} parent=11 // pred_check_branch
          %120 = sbr.rel (%p118) target = $region16
        $region15: #{net_forward.4} parent=11 // pred_region
          _
        $region16: #{net_forward.4} parent=11 // pred_fallthru
          _
        // Predicated region
        $region17: #{net_forward.4} parent=11 // pred_check
          %p121 = pneg %p77
        $region18: #{net_forward.4} parent=11 // pred_check_branch
          %123 = sbr.rel (%p121) target = $region20
        $region19: #{net_forward.4} parent=11 // pred_region
          _
        $region20: #{net_forward.4} parent=11 // pred_fallthru
          _
      $region12: #{net_forward.4} parent=5 // pred_fallthru
        _
      %p124 = scmp.lt.s32.totalorder %s9, 2
      // Predicated region
      $region21: #{net_forward.4} parent=5 // pred_check
        %p125 = pneg %p124
      $region22: #{net_forward.4} parent=5 // pred_check_branch
        %127 = sbr.rel (%p125) target = $region24
      $region23: #{net_forward.4} parent=5 // pred_region
        // Predicated region
        $region25: #{net_forward.4} parent=23 // pred_check
          %p128 = pneg %p29
        $region26: #{net_forward.4} parent=23 // pred_check_branch
          %130 = sbr.rel (%p128) target = $region28
        $region27: #{net_forward.4} parent=23 // pred_region
          %s131 = sand.u32 %s19, 1
          %s132 = sand.u32 %s19, 1
          %s133 = smul.addr %s132, 128
          %s134 = scalar_lea.vmem [#allocation3], %s133
          %s135 = smul.u32 4, %s9
          %s136 = smul.addr %s135, 2
          %s137 = smul.addr %s136, 4
          %s138 = scalar_lea.vmem %s0, %s137
          // Predicated region
          $region29: #{net_forward.4} parent=27 // pred_check
            _
          $region30: #{net_forward.4} parent=27 // pred_check_branch
            %140 = sbr.rel (0) target = $region32
          $region31: #{net_forward.4} parent=27 // pred_region
            // Predicated region
            $region33: #{net_forward.4} parent=31 // pred_check
              _
            $region34: #{net_forward.4} parent=31 // pred_check_branch
              %142 = sbr.rel (0) target = $region36
            $region35: #{net_forward.4} parent=31 // pred_region
              // Predicated region
              $region48: #{net_forward.4} parent=35 // pred_check
                _
              $region49: #{net_forward.4} parent=35 // pred_check_branch
                %188 = sbr.rel (0) target = $region51
              $region50: #{net_forward.4} parent=35 // pred_region
                loop: start=0, step=1, limit=1
                $region52: #{net_forward.4} parent=50 // loop_pre_header
                  _
                $region53: #{net_forward.4} parent=50 // loop_header
                  %s190 = sphi 0, %s194
                  %p191 = scmp.ge.s32.totalorder %s190, 1
                  %s195 = sphi %s138, %s138
                  %s196 = sphi %s134, %s134
                $region54: #{net_forward.4} parent=50 // loop_header_branch
                  %193 = sbr.rel (%p191) target = $region58
                $region55: #{net_forward.4} parent=50 // loop_body
                  %v197 = vld [vmem:[%s195] sm:$0xff]
                  %198 = vst [vmem:[%s196] sm:$0xff] %v197
                  %v199 = vld [vmem:[%s195 + $0x8] sm:$0xff]
                  %200 = vst [vmem:[%s196 + $0x8] sm:$0xff] %v199
                  %v201 = vld [vmem:[%s195 + $0x10] sm:$0xff]
                  %202 = vst [vmem:[%s196 + $0x10] sm:$0xff] %v201
                  %v203 = vld [vmem:[%s195 + $0x18] sm:$0xff]
                  %204 = vst [vmem:[%s196 + $0x18] sm:$0xff] %v203
                  %v205 = vld [vmem:[%s195 + $0x40] sm:$0xff]
                  %206 = vst [vmem:[%s196 + $0x20] sm:$0xff] %v205
                  %v207 = vld [vmem:[%s195 + $0x48] sm:$0xff]
                  %208 = vst [vmem:[%s196 + $0x28] sm:$0xff] %v207
                  %v209 = vld [vmem:[%s195 + $0x50] sm:$0xff]
                  %210 = vst [vmem:[%s196 + $0x30] sm:$0xff] %v209
                  %v211 = vld [vmem:[%s195 + $0x58] sm:$0xff]
                  %212 = vst [vmem:[%s196 + $0x38] sm:$0xff] %v211
                  %v213 = vld [vmem:[%s195 + $0x80] sm:$0xff]
                  %214 = vst [vmem:[%s196 + $0x40] sm:$0xff] %v213
                  %v215 = vld [vmem:[%s195 + $0x88] sm:$0xff]
                  %216 = vst [vmem:[%s196 + $0x48] sm:$0xff] %v215
                  %v217 = vld [vmem:[%s195 + $0x90] sm:$0xff]
                  %218 = vst [vmem:[%s196 + $0x50] sm:$0xff] %v217
                  %v219 = vld [vmem:[%s195 + $0x98] sm:$0xff]
                  %220 = vst [vmem:[%s196 + $0x58] sm:$0xff] %v219
                  %v221 = vld [vmem:[%s195 + $0xc0] sm:$0xff]
                  %222 = vst [vmem:[%s196 + $0x60] sm:$0xff] %v221
                  %v223 = vld [vmem:[%s195 + $0xc8] sm:$0xff]
                  %224 = vst [vmem:[%s196 + $0x68] sm:$0xff] %v223
                  %v225 = vld [vmem:[%s195 + $0xd0] sm:$0xff]
                  %226 = vst [vmem:[%s196 + $0x70] sm:$0xff] %v225
                  %v227 = vld [vmem:[%s195 + $0xd8] sm:$0xff]
                  %228 = vst [vmem:[%s196 + $0x78] sm:$0xff] %v227
                $region56: #{net_forward.4} parent=50 // loop_footer
                  %s194 = sadd.s32 1, %s190
                $region57: #{net_forward.4} parent=50 // loop_footer_branch
                  %189 = sbr.rel target = $region53
                $region58: #{net_forward.4} parent=50 // loop_exit
                  _
              $region51: #{net_forward.4} parent=35 // pred_fallthru
                _
              // Predicated region
              $region59: #{net_forward.4} parent=35 // pred_check
                _
              $region60: #{net_forward.4} parent=35 // pred_check_branch
                %230 = sbr.rel target = $region62
              $region61: #{net_forward.4} parent=35 // pred_region
                _
              $region62: #{net_forward.4} parent=35 // pred_fallthru
                _
            $region36: #{net_forward.4} parent=31 // pred_fallthru
              _
            // Predicated region
            $region37: #{net_forward.4} parent=31 // pred_check
              _
            $region38: #{net_forward.4} parent=31 // pred_check_branch
              %144 = sbr.rel target = $region40
            $region39: #{net_forward.4} parent=31 // pred_region
              %s146 = ssub.s32 256, 1
              loop: start=0, step=1, limit=1
              $region41: #{net_forward.4} parent=39 // loop_pre_header
                _
              $region42: #{net_forward.4} parent=39 // loop_header
                %s148 = sphi 0, %s152
                %p149 = scmp.ge.s32.totalorder %s148, 1
                %s153 = sphi %s138, %s138
                %s154 = sphi %s134, %s134
              $region43: #{net_forward.4} parent=39 // loop_header_branch
                %151 = sbr.rel (%p149) target = $region47
              $region44: #{net_forward.4} parent=39 // loop_body
                %v155 = vld [vmem:[%s153] sm:%s146]
                %156 = vst [vmem:[%s154] sm:%s146] %v155
                %v157 = vld [vmem:[%s153 + $0x8] sm:%s146]
                %158 = vst [vmem:[%s154 + $0x8] sm:%s146] %v157
                %v159 = vld [vmem:[%s153 + $0x10] sm:%s146]
                %160 = vst [vmem:[%s154 + $0x10] sm:%s146] %v159
                %v161 = vld [vmem:[%s153 + $0x18] sm:%s146]
                %162 = vst [vmem:[%s154 + $0x18] sm:%s146] %v161
                %v163 = vld [vmem:[%s153 + $0x40] sm:%s146]
                %164 = vst [vmem:[%s154 + $0x20] sm:%s146] %v163
                %v165 = vld [vmem:[%s153 + $0x48] sm:%s146]
                %166 = vst [vmem:[%s154 + $0x28] sm:%s146] %v165
                %v167 = vld [vmem:[%s153 + $0x50] sm:%s146]
                %168 = vst [vmem:[%s154 + $0x30] sm:%s146] %v167
                %v169 = vld [vmem:[%s153 + $0x58] sm:%s146]
                %170 = vst [vmem:[%s154 + $0x38] sm:%s146] %v169
                %v171 = vld [vmem:[%s153 + $0x80] sm:%s146]
                %172 = vst [vmem:[%s154 + $0x40] sm:%s146] %v171
                %v173 = vld [vmem:[%s153 + $0x88] sm:%s146]
                %174 = vst [vmem:[%s154 + $0x48] sm:%s146] %v173
                %v175 = vld [vmem:[%s153 + $0x90] sm:%s146]
                %176 = vst [vmem:[%s154 + $0x50] sm:%s146] %v175
                %v177 = vld [vmem:[%s153 + $0x98] sm:%s146]
                %178 = vst [vmem:[%s154 + $0x58] sm:%s146] %v177
                %v179 = vld [vmem:[%s153 + $0xc0] sm:%s146]
                %180 = vst [vmem:[%s154 + $0x60] sm:%s146] %v179
                %v181 = vld [vmem:[%s153 + $0xc8] sm:%s146]
                %182 = vst [vmem:[%s154 + $0x68] sm:%s146] %v181
                %v183 = vld [vmem:[%s153 + $0xd0] sm:%s146]
                %184 = vst [vmem:[%s154 + $0x70] sm:%s146] %v183
                %v185 = vld [vmem:[%s153 + $0xd8] sm:%s146]
                %186 = vst [vmem:[%s154 + $0x78] sm:%s146] %v185
              $region45: #{net_forward.4} parent=39 // loop_footer
                %s152 = sadd.s32 1, %s148
              $region46: #{net_forward.4} parent=39 // loop_footer_branch
                %147 = sbr.rel target = $region42
              $region47: #{net_forward.4} parent=39 // loop_exit
                _
            $region40: #{net_forward.4} parent=31 // pred_fallthru
              _
          $region32: #{net_forward.4} parent=27 // pred_fallthru
            _
          %231 = vnop
        $region28: #{net_forward.4} parent=23 // pred_fallthru
          _
      $region24: #{net_forward.4} parent=5 // pred_fallthru
        _
      %p232 = scmp.le.s32.totalorder 1, %s9
      %p233 = scmp.lt.s32.totalorder %s9, 3
      %p234 = pnand %p232, %p233
      %p235 = pneg %p234
      // Predicated region
      $region63: #{net_forward.4} parent=5 // pred_check
        _
      $region64: #{net_forward.4} parent=5 // pred_check_branch
        %237 = sbr.rel (%p234) target = $region66
      $region65: #{net_forward.4} parent=5 // pred_region
        %s238 = ssub.s32 %s9, 1
        %s239 = sand.u32 %s22, 1
        %s240 = sand.u32 %s22, 1
        %s241 = smul.addr %s240, 128
        %s242 = scalar_lea.vmem [#allocation3], %s241
        // Predicated region
        $region67: #{net_forward.4} parent=65 // pred_check
          %p243 = pneg %p35
        $region68: #{net_forward.4} parent=65 // pred_check_branch
          %245 = sbr.rel (%p243) target = $region70
        $region69: #{net_forward.4} parent=65 // pred_region
          _
        $region70: #{net_forward.4} parent=65 // pred_fallthru
          _
        %s246 = sand.u32 %s22, 1
        %s247 = sand.u32 %s22, 1
        %s248 = smul.addr %s247, 128
        %s249 = scalar_lea.vmem [#allocation3], %s248
        %p250 = pneg %p35
        %p251 = pneg %p32
        %p252 = pneg %p56
        %p253 = pneg %p53
        %p254 = pneg %p77
        %p255 = pneg %p74
        %p256 = pneg %p103
        %p257 = pneg %p100
        %s258 = smul.u32 4, %s14
        %p259 = scmp.lt.s32.totalorder %s258, 7
        %s260 = scalar_select %p259, %s258, 7
        %s261 = smul.addr %s260, 4
        %s262 = scalar_lea.vmem %s3, %s261
        %s263 = smul.u32 4, %s14
        %s264 = smul.u32 4, %s14
        %p265 = scmp.lt.s32.totalorder %s264, 7
        %s266 = scalar_select %p265, %s264, 7
        %s267 = smul.addr %s266, 4
        %s268 = scalar_lea.vmem %s3, %s267
        %s269 = smul.u32 4, %s14
        %v270 = vld [vmem:[%s1] sm:$0xf]
        %v271 = vld [vmem:[%s1 + $0x4] sm:$0xf]
        %v272 = vld [vmem:[%s1 + $0x8] sm:$0xf]
        %v273 = vld [vmem:[%s1 + $0xc] sm:$0xf]
        %v274 = vld [vmem:[%s1 + $0x10] sm:$0xf]
        %v275 = vld [vmem:[%s1 + $0x14] sm:$0xf]
        %v276 = vld [vmem:[%s1 + $0x18] sm:$0xf]
        %v277 = vld [vmem:[%s1 + $0x1c] sm:$0xf]
        %v278 = vld [vmem:[%s1 + $0x20] sm:$0xf]
        %v279 = vld [vmem:[%s1 + $0x24] sm:$0xf]
        %v280 = vld [vmem:[%s1 + $0x28] sm:$0xf]
        %v281 = vld [vmem:[%s1 + $0x2c] sm:$0xf]
        %v282 = vld [vmem:[%s1 + $0x30] sm:$0xf]
        %v283 = vld [vmem:[%s1 + $0x34] sm:$0xf]
        %v284 = vld [vmem:[%s1 + $0x38] sm:$0xf]
        %v285 = vld [vmem:[%s1 + $0x3c] sm:$0xf]
        %v286 = vld [vmem:[%s1 + $0x40] sm:$0xf]
        %v287 = vld [vmem:[%s1 + $0x44] sm:$0xf]
        %v288 = vld [vmem:[%s1 + $0x48] sm:$0xf]
        %v289 = vld [vmem:[%s1 + $0x4c] sm:$0xf]
        %v290 = vld [vmem:[%s1 + $0x50] sm:$0xf]
        %v291 = vld [vmem:[%s1 + $0x54] sm:$0xf]
        %v292 = vld [vmem:[%s1 + $0x58] sm:$0xf]
        %v293 = vld [vmem:[%s1 + $0x5c] sm:$0xf]
        %v294 = vld [vmem:[%s1 + $0x60] sm:$0xf]
        %v295 = vld [vmem:[%s1 + $0x64] sm:$0xf]
        %v296 = vld [vmem:[%s1 + $0x68] sm:$0xf]
        %v297 = vld [vmem:[%s1 + $0x6c] sm:$0xf]
        %v298 = vld [vmem:[%s1 + $0x70] sm:$0xf]
        %v299 = vld [vmem:[%s1 + $0x74] sm:$0xf]
        %v300 = vld [vmem:[%s1 + $0x78] sm:$0xf]
        %v301 = vld [vmem:[%s1 + $0x7c] sm:$0xf]
        %v302 = vld [vmem:[%s242] sm:$0xff]
        %v303 = vld [vmem:[%s242 + $0x8] sm:$0xff]
        %v304 = vld [vmem:[%s242 + $0x10] sm:$0xff]
        %v305 = vld [vmem:[%s242 + $0x18] sm:$0xff]
        %v310 = vunpack.c.l.b16 %v302
        %v311 = vunpack.c.h.b16 %v302
        %v312 = vunpack.c.l.b16 %v303
        %v313 = vunpack.c.h.b16 %v303
        %v314 = vunpack.c.l.b16 %v304
        %v315 = vunpack.c.h.b16 %v304
        %v316 = vunpack.c.l.b16 %v305
        %v317 = vunpack.c.h.b16 %v305
        %v318 = vpack.c.b16 %v312, %v310
        %v319 = vpack.c.b16 %v313, %v311
        %v320 = vpack.c.b16 %v316, %v314
        %v321 = vpack.c.b16 %v317, %v315
        %v358 = vunpack.c.l.b16 %v270
        %v359 = vunpack.c.l.b16 %v271
        %v360 = vunpack.c.l.b16 %v272
        %v361 = vunpack.c.l.b16 %v273
        %v362 = vunpack.c.l.b16 %v274
        %v363 = vunpack.c.l.b16 %v275
        %v364 = vunpack.c.l.b16 %v276
        %v365 = vunpack.c.l.b16 %v277
        %v366 = vunpack.c.l.b16 %v278
        %v367 = vunpack.c.l.b16 %v279
        %v368 = vunpack.c.l.b16 %v280
        %v369 = vunpack.c.l.b16 %v281
        %v370 = vunpack.c.l.b16 %v282
        %v371 = vunpack.c.l.b16 %v283
        %v372 = vunpack.c.l.b16 %v284
        %v373 = vunpack.c.l.b16 %v285
        %v374 = vunpack.c.l.b16 %v286
        %v375 = vunpack.c.l.b16 %v287
        %v376 = vunpack.c.l.b16 %v288
        %v377 = vunpack.c.l.b16 %v289
        %v378 = vunpack.c.l.b16 %v290
        %v379 = vunpack.c.l.b16 %v291
        %v380 = vunpack.c.l.b16 %v292
        %v381 = vunpack.c.l.b16 %v293
        %v382 = vunpack.c.l.b16 %v294
        %v383 = vunpack.c.l.b16 %v295
        %v384 = vunpack.c.l.b16 %v296
        %v385 = vunpack.c.l.b16 %v297
        %v386 = vunpack.c.l.b16 %v298
        %v387 = vunpack.c.l.b16 %v299
        %v388 = vunpack.c.l.b16 %v300
        %v389 = vunpack.c.l.b16 %v301
        %v390 = vpack.c.b16 %v359, %v358
        %v391 = vpack.c.b16 %v361, %v360
        %v392 = vpack.c.b16 %v363, %v362
        %v393 = vpack.c.b16 %v365, %v364
        %v394 = vpack.c.b16 %v367, %v366
        %v395 = vpack.c.b16 %v369, %v368
        %v396 = vpack.c.b16 %v371, %v370
        %v397 = vpack.c.b16 %v373, %v372
        %v398 = vpack.c.b16 %v375, %v374
        %v399 = vpack.c.b16 %v377, %v376
        %v400 = vpack.c.b16 %v379, %v378
        %v401 = vpack.c.b16 %v381, %v380
        %v402 = vpack.c.b16 %v383, %v382
        %v403 = vpack.c.b16 %v385, %v384
        %v404 = vpack.c.b16 %v387, %v386
        %v405 = vpack.c.b16 %v389, %v388
        %422 = vmatpush.bf16.msra.mxu0 %v397
        %423 = vmatpush.bf16.msra.mxu0 %v396
        %424 = vmatpush.bf16.msra.mxu0 %v395
        %425 = vmatpush.bf16.msra.mxu0 %v394
        %426 = vmatpush.bf16.msra.mxu0 %v393
        %427 = vmatpush.bf16.msra.mxu0 %v392
        %428 = vmatpush.bf16.msra.mxu0 %v391
        %429 = vmatpush.bf16.msra.mxu0 %v390
        %430 = vmatmul.bf16.gmra.mxu0 %v318
        %v431 = vpop.f32.mrf.mxu0
        %v432 = vadd.f32 0.0, %v431
        %v433 = vpop.f32.mrf.mxu0
        %v434 = vadd.f32 0.0, %v433
        %435 = vmatmul.bf16.gmra.mxu0 %v320
        %v436 = vpop.f32.mrf.mxu0
        %v437 = vadd.f32 0.0, %v436
        %v438 = vpop.f32.mrf.mxu0
        %v439 = vadd.f32 0.0, %v438
        %440 = vdwg.mxu0
        %441 = vmatpush.bf16.msra.mxu0 %v405
        %442 = vmatpush.bf16.msra.mxu0 %v404
        %443 = vmatpush.bf16.msra.mxu0 %v403
        %444 = vmatpush.bf16.msra.mxu0 %v402
        %445 = vmatpush.bf16.msra.mxu0 %v401
        %446 = vmatpush.bf16.msra.mxu0 %v400
        %447 = vmatpush.bf16.msra.mxu0 %v399
        %448 = vmatpush.bf16.msra.mxu0 %v398
        %449 = vmatmul.bf16.gmra.mxu0 %v319
        %v450 = vpop.f32.mrf.mxu0
        %v451 = vadd.f32 %v432, %v450
        %v452 = vpop.f32.mrf.mxu0
        %v453 = vadd.f32 %v434, %v452
        %454 = vmatmul.bf16.gmra.mxu0 %v321
        %v455 = vpop.f32.mrf.mxu0
        %v456 = vadd.f32 %v437, %v455
        %v457 = vpop.f32.mrf.mxu0
        %v458 = vadd.f32 %v439, %v457
        %459 = vdwg.mxu0
        %460 = vst [vmem:[#allocation2] sm:$0xff] %v451
        %461 = vst [vmem:[#allocation2 + $0x8] sm:$0xff] %v453
        %462 = vst [vmem:[#allocation2 + $0x10] sm:$0xff] %v456
        %463 = vst [vmem:[#allocation2 + $0x18] sm:$0xff] %v458
        %v464 = vld [vmem:[#allocation2] sm:$0xff]
        %v465 = vld [vmem:[#allocation2 + $0x8] sm:$0xff]
        %v466 = vld [vmem:[#allocation2 + $0x10] sm:$0xff]
        %v467 = vld [vmem:[#allocation2 + $0x18] sm:$0xff]
        %s468 = scalar_lea.vmem %s242, 32 [#allocation3]
        %v469 = vld [vmem:[%s468] sm:$0xff]
        %v470 = vld [vmem:[%s468 + $0x8] sm:$0xff]
        %v471 = vld [vmem:[%s468 + $0x10] sm:$0xff]
        %v472 = vld [vmem:[%s468 + $0x18] sm:$0xff]
        %v477 = vunpack.c.l.b16 %v469
        %v478 = vunpack.c.h.b16 %v469
        %v479 = vunpack.c.l.b16 %v470
        %v480 = vunpack.c.h.b16 %v470
        %v481 = vunpack.c.l.b16 %v471
        %v482 = vunpack.c.h.b16 %v471
        %v483 = vunpack.c.l.b16 %v472
        %v484 = vunpack.c.h.b16 %v472
        %v485 = vpack.c.b16 %v479, %v477
        %v486 = vpack.c.b16 %v480, %v478
        %v487 = vpack.c.b16 %v483, %v481
        %v488 = vpack.c.b16 %v484, %v482
        %493 = vmatpush.bf16.msra.mxu0 %v397
        %494 = vmatpush.bf16.msra.mxu0 %v396
        %495 = vmatpush.bf16.msra.mxu0 %v395
        %496 = vmatpush.bf16.msra.mxu0 %v394
        %497 = vmatpush.bf16.msra.mxu0 %v393
        %498 = vmatpush.bf16.msra.mxu0 %v392
        %499 = vmatpush.bf16.msra.mxu0 %v391
        %500 = vmatpush.bf16.msra.mxu0 %v390
        %501 = vmatmul.bf16.gmra.mxu0 %v485
        %v502 = vpop.f32.mrf.mxu0
        %v503 = vadd.f32 0.0, %v502
        %v504 = vpop.f32.mrf.mxu0
        %v505 = vadd.f32 0.0, %v504
        %506 = vmatmul.bf16.gmra.mxu0 %v487
        %v507 = vpop.f32.mrf.mxu0
        %v508 = vadd.f32 0.0, %v507
        %v509 = vpop.f32.mrf.mxu0
        %v510 = vadd.f32 0.0, %v509
        %511 = vdwg.mxu0
        %512 = vmatpush.bf16.msra.mxu0 %v405
        %513 = vmatpush.bf16.msra.mxu0 %v404
        %514 = vmatpush.bf16.msra.mxu0 %v403
        %515 = vmatpush.bf16.msra.mxu0 %v402
        %516 = vmatpush.bf16.msra.mxu0 %v401
        %517 = vmatpush.bf16.msra.mxu0 %v400
        %518 = vmatpush.bf16.msra.mxu0 %v399
        %519 = vmatpush.bf16.msra.mxu0 %v398
        %520 = vmatmul.bf16.gmra.mxu0 %v486
        %v521 = vpop.f32.mrf.mxu0
        %v522 = vadd.f32 %v503, %v521
        %v523 = vpop.f32.mrf.mxu0
        %v524 = vadd.f32 %v505, %v523
        %525 = vmatmul.bf16.gmra.mxu0 %v488
        %v526 = vpop.f32.mrf.mxu0
        %v527 = vadd.f32 %v508, %v526
        %v528 = vpop.f32.mrf.mxu0
        %v529 = vadd.f32 %v510, %v528
        %530 = vdwg.mxu0
        %v531 = vmax.f32 %v464, %v522
        %v532 = vmax.f32 %v465, %v524
        %v533 = vmax.f32 %v466, %v527
        %v534 = vmax.f32 %v467, %v529
        %535 = vst [vmem:[#allocation2] sm:$0xff] %v531
        %536 = vst [vmem:[#allocation2 + $0x8] sm:$0xff] %v532
        %537 = vst [vmem:[#allocation2 + $0x10] sm:$0xff] %v533
        %538 = vst [vmem:[#allocation2 + $0x18] sm:$0xff] %v534
        %v539 = vld [vmem:[#allocation2] sm:$0xff]
        %v540 = vld [vmem:[#allocation2 + $0x8] sm:$0xff]
        %v541 = vld [vmem:[#allocation2 + $0x10] sm:$0xff]
        %v542 = vld [vmem:[#allocation2 + $0x18] sm:$0xff]
        %s543 = scalar_lea.vmem %s242, 64 [#allocation3]
        %v544 = vld [vmem:[%s543] sm:$0xff]
        %v545 = vld [vmem:[%s543 + $0x8] sm:$0xff]
        %v546 = vld [vmem:[%s543 + $0x10] sm:$0xff]
        %v547 = vld [vmem:[%s543 + $0x18] sm:$0xff]
        %v552 = vunpack.c.l.b16 %v544
        %v553 = vunpack.c.h.b16 %v544
        %v554 = vunpack.c.l.b16 %v545
        %v555 = vunpack.c.h.b16 %v545
        %v556 = vunpack.c.l.b16 %v546
        %v557 = vunpack.c.h.b16 %v546
        %v558 = vunpack.c.l.b16 %v547
        %v559 = vunpack.c.h.b16 %v547
        %v560 = vpack.c.b16 %v554, %v552
        %v561 = vpack.c.b16 %v555, %v553
        %v562 = vpack.c.b16 %v558, %v556
        %v563 = vpack.c.b16 %v559, %v557
        %568 = vmatpush.bf16.msra.mxu0 %v397
        %569 = vmatpush.bf16.msra.mxu0 %v396
        %570 = vmatpush.bf16.msra.mxu0 %v395
        %571 = vmatpush.bf16.msra.mxu0 %v394
        %572 = vmatpush.bf16.msra.mxu0 %v393
        %573 = vmatpush.bf16.msra.mxu0 %v392
        %574 = vmatpush.bf16.msra.mxu0 %v391
        %575 = vmatpush.bf16.msra.mxu0 %v390
        %576 = vmatmul.bf16.gmra.mxu0 %v560
        %v577 = vpop.f32.mrf.mxu0
        %v578 = vadd.f32 0.0, %v577
        %v579 = vpop.f32.mrf.mxu0
        %v580 = vadd.f32 0.0, %v579
        %581 = vmatmul.bf16.gmra.mxu0 %v562
        %v582 = vpop.f32.mrf.mxu0
        %v583 = vadd.f32 0.0, %v582
        %v584 = vpop.f32.mrf.mxu0
        %v585 = vadd.f32 0.0, %v584
        %586 = vdwg.mxu0
        %587 = vmatpush.bf16.msra.mxu0 %v405
        %588 = vmatpush.bf16.msra.mxu0 %v404
        %589 = vmatpush.bf16.msra.mxu0 %v403
        %590 = vmatpush.bf16.msra.mxu0 %v402
        %591 = vmatpush.bf16.msra.mxu0 %v401
        %592 = vmatpush.bf16.msra.mxu0 %v400
        %593 = vmatpush.bf16.msra.mxu0 %v399
        %594 = vmatpush.bf16.msra.mxu0 %v398
        %595 = vmatmul.bf16.gmra.mxu0 %v561
        %v596 = vpop.f32.mrf.mxu0
        %v597 = vadd.f32 %v578, %v596
        %v598 = vpop.f32.mrf.mxu0
        %v599 = vadd.f32 %v580, %v598
        %600 = vmatmul.bf16.gmra.mxu0 %v563
        %v601 = vpop.f32.mrf.mxu0
        %v602 = vadd.f32 %v583, %v601
        %v603 = vpop.f32.mrf.mxu0
        %v604 = vadd.f32 %v585, %v603
        %605 = vdwg.mxu0
        %v606 = vmax.f32 %v539, %v597
        %v607 = vmax.f32 %v540, %v599
        %v608 = vmax.f32 %v541, %v602
        %v609 = vmax.f32 %v542, %v604
        %610 = vst [vmem:[#allocation2] sm:$0xff] %v606
        %611 = vst [vmem:[#allocation2 + $0x8] sm:$0xff] %v607
        %612 = vst [vmem:[#allocation2 + $0x10] sm:$0xff] %v608
        %613 = vst [vmem:[#allocation2 + $0x18] sm:$0xff] %v609
        %v614 = vld [vmem:[#allocation2] sm:$0xff]
        %v615 = vld [vmem:[#allocation2 + $0x8] sm:$0xff]
        %v616 = vld [vmem:[#allocation2 + $0x10] sm:$0xff]
        %v617 = vld [vmem:[#allocation2 + $0x18] sm:$0xff]
        %s618 = scalar_lea.vmem %s242, 96 [#allocation3]
        %v619 = vld [vmem:[%s618] sm:$0xff]
        %v620 = vld [vmem:[%s618 + $0x8] sm:$0xff]
        %v621 = vld [vmem:[%s618 + $0x10] sm:$0xff]
        %v622 = vld [vmem:[%s618 + $0x18] sm:$0xff]
        %v627 = vunpack.c.l.b16 %v619
        %v628 = vunpack.c.h.b16 %v619
        %v629 = vunpack.c.l.b16 %v620
        %v630 = vunpack.c.h.b16 %v620
        %v631 = vunpack.c.l.b16 %v621
        %v632 = vunpack.c.h.b16 %v621
        %v633 = vunpack.c.l.b16 %v622
        %v634 = vunpack.c.h.b16 %v622
        %v635 = vpack.c.b16 %v629, %v627
        %v636 = vpack.c.b16 %v630, %v628
        %v637 = vpack.c.b16 %v633, %v631
        %v638 = vpack.c.b16 %v634, %v632
        %643 = vmatpush.bf16.msra.mxu0 %v397
        %644 = vmatpush.bf16.msra.mxu0 %v396
        %645 = vmatpush.bf16.msra.mxu0 %v395
        %646 = vmatpush.bf16.msra.mxu0 %v394
        %647 = vmatpush.bf16.msra.mxu0 %v393
        %648 = vmatpush.bf16.msra.mxu0 %v392
        %649 = vmatpush.bf16.msra.mxu0 %v391
        %650 = vmatpush.bf16.msra.mxu0 %v390
        %651 = vmatmul.bf16.gmra.mxu0 %v635
        %v652 = vpop.f32.mrf.mxu0
        %v653 = vadd.f32 0.0, %v652
        %v654 = vpop.f32.mrf.mxu0
        %v655 = vadd.f32 0.0, %v654
        %656 = vmatmul.bf16.gmra.mxu0 %v637
        %v657 = vpop.f32.mrf.mxu0
        %v658 = vadd.f32 0.0, %v657
        %v659 = vpop.f32.mrf.mxu0
        %v660 = vadd.f32 0.0, %v659
        %661 = vdwg.mxu0
        %662 = vmatpush.bf16.msra.mxu0 %v405
        %663 = vmatpush.bf16.msra.mxu0 %v404
        %664 = vmatpush.bf16.msra.mxu0 %v403
        %665 = vmatpush.bf16.msra.mxu0 %v402
        %666 = vmatpush.bf16.msra.mxu0 %v401
        %667 = vmatpush.bf16.msra.mxu0 %v400
        %668 = vmatpush.bf16.msra.mxu0 %v399
        %669 = vmatpush.bf16.msra.mxu0 %v398
        %670 = vmatmul.bf16.gmra.mxu0 %v636
        %v671 = vpop.f32.mrf.mxu0
        %v672 = vadd.f32 %v653, %v671
        %v673 = vpop.f32.mrf.mxu0
        %v674 = vadd.f32 %v655, %v673
        %675 = vmatmul.bf16.gmra.mxu0 %v638
        %v676 = vpop.f32.mrf.mxu0
        %v677 = vadd.f32 %v658, %v676
        %v678 = vpop.f32.mrf.mxu0
        %v679 = vadd.f32 %v660, %v678
        %680 = vdwg.mxu0
        %v681 = vmax.f32 %v614, %v672
        %v682 = vmax.f32 %v615, %v674
        %v683 = vmax.f32 %v616, %v677
        %v684 = vmax.f32 %v617, %v679
        %685 = vst [vmem:[#allocation2] sm:$0xff] %v681
        %686 = vst [vmem:[#allocation2 + $0x8] sm:$0xff] %v682
        %687 = vst [vmem:[#allocation2 + $0x10] sm:$0xff] %v683
        %688 = vst [vmem:[#allocation2 + $0x18] sm:$0xff] %v684
        %v689 = vld [vmem:[#allocation2] sm:$0xff]
        %v690 = vld [vmem:[#allocation2 + $0x8] sm:$0xff]
        %v691 = vld [vmem:[#allocation2 + $0x10] sm:$0xff]
        %v692 = vld [vmem:[#allocation2 + $0x18] sm:$0xff]
        %v693 = vld [vmem:[%s2] sm:$0x1]
        %v695 = vperm.slane %v693, 0
        %v697 = vadd.f32 %v689, %v695
        %v698 = vadd.f32 %v690, %v695
        %v699 = vadd.f32 %v691, %v695
        %v700 = vadd.f32 %v692, %v695
        %v701 = vmax.f32 %v697, 0.0
        %v702 = vmax.f32 %v698, 0.0
        %v703 = vmax.f32 %v699, 0.0
        %v704 = vmax.f32 %v700, 0.0
        %v705 = vpack.c.bf16 %v701, %v701
        %v706 = vpack.c.bf16 %v702, %v702
        %v707 = vpack.c.bf16 %v703, %v703
        %v708 = vpack.c.bf16 %v704, %v704
        %709 = vst [vmem:[%s268] sm:$0xf] %v705
        %710 = vst [vmem:[%s268 + $0x4] sm:$0xf] %v706
        %711 = vst [vmem:[%s268 + $0x8] sm:$0xf] %v707
        %712 = vst [vmem:[%s268 + $0xc] sm:$0xf] %v708
        %s713 = smul.u32 4, %s14
        %p714 = scmp.lt.s32.totalorder %s713, 7
        %s715 = scalar_select %p714, %s713, 7
        %s716 = smul.addr %s715, 4
        %s717 = scalar_lea.vmem %s3, %s716
        // Predicated region
        $region71: #{net_forward.4} parent=65 // pred_check
          %p718 = pneg %p100
        $region72: #{net_forward.4} parent=65 // pred_check_branch
          %720 = sbr.rel (%p718) target = $region74
        $region73: #{net_forward.4} parent=65 // pred_region
          %s721 = smul.u32 4, %s14
        $region74: #{net_forward.4} parent=65 // pred_fallthru
          _
      $region66: #{net_forward.4} parent=5 // pred_fallthru
        _
      %p722 = scmp.le.s32.totalorder 2, %s9
      // Predicated region
      $region75: #{net_forward.4} parent=5 // pred_check
        %p723 = pneg %p722
      $region76: #{net_forward.4} parent=5 // pred_check_branch
        %725 = sbr.rel (%p723) target = $region78
      $region77: #{net_forward.4} parent=5 // pred_region
        %s726 = ssub.s32 %s9, 2
        // Predicated region
        $region79: #{net_forward.4} parent=77 // pred_check
          %p727 = pneg %p106
        $region80: #{net_forward.4} parent=77 // pred_check_branch
          %729 = sbr.rel (%p727) target = $region82
        $region81: #{net_forward.4} parent=77 // pred_region
          %s730 = smul.u32 4, %s15
          %p731 = scmp.lt.s32.totalorder %s730, 7
          %s732 = scalar_select %p731, %s730, 7
          %s733 = smul.addr %s732, 4
          %s734 = scalar_lea.vmem %s3, %s733
        $region82: #{net_forward.4} parent=77 // pred_fallthru
          _
      $region78: #{net_forward.4} parent=5 // pred_fallthru
        _
    $region6: #{net_forward.4} parent=1 // loop_footer
      %s13 = sadd.s32 1, %s9
    $region7: #{net_forward.4} parent=1 // loop_footer_branch
      %8 = sbr.rel target = $region3
    $region8: #{net_forward.4} parent=1 // loop_exit
      _

// kernel: net_forward.5
$region0: #{net_forward.5}
  #allocation0 [shape = 'u32[]', space=smem, size = 0x4, offset = 0x4, fixed_abs, tag = 'smem constant byte address 0x4 - core index']
  #allocation1 [shape = 'u32[72,128]{1,0:T(1,128)}', space=vmem, size = 0x9000, scoped, tag = 'internal scratch']
  %s0 = inlined_call_operand.vmem [shape: bf16[16,512], index: 0, kind: input, shape index: {}]
  %s1 = inlined_call_operand.vmem [shape: bf16[512,128], index: 1, kind: input, shape index: {}]
  %s2 = inlined_call_operand.vmem [shape: f32[1,128], index: 2, kind: input, shape index: {}]
  %s3 = inlined_call_operand.vmem [shape: bf16[128,128], index: 3, kind: input, shape index: {}]
  %s4 = inlined_call_operand.vmem [shape: f32[1,128], index: 4, kind: input, shape index: {}]
  %s5 = inlined_call_operand.vmem [shape: bf16[128,128], index: 5, kind: input, shape index: {}]
  %s6 = inlined_call_operand.vmem [shape: f32[1,128], index: 6, kind: input, shape index: {}]
  %s7 = inlined_call_operand.vmem [shape: f32[16,128], index: 7, kind: output, shape index: {}]
  %s8 = sld [smem:[#allocation0]]
  $region38: #{net_forward.5} parent=0
    _
  %s10 = ssub.s32 1, %s8
  %s11 = scalar_select 0, %s10, %s8
  // Predicated region
  $region2: #{net_forward.5} parent=0 // pred_check
    _
  $region3: #{net_forward.5} parent=0 // pred_check_branch
    %13 = sbr.rel (0) target = $region5
  $region4: #{net_forward.5} parent=0 // pred_region
    _
  $region5: #{net_forward.5} parent=0 // pred_fallthru
    _
  // Predicated region
  $region6: #{net_forward.5} parent=0 // pred_check
    _
  $region7: #{net_forward.5} parent=0 // pred_check_branch
    %15 = sbr.rel (0) target = $region9
  $region8: #{net_forward.5} parent=0 // pred_region
    _
  $region9: #{net_forward.5} parent=0 // pred_fallthru
    _
  // Predicated region
  $region10: #{net_forward.5} parent=0 // pred_check
    _
  $region11: #{net_forward.5} parent=0 // pred_check_branch
    %17 = sbr.rel (0) target = $region13
  $region12: #{net_forward.5} parent=0 // pred_region
    _
  $region13: #{net_forward.5} parent=0 // pred_fallthru
    _
  // Predicated region
  $region14: #{net_forward.5} parent=0 // pred_check
    _
  $region15: #{net_forward.5} parent=0 // pred_check_branch
    %19 = sbr.rel (0) target = $region17
  $region16: #{net_forward.5} parent=0 // pred_region
    _
  $region17: #{net_forward.5} parent=0 // pred_fallthru
    _
  // Predicated region
  $region18: #{net_forward.5} parent=0 // pred_check
    _
  $region19: #{net_forward.5} parent=0 // pred_check_branch
    %21 = sbr.rel (0) target = $region21
  $region20: #{net_forward.5} parent=0 // pred_region
    _
  $region21: #{net_forward.5} parent=0 // pred_fallthru
    _
  // Predicated region
  $region22: #{net_forward.5} parent=0 // pred_check
    _
  $region23: #{net_forward.5} parent=0 // pred_check_branch
    %23 = sbr.rel (0) target = $region25
  $region24: #{net_forward.5} parent=0 // pred_region
    _
  $region25: #{net_forward.5} parent=0 // pred_fallthru
    _
  // Predicated region
  $region26: #{net_forward.5} parent=0 // pred_check
    _
  $region27: #{net_forward.5} parent=0 // pred_check_branch
    %25 = sbr.rel (0) target = $region29
  $region28: #{net_forward.5} parent=0 // pred_region
    _
  $region29: #{net_forward.5} parent=0 // pred_fallthru
    _
  %v26 = vld [vmem:[%s0] sm:$0xff]
  %v27 = vld [vmem:[%s0 + $0x8] sm:$0xff]
  %v28 = vld [vmem:[%s0 + $0x10] sm:$0xff]
  %v29 = vld [vmem:[%s0 + $0x18] sm:$0xff]
  %v30 = vld [vmem:[%s1] sm:$0xf]
  %v31 = vld [vmem:[%s1 + $0x4] sm:$0xf]
  %v32 = vld [vmem:[%s1 + $0x8] sm:$0xf]
  %v33 = vld [vmem:[%s1 + $0xc] sm:$0xf]
  %v34 = vld [vmem:[%s1 + $0x10] sm:$0xf]
  %v35 = vld [vmem:[%s1 + $0x14] sm:$0xf]
  %v36 = vld [vmem:[%s1 + $0x18] sm:$0xf]
  %v37 = vld [vmem:[%s1 + $0x1c] sm:$0xf]
  %v38 = vld [vmem:[%s1 + $0x20] sm:$0xf]
  %v39 = vld [vmem:[%s1 + $0x24] sm:$0xf]
  %v40 = vld [vmem:[%s1 + $0x28] sm:$0xf]
  %v41 = vld [vmem:[%s1 + $0x2c] sm:$0xf]
  %v42 = vld [vmem:[%s1 + $0x30] sm:$0xf]
  %v43 = vld [vmem:[%s1 + $0x34] sm:$0xf]
  %v44 = vld [vmem:[%s1 + $0x38] sm:$0xf]
  %v45 = vld [vmem:[%s1 + $0x3c] sm:$0xf]
  %v46 = vld [vmem:[%s1 + $0x40] sm:$0xf]
  %v47 = vld [vmem:[%s1 + $0x44] sm:$0xf]
  %v48 = vld [vmem:[%s1 + $0x48] sm:$0xf]
  %v49 = vld [vmem:[%s1 + $0x4c] sm:$0xf]
  %v50 = vld [vmem:[%s1 + $0x50] sm:$0xf]
  %v51 = vld [vmem:[%s1 + $0x54] sm:$0xf]
  %v52 = vld [vmem:[%s1 + $0x58] sm:$0xf]
  %v53 = vld [vmem:[%s1 + $0x5c] sm:$0xf]
  %v54 = vld [vmem:[%s1 + $0x60] sm:$0xf]
  %v55 = vld [vmem:[%s1 + $0x64] sm:$0xf]
  %v56 = vld [vmem:[%s1 + $0x68] sm:$0xf]
  %v57 = vld [vmem:[%s1 + $0x6c] sm:$0xf]
  %v58 = vld [vmem:[%s1 + $0x70] sm:$0xf]
  %v59 = vld [vmem:[%s1 + $0x74] sm:$0xf]
  %v60 = vld [vmem:[%s1 + $0x78] sm:$0xf]
  %v61 = vld [vmem:[%s1 + $0x7c] sm:$0xf]
  %v62 = vld [vmem:[%s1 + $0x80] sm:$0xf]
  %v63 = vld [vmem:[%s1 + $0x84] sm:$0xf]
  %v64 = vld [vmem:[%s1 + $0x88] sm:$0xf]
  %v65 = vld [vmem:[%s1 + $0x8c] sm:$0xf]
  %v66 = vld [vmem:[%s1 + $0x90] sm:$0xf]
  %v67 = vld [vmem:[%s1 + $0x94] sm:$0xf]
  %v68 = vld [vmem:[%s1 + $0x98] sm:$0xf]
  %v69 = vld [vmem:[%s1 + $0x9c] sm:$0xf]
  %v70 = vld [vmem:[%s1 + $0xa0] sm:$0xf]
  %v71 = vld [vmem:[%s1 + $0xa4] sm:$0xf]
  %v72 = vld [vmem:[%s1 + $0xa8] sm:$0xf]
  %v73 = vld [vmem:[%s1 + $0xac] sm:$0xf]
  %v74 = vld [vmem:[%s1 + $0xb0] sm:$0xf]
  %v75 = vld [vmem:[%s1 + $0xb4] sm:$0xf]
  %v76 = vld [vmem:[%s1 + $0xb8] sm:$0xf]
  %v77 = vld [vmem:[%s1 + $0xbc] sm:$0xf]
  %v78 = vld [vmem:[%s1 + $0xc0] sm:$0xf]
  %v79 = vld [vmem:[%s1 + $0xc4] sm:$0xf]
  %v80 = vld [vmem:[%s1 + $0xc8] sm:$0xf]
  %v81 = vld [vmem:[%s1 + $0xcc] sm:$0xf]
  %v82 = vld [vmem:[%s1 + $0xd0] sm:$0xf]
  %v83 = vld [vmem:[%s1 + $0xd4] sm:$0xf]
  %v84 = vld [vmem:[%s1 + $0xd8] sm:$0xf]
  %v85 = vld [vmem:[%s1 + $0xdc] sm:$0xf]
  %v86 = vld [vmem:[%s1 + $0xe0] sm:$0xf]
  %v87 = vld [vmem:[%s1 + $0xe4] sm:$0xf]
  %v88 = vld [vmem:[%s1 + $0xe8] sm:$0xf]
  %v89 = vld [vmem:[%s1 + $0xec] sm:$0xf]
  %v90 = vld [vmem:[%s1 + $0xf0] sm:$0xf]
  %v91 = vld [vmem:[%s1 + $0xf4] sm:$0xf]
  %v92 = vld [vmem:[%s1 + $0xf8] sm:$0xf]
  %v93 = vld [vmem:[%s1 + $0xfc] sm:$0xf]
  %v94 = vld [vmem:[%s2] sm:$0x1]
  %v96 = vperm.slane %v94, 0
  %v102 = vunpack.c.l.b16 %v26
  %v103 = vunpack.c.h.b16 %v26
  %v104 = vunpack.c.l.b16 %v27
  %v105 = vunpack.c.h.b16 %v27
  %v106 = vunpack.c.l.b16 %v28
  %v107 = vunpack.c.h.b16 %v28
  %v108 = vunpack.c.l.b16 %v29
  %v109 = vunpack.c.h.b16 %v29
  %v110 = vpack.c.b16 %v106, %v102
  %v111 = vpack.c.b16 %v107, %v103
  %v112 = vpack.c.b16 %v108, %v104
  %v113 = vpack.c.b16 %v109, %v105
  %v182 = vunpack.c.l.b16 %v30
  %v183 = vunpack.c.l.b16 %v31
  %v184 = vunpack.c.l.b16 %v32
  %v185 = vunpack.c.l.b16 %v33
  %v186 = vunpack.c.l.b16 %v34
  %v187 = vunpack.c.l.b16 %v35
  %v188 = vunpack.c.l.b16 %v36
  %v189 = vunpack.c.l.b16 %v37
  %v190 = vunpack.c.l.b16 %v38
  %v191 = vunpack.c.l.b16 %v39
  %v192 = vunpack.c.l.b16 %v40
  %v193 = vunpack.c.l.b16 %v41
  %v194 = vunpack.c.l.b16 %v42
  %v195 = vunpack.c.l.b16 %v43
  %v196 = vunpack.c.l.b16 %v44
  %v197 = vunpack.c.l.b16 %v45
  %v198 = vunpack.c.l.b16 %v46
  %v199 = vunpack.c.l.b16 %v47
  %v200 = vunpack.c.l.b16 %v48
  %v201 = vunpack.c.l.b16 %v49
  %v202 = vunpack.c.l.b16 %v50
  %v203 = vunpack.c.l.b16 %v51
  %v204 = vunpack.c.l.b16 %v52
  %v205 = vunpack.c.l.b16 %v53
  %v206 = vunpack.c.l.b16 %v54
  %v207 = vunpack.c.l.b16 %v55
  %v208 = vunpack.c.l.b16 %v56
  %v209 = vunpack.c.l.b16 %v57
  %v210 = vunpack.c.l.b16 %v58
  %v211 = vunpack.c.l.b16 %v59
  %v212 = vunpack.c.l.b16 %v60
  %v213 = vunpack.c.l.b16 %v61
  %v214 = vunpack.c.l.b16 %v62
  %v215 = vunpack.c.l.b16 %v63
  %v216 = vunpack.c.l.b16 %v64
  %v217 = vunpack.c.l.b16 %v65
  %v218 = vunpack.c.l.b16 %v66
  %v219 = vunpack.c.l.b16 %v67
  %v220 = vunpack.c.l.b16 %v68
  %v221 = vunpack.c.l.b16 %v69
  %v222 = vunpack.c.l.b16 %v70
  %v223 = vunpack.c.l.b16 %v71
  %v224 = vunpack.c.l.b16 %v72
  %v225 = vunpack.c.l.b16 %v73
  %v226 = vunpack.c.l.b16 %v74
  %v227 = vunpack.c.l.b16 %v75
  %v228 = vunpack.c.l.b16 %v76
  %v229 = vunpack.c.l.b16 %v77
  %v230 = vunpack.c.l.b16 %v78
  %v231 = vunpack.c.l.b16 %v79
  %v232 = vunpack.c.l.b16 %v80
  %v233 = vunpack.c.l.b16 %v81
  %v234 = vunpack.c.l.b16 %v82
  %v235 = vunpack.c.l.b16 %v83
  %v236 = vunpack.c.l.b16 %v84
  %v237 = vunpack.c.l.b16 %v85
  %v238 = vunpack.c.l.b16 %v86
  %v239 = vunpack.c.l.b16 %v87
  %v240 = vunpack.c.l.b16 %v88
  %v241 = vunpack.c.l.b16 %v89
  %v242 = vunpack.c.l.b16 %v90
  %v243 = vunpack.c.l.b16 %v91
  %v244 = vunpack.c.l.b16 %v92
  %v245 = vunpack.c.l.b16 %v93
  %v246 = vpack.c.b16 %v183, %v182
  %v247 = vpack.c.b16 %v185, %v184
  %v248 = vpack.c.b16 %v187, %v186
  %v249 = vpack.c.b16 %v189, %v188
  %v250 = vpack.c.b16 %v191, %v190
  %v251 = vpack.c.b16 %v193, %v192
  %v252 = vpack.c.b16 %v195, %v194
  %v253 = vpack.c.b16 %v197, %v196
  %v254 = vpack.c.b16 %v199, %v198
  %v255 = vpack.c.b16 %v201, %v200
  %v256 = vpack.c.b16 %v203, %v202
  %v257 = vpack.c.b16 %v205, %v204
  %v258 = vpack.c.b16 %v207, %v206
  %v259 = vpack.c.b16 %v209, %v208
  %v260 = vpack.c.b16 %v211, %v210
  %v261 = vpack.c.b16 %v213, %v212
  %v262 = vpack.c.b16 %v215, %v214
  %v263 = vpack.c.b16 %v217, %v216
  %v264 = vpack.c.b16 %v219, %v218
  %v265 = vpack.c.b16 %v221, %v220
  %v266 = vpack.c.b16 %v223, %v222
  %v267 = vpack.c.b16 %v225, %v224
  %v268 = vpack.c.b16 %v227, %v226
  %v269 = vpack.c.b16 %v229, %v228
  %v270 = vpack.c.b16 %v231, %v230
  %v271 = vpack.c.b16 %v233, %v232
  %v272 = vpack.c.b16 %v235, %v234
  %v273 = vpack.c.b16 %v237, %v236
  %v274 = vpack.c.b16 %v239, %v238
  %v275 = vpack.c.b16 %v241, %v240
  %v276 = vpack.c.b16 %v243, %v242
  %v277 = vpack.c.b16 %v245, %v244
  %310 = vmatpush.bf16.msra.mxu0 %v253
  %311 = vmatpush.bf16.msra.mxu0 %v252
  %312 = vmatpush.bf16.msra.mxu0 %v251
  %313 = vmatpush.bf16.msra.mxu0 %v250
  %314 = vmatpush.bf16.msra.mxu0 %v249
  %315 = vmatpush.bf16.msra.mxu0 %v248
  %316 = vmatpush.bf16.msra.mxu0 %v247
  %317 = vmatpush.bf16.msra.mxu0 %v246
  %318 = vmatmul.bf16.gmra.mxu0 %v110
  %v319 = vpop.f32.mrf.mxu0
  %v320 = vadd.f32 %v96, %v319
  %v321 = vpop.f32.mrf.mxu0
  %v322 = vadd.f32 %v96, %v321
  %323 = vdwg.mxu0
  %324 = vmatpush.bf16.msra.mxu0 %v261
  %325 = vmatpush.bf16.msra.mxu0 %v260
  %326 = vmatpush.bf16.msra.mxu0 %v259
  %327 = vmatpush.bf16.msra.mxu0 %v258
  %328 = vmatpush.bf16.msra.mxu0 %v257
  %329 = vmatpush.bf16.msra.mxu0 %v256
  %330 = vmatpush.bf16.msra.mxu0 %v255
  %331 = vmatpush.bf16.msra.mxu0 %v254
  %332 = vmatmul.bf16.gmra.mxu0 %v111
  %v333 = vpop.f32.mrf.mxu0
  %v334 = vadd.f32 %v320, %v333
  %v335 = vpop.f32.mrf.mxu0
  %v336 = vadd.f32 %v322, %v335
  %337 = vdwg.mxu0
  %338 = vmatpush.bf16.msra.mxu0 %v269
  %339 = vmatpush.bf16.msra.mxu0 %v268
  %340 = vmatpush.bf16.msra.mxu0 %v267
  %341 = vmatpush.bf16.msra.mxu0 %v266
  %342 = vmatpush.bf16.msra.mxu0 %v265
  %343 = vmatpush.bf16.msra.mxu0 %v264
  %344 = vmatpush.bf16.msra.mxu0 %v263
  %345 = vmatpush.bf16.msra.mxu0 %v262
  %346 = vmatmul.bf16.gmra.mxu0 %v112
  %v347 = vpop.f32.mrf.mxu0
  %v348 = vadd.f32 %v334, %v347
  %v349 = vpop.f32.mrf.mxu0
  %v350 = vadd.f32 %v336, %v349
  %351 = vdwg.mxu0
  %352 = vmatpush.bf16.msra.mxu0 %v277
  %353 = vmatpush.bf16.msra.mxu0 %v276
  %354 = vmatpush.bf16.msra.mxu0 %v275
  %355 = vmatpush.bf16.msra.mxu0 %v274
  %356 = vmatpush.bf16.msra.mxu0 %v273
  %357 = vmatpush.bf16.msra.mxu0 %v272
  %358 = vmatpush.bf16.msra.mxu0 %v271
  %359 = vmatpush.bf16.msra.mxu0 %v270
  %360 = vmatmul.bf16.gmra.mxu0 %v113
  %v361 = vpop.f32.mrf.mxu0
  %v362 = vadd.f32 %v348, %v361
  %v363 = vpop.f32.mrf.mxu0
  %v364 = vadd.f32 %v350, %v363
  %365 = vdwg.mxu0
  %v366 = vmax.f32 %v362, 0.0
  %v367 = vmax.f32 %v364, 0.0
  %v368 = vpack.c.bf16 %v367, %v366
  %v369 = vld [vmem:[%s3] sm:$0xf]
  %v370 = vld [vmem:[%s3 + $0x4] sm:$0xf]
  %v371 = vld [vmem:[%s3 + $0x8] sm:$0xf]
  %v372 = vld [vmem:[%s3 + $0xc] sm:$0xf]
  %v373 = vld [vmem:[%s3 + $0x10] sm:$0xf]
  %v374 = vld [vmem:[%s3 + $0x14] sm:$0xf]
  %v375 = vld [vmem:[%s3 + $0x18] sm:$0xf]
  %v376 = vld [vmem:[%s3 + $0x1c] sm:$0xf]
  %v377 = vld [vmem:[%s3 + $0x20] sm:$0xf]
  %v378 = vld [vmem:[%s3 + $0x24] sm:$0xf]
  %v379 = vld [vmem:[%s3 + $0x28] sm:$0xf]
  %v380 = vld [vmem:[%s3 + $0x2c] sm:$0xf]
  %v381 = vld [vmem:[%s3 + $0x30] sm:$0xf]
  %v382 = vld [vmem:[%s3 + $0x34] sm:$0xf]
  %v383 = vld [vmem:[%s3 + $0x38] sm:$0xf]
  %v384 = vld [vmem:[%s3 + $0x3c] sm:$0xf]
  %v385 = vld [vmem:[%s4] sm:$0x1]
  %v387 = vperm.slane %v385, 0
  %v405 = vunpack.c.l.b16 %v369
  %v406 = vunpack.c.l.b16 %v370
  %v407 = vunpack.c.l.b16 %v371
  %v408 = vunpack.c.l.b16 %v372
  %v409 = vunpack.c.l.b16 %v373
  %v410 = vunpack.c.l.b16 %v374
  %v411 = vunpack.c.l.b16 %v375
  %v412 = vunpack.c.l.b16 %v376
  %v413 = vunpack.c.l.b16 %v377
  %v414 = vunpack.c.l.b16 %v378
  %v415 = vunpack.c.l.b16 %v379
  %v416 = vunpack.c.l.b16 %v380
  %v417 = vunpack.c.l.b16 %v381
  %v418 = vunpack.c.l.b16 %v382
  %v419 = vunpack.c.l.b16 %v383
  %v420 = vunpack.c.l.b16 %v384
  %v421 = vpack.c.b16 %v406, %v405
  %v422 = vpack.c.b16 %v408, %v407
  %v423 = vpack.c.b16 %v410, %v409
  %v424 = vpack.c.b16 %v412, %v411
  %v425 = vpack.c.b16 %v414, %v413
  %v426 = vpack.c.b16 %v416, %v415
  %v427 = vpack.c.b16 %v418, %v417
  %v428 = vpack.c.b16 %v420, %v419
  %437 = vmatpush.bf16.msra.mxu0 %v428
  %438 = vmatpush.bf16.msra.mxu0 %v427
  %439 = vmatpush.bf16.msra.mxu0 %v426
  %440 = vmatpush.bf16.msra.mxu0 %v425
  %441 = vmatpush.bf16.msra.mxu0 %v424
  %442 = vmatpush.bf16.msra.mxu0 %v423
  %443 = vmatpush.bf16.msra.mxu0 %v422
  %444 = vmatpush.bf16.msra.mxu0 %v421
  %445 = vmatmul.bf16.gmra.mxu0 %v368
  %v446 = vpop.f32.mrf.mxu0
  %v447 = vadd.f32 %v387, %v446
  %v448 = vpop.f32.mrf.mxu0
  %v449 = vadd.f32 %v387, %v448
  %450 = vdwg.mxu0
  %v451 = vmax.f32 %v447, 0.0
  %v452 = vmax.f32 %v449, 0.0
  %v453 = vpack.c.bf16 %v452, %v451
  %v454 = vld [vmem:[%s5] sm:$0xf]
  %v455 = vld [vmem:[%s5 + $0x4] sm:$0xf]
  %v456 = vld [vmem:[%s5 + $0x8] sm:$0xf]
  %v457 = vld [vmem:[%s5 + $0xc] sm:$0xf]
  %v458 = vld [vmem:[%s5 + $0x10] sm:$0xf]
  %v459 = vld [vmem:[%s5 + $0x14] sm:$0xf]
  %v460 = vld [vmem:[%s5 + $0x18] sm:$0xf]
  %v461 = vld [vmem:[%s5 + $0x1c] sm:$0xf]
  %v462 = vld [vmem:[%s5 + $0x20] sm:$0xf]
  %v463 = vld [vmem:[%s5 + $0x24] sm:$0xf]
  %v464 = vld [vmem:[%s5 + $0x28] sm:$0xf]
  %v465 = vld [vmem:[%s5 + $0x2c] sm:$0xf]
  %v466 = vld [vmem:[%s5 + $0x30] sm:$0xf]
  %v467 = vld [vmem:[%s5 + $0x34] sm:$0xf]
  %v468 = vld [vmem:[%s5 + $0x38] sm:$0xf]
  %v469 = vld [vmem:[%s5 + $0x3c] sm:$0xf]
  %v470 = vld [vmem:[%s6] sm:$0x1]
  %v472 = vperm.slane %v470, 0
  %v490 = vunpack.c.l.b16 %v454
  %v491 = vunpack.c.l.b16 %v455
  %v492 = vunpack.c.l.b16 %v456
  %v493 = vunpack.c.l.b16 %v457
  %v494 = vunpack.c.l.b16 %v458
  %v495 = vunpack.c.l.b16 %v459
  %v496 = vunpack.c.l.b16 %v460
  %v497 = vunpack.c.l.b16 %v461
  %v498 = vunpack.c.l.b16 %v462
  %v499 = vunpack.c.l.b16 %v463
  %v500 = vunpack.c.l.b16 %v464
  %v501 = vunpack.c.l.b16 %v465
  %v502 = vunpack.c.l.b16 %v466
  %v503 = vunpack.c.l.b16 %v467
  %v504 = vunpack.c.l.b16 %v468
  %v505 = vunpack.c.l.b16 %v469
  %v506 = vpack.c.b16 %v491, %v490
  %v507 = vpack.c.b16 %v493, %v492
  %v508 = vpack.c.b16 %v495, %v494
  %v509 = vpack.c.b16 %v497, %v496
  %v510 = vpack.c.b16 %v499, %v498
  %v511 = vpack.c.b16 %v501, %v500
  %v512 = vpack.c.b16 %v503, %v502
  %v513 = vpack.c.b16 %v505, %v504
  %522 = vmatpush.bf16.msra.mxu0 %v513
  %523 = vmatpush.bf16.msra.mxu0 %v512
  %524 = vmatpush.bf16.msra.mxu0 %v511
  %525 = vmatpush.bf16.msra.mxu0 %v510
  %526 = vmatpush.bf16.msra.mxu0 %v509
  %527 = vmatpush.bf16.msra.mxu0 %v508
  %528 = vmatpush.bf16.msra.mxu0 %v507
  %529 = vmatpush.bf16.msra.mxu0 %v506
  %530 = vmatmul.bf16.gmra.mxu0 %v453
  %v531 = vpop.f32.mrf.mxu0
  %v532 = vadd.f32 %v472, %v531
  %v533 = vpop.f32.mrf.mxu0
  %v534 = vadd.f32 %v472, %v533
  %535 = vdwg.mxu0
  %536 = vst [vmem:[%s7] sm:$0xff] %v532
  %537 = vst [vmem:[%s7 + $0x8] sm:$0xff] %v534
  // Predicated region
  $region30: #{net_forward.5} parent=0 // pred_check
    _
  $region31: #{net_forward.5} parent=0 // pred_check_branch
    %539 = sbr.rel (0) target = $region33
  $region32: #{net_forward.5} parent=0 // pred_region
    _
  $region33: #{net_forward.5} parent=0 // pred_fallthru
    _
  // Predicated region
  $region34: #{net_forward.5} parent=0 // pred_check
    _
  $region35: #{net_forward.5} parent=0 // pred_check_branch
    %541 = sbr.rel (0) target = $region37
  $region36: #{net_forward.5} parent=0 // pred_region
    _
  $region37: #{net_forward.5} parent=0 // pred_fallthru
    _

</llo_original>
